<compile_context>
chip_gen: v7x
topology: tpu7x:2x2x1
jax: 0.10.0
libtpu: 0.0.40
codegen_flags: <defaults>
</compile_context>

<pallas_src>
import numpy as np

import jax
import jax.numpy as jnp
from jax.experimental import pallas as pl
from jax.experimental.pallas import tpu as pltpu


# 3x3 tap ordering (dh, dw) -- must match the weight packing in the wrapper
# (w.transpose(2, 3, 0, 1)) and the precomputed boundary masks.
_TAPS = tuple((dh, dw) for dh in (-1, 0, 1) for dw in (-1, 0, 1))


# ----------------------------------------------------------------------------
# Fused Pallas kernel (one grid step == one batch element)
# ----------------------------------------------------------------------------
def _make_kernel(W, N, d_model, hidden):
    """W: image width (= Conv1d output length), N = H*W flattened positions."""

    def kernel(seq_ref, sig_ref, mask_ref, wseq_ref,
               w1_ref, bn1s_ref, bn1t_ref,
               w2_ref, bn2s_ref, bn2t_ref,
               w3_ref, bn3s_ref, bn3t_ref,
               fc1w_ref, fc1b_ref, fc2w_ref, fc2b_ref,
               out_ref):
        f32 = jnp.float32

        # ---- sequence Conv1d(5->2, k=9, valid) + tanh -----------------------
        # seq is zero-padded to N lanes; compute both output channels as a
        # (2, N) array via 9 tap matmuls, then place channel 0 in lanes
        # [0, W) and channel 1 in lanes [W, 2W) of the flattened image.
        seq = seq_ref[0]                                        # (5, N)
        z = None
        for t in range(9):
            rolled = seq if t == 0 else pltpu.roll(seq, shift=(N - t) % N, axis=1)
            contrib = jnp.dot(wseq_ref[t], rolled,               # (2,5)@(5,N)
                              preferred_element_type=f32)
            z = contrib if z is None else z + contrib
        z = z * mask_ref[9:10, :]                                # zero lanes >= W
        emb0 = jnp.tanh(z[0:1, :])                               # lanes [0, W)
        emb1 = pltpu.roll(jnp.tanh(z[1:2, :]), shift=W, axis=1)  # lanes [W, 2W)
        x0 = sig_ref[0] + emb0 + emb1                            # (1, N) flat image

        # ---- 3x3 "same" conv + folded-BN + tanh on the flat layout ---------
        def conv3x3(x, w_ref, scale_ref, shift_ref, use_dot):
            acc = None
            for t, (dh, dw) in enumerate(_TAPS):
                s = dh * W + dw
                shifted = x if s == 0 else pltpu.roll(x, shift=(-s) % N, axis=1)
                shifted = shifted * mask_ref[t:t + 1, :]         # (Cin, N)
                if use_dot:
                    contrib = jnp.dot(w_ref[t], shifted,         # (Cout,Cin)@(Cin,N)
                                      preferred_element_type=f32)
                else:                                            # Cin == 1 layer:
                    contrib = w_ref[t] * shifted                 # (Cout,1)*(1,N)
                acc = contrib if acc is None else acc + contrib
            return jnp.tanh(acc * scale_ref[...] + shift_ref[...])

        res1 = conv3x3(x0,   w1_ref, bn1s_ref, bn1t_ref, use_dot=False)  # (d,  N)
        res2 = conv3x3(res1, w2_ref, bn2s_ref, bn2t_ref, use_dot=True)   # (4d, N)
        res3 = conv3x3(res2, w3_ref, bn3s_ref, bn3t_ref, use_dot=True)   # (d,  N)

        # ---- head: residual add, global max pool (lane reduce), FCs --------
        pooled = jnp.max(res1 + res3, axis=1, keepdims=True)     # (d, 1)

        h = fc1b_ref[...]                                        # (hidden, 1)
        for k in range(d_model):
            h = h + fc1w_ref[:, k:k + 1] * pooled[k:k + 1, :]
        h = jnp.maximum(h, 0.0)                                  # ReLU

        logits = fc2b_ref[...]                                   # (nc, 1)
        for j in range(hidden):
            logits = logits + fc2w_ref[:, j:j + 1] * h[j:j + 1, :]
        out_ref[0] = 1.0 / (1.0 + jnp.exp(-logits))              # sigmoid

    return kernel


# ----------------------------------------------------------------------------
# Forward pass: tiny layout prep (KB-scale, one-time) + one fused pallas_call
# ----------------------------------------------------------------------------
def m6aiso_forward(params, sequence_batch, signal_batch):
    B, Cseq, L = sequence_batch.shape
    _, S, Wsig = signal_batch.shape
    W = L - 8                                  # Conv1d(k=9, pad=0)
    assert Wsig == W, "signal width must match Conv1d output length"
    H = 2 + S                                  # 2 embedding rows + signal rows
    N = H * W                                  # flattened spatial positions
    assert N >= L and N >= 2 * W

    d = params["w1"].shape[0]
    hidden = params["fc1_w"].shape[0]
    nc = params["fc2_w"].shape[0]

    # --- inputs in the flat, lane-dense layout ------------------------------
    seq_pad = jnp.pad(sequence_batch, ((0, 0), (0, 0), (0, N - L)))      # (B,5,N)
    sig_flat = jnp.pad(signal_batch.reshape(B, 1, S * W),
                       ((0, 0), (0, 0), (2 * W, N - 2 * W - S * W)))     # (B,1,N)

    # --- compile-time boundary masks (rows 0..8: conv taps, row 9: seq) -----
    pos = np.arange(N)
    row, col = pos // W, pos % W
    masks = np.zeros((10, N), np.float32)
    for t, (dh, dw) in enumerate(_TAPS):
        masks[t] = ((row + dh >= 0) & (row + dh < H) &
                    (col + dw >= 0) & (col + dw < W))
    masks[9] = (pos < W)
    masks = jnp.asarray(masks)

    # --- weights repacked tap-major so w[t] is the (Cout, Cin) tap matrix ---
    wseq_t = jnp.transpose(params["seq_w"], (2, 0, 1))                    # (9,2,5)
    w1_t = jnp.transpose(params["w1"], (2, 3, 0, 1)).reshape(9, d, 1)
    w2_t = jnp.transpose(params["w2"], (2, 3, 0, 1)).reshape(9, 4 * d, d)
    w3_t = jnp.transpose(params["w3"], (2, 3, 0, 1)).reshape(9, d, 4 * d)
    bn1s, bn1t = params["bn1_scale"].T, params["bn1_shift"].T             # (d,1)
    bn2s, bn2t = params["bn2_scale"].T, params["bn2_shift"].T             # (4d,1)
    bn3s, bn3t = params["bn3_scale"].T, params["bn3_shift"].T             # (d,1)
    fc1w, fc1b = params["fc1_w"], params["fc1_b"][:, None]                # (16,d),(16,1)
    fc2w, fc2b = params["fc2_w"], params["fc2_b"][:, None]                # (nc,16),(nc,1)

    const2 = lambda shape: pl.BlockSpec(shape, lambda b: (0, 0))
    const3 = lambda shape: pl.BlockSpec(shape, lambda b: (0, 0, 0))

    out = pl.pallas_call(
        _make_kernel(W, N, d, hidden),
        out_shape=jax.ShapeDtypeStruct((B, nc, 1), jnp.float32),
        grid_spec=pltpu.PrefetchScalarGridSpec(
            num_scalar_prefetch=0,
            grid=(B,),
            in_specs=[
                pl.BlockSpec((1, Cseq, N), lambda b: (b, 0, 0)),   # sequence
                pl.BlockSpec((1, 1, N), lambda b: (b, 0, 0)),      # flat signal
                const2((10, N)),                                   # boundary masks
                const3((9, 2, Cseq)),                              # seq conv W
                const3((9, d, 1)), const2((d, 1)), const2((d, 1)),         # layer 1
                const3((9, 4 * d, d)), const2((4 * d, 1)), const2((4 * d, 1)),  # layer 2
                const3((9, d, 4 * d)), const2((d, 1)), const2((d, 1)),     # layer 3
                const2((hidden, d)), const2((hidden, 1)),          # fc1
                const2((nc, hidden)), const2((nc, 1)),             # fc2
            ],
            out_specs=pl.BlockSpec((1, nc, 1), lambda b: (b, 0, 0)),
        ),
        compiler_params=pltpu.CompilerParams(
            dimension_semantics=("parallel",),          # batch across TCs (v7x)
            vmem_limit_bytes=32 * 1024 * 1024,
        ),
    )(seq_pad, sig_flat, masks, wseq_t,
      w1_t, bn1s, bn1t, w2_t, bn2s, bn2t, w3_t, bn3s, bn3t,
      fc1w, fc1b, fc2w, fc2b)

    return out[:, :, 0]                                            # (B, nc)


# ----------------------------------------------------------------------------
# Pure-JAX reference (for correctness check)
# ----------------------------------------------------------------------------
def reference_forward(params, seq, sig):
    hi = jax.lax.Precision.HIGHEST
    emb = jax.lax.conv_general_dilated(
        seq, params["seq_w"], window_strides=(1,), padding="VALID",
        dimension_numbers=("NCH", "OIH", "NCH"), precision=hi)
    emb = jnp.tanh(emb)
    x = jnp.concatenate([emb, sig], axis=1)[:, None, :, :]

    def block(xin, w, scale, shift):
        y = jax.lax.conv_general_dilated(
            xin, w, window_strides=(1, 1), padding=((1, 1), (1, 1)),
            dimension_numbers=("NCHW", "OIHW", "NCHW"), precision=hi)
        return jnp.tanh(y * scale[0][None, :, None, None]
                        + shift[0][None, :, None, None])

    r1 = block(x, params["w1"], params["bn1_scale"], params["bn1_shift"])
    r2 = block(r1, params["w2"], params["bn2_scale"], params["bn2_shift"])
    r3 = block(r2, params["w3"], params["bn3_scale"], params["bn3_shift"])
    pooled = jnp.max(r1 + r3, axis=(2, 3))
    h = jnp.maximum(pooled @ params["fc1_w"].T + params["fc1_b"], 0.0)
    return jax.nn.sigmoid(h @ params["fc2_w"].T + params["fc2_b"])


# ----------------------------------------------------------------------------
# Parameter construction (deterministic, synthetic; BN folded for eval mode)
# ----------------------------------------------------------------------------
def make_params(key, d_model, num_classes):
    ks = jax.random.split(key, 20)

    def nrm(k, shape, s=0.1):
        return (s * jax.random.normal(k, shape)).astype(jnp.float32)

    def bn_fold(kg, kb, km, kv, C, eps=1e-5):
        gamma = 1.0 + 0.1 * jax.random.normal(kg, (C,))
        beta = 0.1 * jax.random.normal(kb, (C,))
        mean = 0.1 * jax.random.normal(km, (C,))
        var = 1.0 + 0.1 * jnp.abs(jax.random.normal(kv, (C,)))
        scale = gamma / jnp.sqrt(var + eps)
        shift = beta - mean * scale
        return (scale[None, :].astype(jnp.float32),
                shift[None, :].astype(jnp.float32))

    p = {
        "seq_w": nrm(ks[0], (2, 5, 9)),
        "w1": nrm(ks[1], (d_model, 1, 3, 3)),
        "w2": nrm(ks[2], (d_model * 4, d_model, 3, 3)),
        "w3": nrm(ks[3], (d_model, d_model * 4, 3, 3)),
        "fc1_w": nrm(ks[4], (16, d_model)),
        "fc1_b": nrm(ks[5], (16,)),
        "fc2_w": nrm(ks[6], (num_classes, 16)),
        "fc2_b": nrm(ks[7], (num_classes,)),
    }
    p["bn1_scale"], p["bn1_shift"] = bn_fold(ks[8], ks[9], ks[10], ks[11], d_model)
    p["bn2_scale"], p["bn2_shift"] = bn_fold(ks[12], ks[13], ks[14], ks[15], d_model * 4)
    p["bn3_scale"], p["bn3_shift"] = bn_fold(ks[16], ks[17], ks[18], ks[19], d_model)
    return p


# ----------------------------------------------------------------------------
if __name__ == "__main__":
    B = 2
    d_model = 4
    num_classes = 1
    L_seq = 24            # Conv1d(k=9, pad=0) -> W = 16
    W = L_seq - 8
    S_rows = 6            # signal rows -> H = 2 + 6 = 8, H*W = 128 lanes

    key = jax.random.PRNGKey(0)
    kp, kx, ks = jax.random.split(key, 3)
    params = make_params(kp, d_model, num_classes)

    sequence_batch = (0.5 * jax.random.normal(kx, (B, 5, L_seq))).astype(jnp.float32)
    signal_batch = (0.5 * jax.random.normal(ks, (B, S_rows, W))).astype(jnp.float32)

    fwd = jax.jit(m6aiso_forward)
    out = jax.block_until_ready(fwd(params, sequence_batch, signal_batch))

    ref = jax.block_until_ready(
        jax.jit(reference_forward)(params, sequence_batch, signal_batch))

    assert out.shape == (B, num_classes)
    assert jnp.allclose(out, ref, atol=1e-3, rtol=1e-3)

    print("KERNEL_OK")
</pallas_src>

<mosaic_0001>
module attributes {stable_mosaic.version = 11 : i64} {
  func.func @kernel(%arg0: i32, %arg1: memref<1x5x128xf32, #tpu.memory_space<vmem>>, %arg2: memref<1x1x128xf32, #tpu.memory_space<vmem>>, %arg3: memref<10x128xf32, #tpu.memory_space<vmem>>, %arg4: memref<9x2x5xf32, #tpu.memory_space<vmem>>, %arg5: memref<9x4x1xf32, #tpu.memory_space<vmem>>, %arg6: memref<4x1xf32, #tpu.memory_space<vmem>>, %arg7: memref<4x1xf32, #tpu.memory_space<vmem>>, %arg8: memref<9x16x4xf32, #tpu.memory_space<vmem>>, %arg9: memref<16x1xf32, #tpu.memory_space<vmem>>, %arg10: memref<16x1xf32, #tpu.memory_space<vmem>>, %arg11: memref<9x4x16xf32, #tpu.memory_space<vmem>>, %arg12: memref<4x1xf32, #tpu.memory_space<vmem>>, %arg13: memref<4x1xf32, #tpu.memory_space<vmem>>, %arg14: memref<16x4xf32, #tpu.memory_space<vmem>>, %arg15: memref<16x1xf32, #tpu.memory_space<vmem>>, %arg16: memref<1x16xf32, #tpu.memory_space<vmem>>, %arg17: memref<1x1xf32, #tpu.memory_space<vmem>>, %arg18: memref<1x1x1xf32, #tpu.memory_space<vmem>>) attributes {dimension_semantics = [#tpu.dimension_semantics<parallel>], iteration_bounds = array<i64: 2>, scalar_prefetch = 0 : i64, scratch_operands = 0 : i64, tpu.core_type = #tpu.core_type<tc>, window_params = [{transform_indices = @transform_0, window_bounds = array<i64: 1, 5, 128>}, {transform_indices = @transform_1, window_bounds = array<i64: 1, 1, 128>}, {pipeline_mode = #tpu.pipeline_mode<synchronous>, transform_indices = @transform_2, window_bounds = array<i64: 10, 128>}, {pipeline_mode = #tpu.pipeline_mode<synchronous>, transform_indices = @transform_3, window_bounds = array<i64: 9, 2, 5>}, {pipeline_mode = #tpu.pipeline_mode<synchronous>, transform_indices = @transform_4, window_bounds = array<i64: 9, 4, 1>}, {pipeline_mode = #tpu.pipeline_mode<synchronous>, transform_indices = @transform_5, window_bounds = array<i64: 4, 1>}, {pipeline_mode = #tpu.pipeline_mode<synchronous>, transform_indices = @transform_6, window_bounds = array<i64: 4, 1>}, {pipeline_mode = #tpu.pipeline_mode<synchronous>, transform_indices = @transform_7, window_bounds = array<i64: 9, 16, 4>}, {pipeline_mode = #tpu.pipeline_mode<synchronous>, transform_indices = @transform_8, window_bounds = array<i64: 16, 1>}, {pipeline_mode = #tpu.pipeline_mode<synchronous>, transform_indices = @transform_9, window_bounds = array<i64: 16, 1>}, {pipeline_mode = #tpu.pipeline_mode<synchronous>, transform_indices = @transform_10, window_bounds = array<i64: 9, 4, 16>}, {pipeline_mode = #tpu.pipeline_mode<synchronous>, transform_indices = @transform_11, window_bounds = array<i64: 4, 1>}, {pipeline_mode = #tpu.pipeline_mode<synchronous>, transform_indices = @transform_12, window_bounds = array<i64: 4, 1>}, {pipeline_mode = #tpu.pipeline_mode<synchronous>, transform_indices = @transform_13, window_bounds = array<i64: 16, 4>}, {pipeline_mode = #tpu.pipeline_mode<synchronous>, transform_indices = @transform_14, window_bounds = array<i64: 16, 1>}, {pipeline_mode = #tpu.pipeline_mode<synchronous>, transform_indices = @transform_15, window_bounds = array<i64: 1, 16>}, {pipeline_mode = #tpu.pipeline_mode<synchronous>, transform_indices = @transform_16, window_bounds = array<i64: 1, 1>}, {transform_indices = @transform_17, window_bounds = array<i64: 1, 1, 1>}]} {
    %c0 = arith.constant 0 : index
    %c0_0 = arith.constant 0 : index
    %c0_1 = arith.constant 0 : index
    %0 = vector.load %arg1[%c0, %c0_0, %c0_1] : memref<1x5x128xf32, #tpu.memory_space<vmem>>, vector<1x5x128xf32>
    %1 = vector.shape_cast %0 : vector<1x5x128xf32> to vector<5x128xf32>
    %c0_2 = arith.constant 0 : index
    %c0_3 = arith.constant 0 : index
    %c0_4 = arith.constant 0 : index
    %2 = vector.load %arg4[%c0_2, %c0_3, %c0_4] : memref<9x2x5xf32, #tpu.memory_space<vmem>>, vector<1x2x5xf32>
    %3 = vector.shape_cast %2 : vector<1x2x5xf32> to vector<2x5xf32>
    %cst = arith.constant dense<0.000000e+00> : vector<2x128xf32>
    %4 = tpu.matmul %3, %1, %cst {dimension_numbers = #tpu.dot_dimension_numbers<[1], [0], [0], [1], [0, 0, 1, 1], [], []>} : vector<2x5xf32>, vector<5x128xf32>, vector<2x128xf32> -> vector<2x128xf32>
    %c127_i32 = arith.constant 127 : i32
    %5 = tpu.dynamic_rotate %1 by %c127_i32 dim 1 : vector<5x128xf32>, i32 -> vector<5x128xf32>
    %c1 = arith.constant 1 : index
    %c0_5 = arith.constant 0 : index
    %c0_6 = arith.constant 0 : index
    %6 = vector.load %arg4[%c1, %c0_5, %c0_6] : memref<9x2x5xf32, #tpu.memory_space<vmem>>, vector<1x2x5xf32>
    %7 = vector.shape_cast %6 : vector<1x2x5xf32> to vector<2x5xf32>
    %cst_7 = arith.constant dense<0.000000e+00> : vector<2x128xf32>
    %8 = tpu.matmul %7, %5, %cst_7 {dimension_numbers = #tpu.dot_dimension_numbers<[1], [0], [0], [1], [0, 0, 1, 1], [], []>} : vector<2x5xf32>, vector<5x128xf32>, vector<2x128xf32> -> vector<2x128xf32>
    %9 = arith.addf %4, %8 : vector<2x128xf32>
    %c126_i32 = arith.constant 126 : i32
    %10 = tpu.dynamic_rotate %1 by %c126_i32 dim 1 : vector<5x128xf32>, i32 -> vector<5x128xf32>
    %c2 = arith.constant 2 : index
    %c0_8 = arith.constant 0 : index
    %c0_9 = arith.constant 0 : index
    %11 = vector.load %arg4[%c2, %c0_8, %c0_9] : memref<9x2x5xf32, #tpu.memory_space<vmem>>, vector<1x2x5xf32>
    %12 = vector.shape_cast %11 : vector<1x2x5xf32> to vector<2x5xf32>
    %cst_10 = arith.constant dense<0.000000e+00> : vector<2x128xf32>
    %13 = tpu.matmul %12, %10, %cst_10 {dimension_numbers = #tpu.dot_dimension_numbers<[1], [0], [0], [1], [0, 0, 1, 1], [], []>} : vector<2x5xf32>, vector<5x128xf32>, vector<2x128xf32> -> vector<2x128xf32>
    %14 = arith.addf %9, %13 : vector<2x128xf32>
    %c125_i32 = arith.constant 125 : i32
    %15 = tpu.dynamic_rotate %1 by %c125_i32 dim 1 : vector<5x128xf32>, i32 -> vector<5x128xf32>
    %c3 = arith.constant 3 : index
    %c0_11 = arith.constant 0 : index
    %c0_12 = arith.constant 0 : index
    %16 = vector.load %arg4[%c3, %c0_11, %c0_12] : memref<9x2x5xf32, #tpu.memory_space<vmem>>, vector<1x2x5xf32>
    %17 = vector.shape_cast %16 : vector<1x2x5xf32> to vector<2x5xf32>
    %cst_13 = arith.constant dense<0.000000e+00> : vector<2x128xf32>
    %18 = tpu.matmul %17, %15, %cst_13 {dimension_numbers = #tpu.dot_dimension_numbers<[1], [0], [0], [1], [0, 0, 1, 1], [], []>} : vector<2x5xf32>, vector<5x128xf32>, vector<2x128xf32> -> vector<2x128xf32>
    %19 = arith.addf %14, %18 : vector<2x128xf32>
    %c124_i32 = arith.constant 124 : i32
    %20 = tpu.dynamic_rotate %1 by %c124_i32 dim 1 : vector<5x128xf32>, i32 -> vector<5x128xf32>
    %c4 = arith.constant 4 : index
    %c0_14 = arith.constant 0 : index
    %c0_15 = arith.constant 0 : index
    %21 = vector.load %arg4[%c4, %c0_14, %c0_15] : memref<9x2x5xf32, #tpu.memory_space<vmem>>, vector<1x2x5xf32>
    %22 = vector.shape_cast %21 : vector<1x2x5xf32> to vector<2x5xf32>
    %cst_16 = arith.constant dense<0.000000e+00> : vector<2x128xf32>
    %23 = tpu.matmul %22, %20, %cst_16 {dimension_numbers = #tpu.dot_dimension_numbers<[1], [0], [0], [1], [0, 0, 1, 1], [], []>} : vector<2x5xf32>, vector<5x128xf32>, vector<2x128xf32> -> vector<2x128xf32>
    %24 = arith.addf %19, %23 : vector<2x128xf32>
    %c123_i32 = arith.constant 123 : i32
    %25 = tpu.dynamic_rotate %1 by %c123_i32 dim 1 : vector<5x128xf32>, i32 -> vector<5x128xf32>
    %c5 = arith.constant 5 : index
    %c0_17 = arith.constant 0 : index
    %c0_18 = arith.constant 0 : index
    %26 = vector.load %arg4[%c5, %c0_17, %c0_18] : memref<9x2x5xf32, #tpu.memory_space<vmem>>, vector<1x2x5xf32>
    %27 = vector.shape_cast %26 : vector<1x2x5xf32> to vector<2x5xf32>
    %cst_19 = arith.constant dense<0.000000e+00> : vector<2x128xf32>
    %28 = tpu.matmul %27, %25, %cst_19 {dimension_numbers = #tpu.dot_dimension_numbers<[1], [0], [0], [1], [0, 0, 1, 1], [], []>} : vector<2x5xf32>, vector<5x128xf32>, vector<2x128xf32> -> vector<2x128xf32>
    %29 = arith.addf %24, %28 : vector<2x128xf32>
    %c122_i32 = arith.constant 122 : i32
    %30 = tpu.dynamic_rotate %1 by %c122_i32 dim 1 : vector<5x128xf32>, i32 -> vector<5x128xf32>
    %c6 = arith.constant 6 : index
    %c0_20 = arith.constant 0 : index
    %c0_21 = arith.constant 0 : index
    %31 = vector.load %arg4[%c6, %c0_20, %c0_21] : memref<9x2x5xf32, #tpu.memory_space<vmem>>, vector<1x2x5xf32>
    %32 = vector.shape_cast %31 : vector<1x2x5xf32> to vector<2x5xf32>
    %cst_22 = arith.constant dense<0.000000e+00> : vector<2x128xf32>
    %33 = tpu.matmul %32, %30, %cst_22 {dimension_numbers = #tpu.dot_dimension_numbers<[1], [0], [0], [1], [0, 0, 1, 1], [], []>} : vector<2x5xf32>, vector<5x128xf32>, vector<2x128xf32> -> vector<2x128xf32>
    %34 = arith.addf %29, %33 : vector<2x128xf32>
    %c121_i32 = arith.constant 121 : i32
    %35 = tpu.dynamic_rotate %1 by %c121_i32 dim 1 : vector<5x128xf32>, i32 -> vector<5x128xf32>
    %c7 = arith.constant 7 : index
    %c0_23 = arith.constant 0 : index
    %c0_24 = arith.constant 0 : index
    %36 = vector.load %arg4[%c7, %c0_23, %c0_24] : memref<9x2x5xf32, #tpu.memory_space<vmem>>, vector<1x2x5xf32>
    %37 = vector.shape_cast %36 : vector<1x2x5xf32> to vector<2x5xf32>
    %cst_25 = arith.constant dense<0.000000e+00> : vector<2x128xf32>
    %38 = tpu.matmul %37, %35, %cst_25 {dimension_numbers = #tpu.dot_dimension_numbers<[1], [0], [0], [1], [0, 0, 1, 1], [], []>} : vector<2x5xf32>, vector<5x128xf32>, vector<2x128xf32> -> vector<2x128xf32>
    %39 = arith.addf %34, %38 : vector<2x128xf32>
    %c120_i32 = arith.constant 120 : i32
    %40 = tpu.dynamic_rotate %1 by %c120_i32 dim 1 : vector<5x128xf32>, i32 -> vector<5x128xf32>
    %c8 = arith.constant 8 : index
    %c0_26 = arith.constant 0 : index
    %c0_27 = arith.constant 0 : index
    %41 = vector.load %arg4[%c8, %c0_26, %c0_27] : memref<9x2x5xf32, #tpu.memory_space<vmem>>, vector<1x2x5xf32>
    %42 = vector.shape_cast %41 : vector<1x2x5xf32> to vector<2x5xf32>
    %cst_28 = arith.constant dense<0.000000e+00> : vector<2x128xf32>
    %43 = tpu.matmul %42, %40, %cst_28 {dimension_numbers = #tpu.dot_dimension_numbers<[1], [0], [0], [1], [0, 0, 1, 1], [], []>} : vector<2x5xf32>, vector<5x128xf32>, vector<2x128xf32> -> vector<2x128xf32>
    %44 = arith.addf %39, %43 : vector<2x128xf32>
    %c9 = arith.constant 9 : index
    %c0_29 = arith.constant 0 : index
    %45 = vector.load %arg3[%c9, %c0_29] : memref<10x128xf32, #tpu.memory_space<vmem>>, vector<1x128xf32>
    %46 = vector.broadcast %45 : vector<1x128xf32> to vector<2x128xf32>
    %47 = arith.mulf %44, %46 : vector<2x128xf32>
    %48 = vector.extract_strided_slice %47 {offsets = [0, 0], sizes = [1, 128], strides = [1, 1]} : vector<2x128xf32> to vector<1x128xf32>
    %49 = math.tanh %48 : vector<1x128xf32>
    %50 = vector.extract_strided_slice %47 {offsets = [1, 0], sizes = [1, 128], strides = [1, 1]} : vector<2x128xf32> to vector<1x128xf32>
    %51 = math.tanh %50 : vector<1x128xf32>
    %c16_i32 = arith.constant 16 : i32
    %52 = tpu.dynamic_rotate %51 by %c16_i32 dim 1 : vector<1x128xf32>, i32 -> vector<1x128xf32>
    %c0_30 = arith.constant 0 : index
    %c0_31 = arith.constant 0 : index
    %c0_32 = arith.constant 0 : index
    %53 = vector.load %arg2[%c0_30, %c0_31, %c0_32] : memref<1x1x128xf32, #tpu.memory_space<vmem>>, vector<1x1x128xf32>
    %54 = vector.shape_cast %53 : vector<1x1x128xf32> to vector<1x128xf32>
    %55 = arith.addf %54, %49 : vector<1x128xf32>
    %56 = arith.addf %55, %52 : vector<1x128xf32>
    %c17_i32 = arith.constant 17 : i32
    %57 = tpu.dynamic_rotate %56 by %c17_i32 dim 1 : vector<1x128xf32>, i32 -> vector<1x128xf32>
    %c0_33 = arith.constant 0 : index
    %c0_34 = arith.constant 0 : index
    %58 = vector.load %arg3[%c0_33, %c0_34] : memref<10x128xf32, #tpu.memory_space<vmem>>, vector<1x128xf32>
    %59 = arith.mulf %57, %58 : vector<1x128xf32>
    %c0_35 = arith.constant 0 : index
    %c0_36 = arith.constant 0 : index
    %c0_37 = arith.constant 0 : index
    %60 = vector.load %arg5[%c0_35, %c0_36, %c0_37] : memref<9x4x1xf32, #tpu.memory_space<vmem>>, vector<1x4x1xf32>
    %61 = vector.shape_cast %60 : vector<1x4x1xf32> to vector<4x1xf32>
    %62 = vector.broadcast %61 : vector<4x1xf32> to vector<4x128xf32>
    %63 = vector.broadcast %59 : vector<1x128xf32> to vector<4x128xf32>
    %64 = arith.mulf %62, %63 : vector<4x128xf32>
    %c16_i32_38 = arith.constant 16 : i32
    %65 = tpu.dynamic_rotate %56 by %c16_i32_38 dim 1 : vector<1x128xf32>, i32 -> vector<1x128xf32>
    %c1_39 = arith.constant 1 : index
    %c0_40 = arith.constant 0 : index
    %66 = vector.load %arg3[%c1_39, %c0_40] : memref<10x128xf32, #tpu.memory_space<vmem>>, vector<1x128xf32>
    %67 = arith.mulf %65, %66 : vector<1x128xf32>
    %c1_41 = arith.constant 1 : index
    %c0_42 = arith.constant 0 : index
    %c0_43 = arith.constant 0 : index
    %68 = vector.load %arg5[%c1_41, %c0_42, %c0_43] : memref<9x4x1xf32, #tpu.memory_space<vmem>>, vector<1x4x1xf32>
    %69 = vector.shape_cast %68 : vector<1x4x1xf32> to vector<4x1xf32>
    %70 = vector.broadcast %69 : vector<4x1xf32> to vector<4x128xf32>
    %71 = vector.broadcast %67 : vector<1x128xf32> to vector<4x128xf32>
    %72 = arith.mulf %70, %71 : vector<4x128xf32>
    %73 = arith.addf %64, %72 : vector<4x128xf32>
    %c15_i32 = arith.constant 15 : i32
    %74 = tpu.dynamic_rotate %56 by %c15_i32 dim 1 : vector<1x128xf32>, i32 -> vector<1x128xf32>
    %c2_44 = arith.constant 2 : index
    %c0_45 = arith.constant 0 : index
    %75 = vector.load %arg3[%c2_44, %c0_45] : memref<10x128xf32, #tpu.memory_space<vmem>>, vector<1x128xf32>
    %76 = arith.mulf %74, %75 : vector<1x128xf32>
    %c2_46 = arith.constant 2 : index
    %c0_47 = arith.constant 0 : index
    %c0_48 = arith.constant 0 : index
    %77 = vector.load %arg5[%c2_46, %c0_47, %c0_48] : memref<9x4x1xf32, #tpu.memory_space<vmem>>, vector<1x4x1xf32>
    %78 = vector.shape_cast %77 : vector<1x4x1xf32> to vector<4x1xf32>
    %79 = vector.broadcast %78 : vector<4x1xf32> to vector<4x128xf32>
    %80 = vector.broadcast %76 : vector<1x128xf32> to vector<4x128xf32>
    %81 = arith.mulf %79, %80 : vector<4x128xf32>
    %82 = arith.addf %73, %81 : vector<4x128xf32>
    %c1_i32 = arith.constant 1 : i32
    %83 = tpu.dynamic_rotate %56 by %c1_i32 dim 1 : vector<1x128xf32>, i32 -> vector<1x128xf32>
    %c3_49 = arith.constant 3 : index
    %c0_50 = arith.constant 0 : index
    %84 = vector.load %arg3[%c3_49, %c0_50] : memref<10x128xf32, #tpu.memory_space<vmem>>, vector<1x128xf32>
    %85 = arith.mulf %83, %84 : vector<1x128xf32>
    %c3_51 = arith.constant 3 : index
    %c0_52 = arith.constant 0 : index
    %c0_53 = arith.constant 0 : index
    %86 = vector.load %arg5[%c3_51, %c0_52, %c0_53] : memref<9x4x1xf32, #tpu.memory_space<vmem>>, vector<1x4x1xf32>
    %87 = vector.shape_cast %86 : vector<1x4x1xf32> to vector<4x1xf32>
    %88 = vector.broadcast %87 : vector<4x1xf32> to vector<4x128xf32>
    %89 = vector.broadcast %85 : vector<1x128xf32> to vector<4x128xf32>
    %90 = arith.mulf %88, %89 : vector<4x128xf32>
    %91 = arith.addf %82, %90 : vector<4x128xf32>
    %c4_54 = arith.constant 4 : index
    %c0_55 = arith.constant 0 : index
    %92 = vector.load %arg3[%c4_54, %c0_55] : memref<10x128xf32, #tpu.memory_space<vmem>>, vector<1x128xf32>
    %93 = arith.mulf %56, %92 : vector<1x128xf32>
    %c4_56 = arith.constant 4 : index
    %c0_57 = arith.constant 0 : index
    %c0_58 = arith.constant 0 : index
    %94 = vector.load %arg5[%c4_56, %c0_57, %c0_58] : memref<9x4x1xf32, #tpu.memory_space<vmem>>, vector<1x4x1xf32>
    %95 = vector.shape_cast %94 : vector<1x4x1xf32> to vector<4x1xf32>
    %96 = vector.broadcast %95 : vector<4x1xf32> to vector<4x128xf32>
    %97 = vector.broadcast %93 : vector<1x128xf32> to vector<4x128xf32>
    %98 = arith.mulf %96, %97 : vector<4x128xf32>
    %99 = arith.addf %91, %98 : vector<4x128xf32>
    %c127_i32_59 = arith.constant 127 : i32
    %100 = tpu.dynamic_rotate %56 by %c127_i32_59 dim 1 : vector<1x128xf32>, i32 -> vector<1x128xf32>
    %c5_60 = arith.constant 5 : index
    %c0_61 = arith.constant 0 : index
    %101 = vector.load %arg3[%c5_60, %c0_61] : memref<10x128xf32, #tpu.memory_space<vmem>>, vector<1x128xf32>
    %102 = arith.mulf %100, %101 : vector<1x128xf32>
    %c5_62 = arith.constant 5 : index
    %c0_63 = arith.constant 0 : index
    %c0_64 = arith.constant 0 : index
    %103 = vector.load %arg5[%c5_62, %c0_63, %c0_64] : memref<9x4x1xf32, #tpu.memory_space<vmem>>, vector<1x4x1xf32>
    %104 = vector.shape_cast %103 : vector<1x4x1xf32> to vector<4x1xf32>
    %105 = vector.broadcast %104 : vector<4x1xf32> to vector<4x128xf32>
    %106 = vector.broadcast %102 : vector<1x128xf32> to vector<4x128xf32>
    %107 = arith.mulf %105, %106 : vector<4x128xf32>
    %108 = arith.addf %99, %107 : vector<4x128xf32>
    %c113_i32 = arith.constant 113 : i32
    %109 = tpu.dynamic_rotate %56 by %c113_i32 dim 1 : vector<1x128xf32>, i32 -> vector<1x128xf32>
    %c6_65 = arith.constant 6 : index
    %c0_66 = arith.constant 0 : index
    %110 = vector.load %arg3[%c6_65, %c0_66] : memref<10x128xf32, #tpu.memory_space<vmem>>, vector<1x128xf32>
    %111 = arith.mulf %109, %110 : vector<1x128xf32>
    %c6_67 = arith.constant 6 : index
    %c0_68 = arith.constant 0 : index
    %c0_69 = arith.constant 0 : index
    %112 = vector.load %arg5[%c6_67, %c0_68, %c0_69] : memref<9x4x1xf32, #tpu.memory_space<vmem>>, vector<1x4x1xf32>
    %113 = vector.shape_cast %112 : vector<1x4x1xf32> to vector<4x1xf32>
    %114 = vector.broadcast %113 : vector<4x1xf32> to vector<4x128xf32>
    %115 = vector.broadcast %111 : vector<1x128xf32> to vector<4x128xf32>
    %116 = arith.mulf %114, %115 : vector<4x128xf32>
    %117 = arith.addf %108, %116 : vector<4x128xf32>
    %c112_i32 = arith.constant 112 : i32
    %118 = tpu.dynamic_rotate %56 by %c112_i32 dim 1 : vector<1x128xf32>, i32 -> vector<1x128xf32>
    %c7_70 = arith.constant 7 : index
    %c0_71 = arith.constant 0 : index
    %119 = vector.load %arg3[%c7_70, %c0_71] : memref<10x128xf32, #tpu.memory_space<vmem>>, vector<1x128xf32>
    %120 = arith.mulf %118, %119 : vector<1x128xf32>
    %c7_72 = arith.constant 7 : index
    %c0_73 = arith.constant 0 : index
    %c0_74 = arith.constant 0 : index
    %121 = vector.load %arg5[%c7_72, %c0_73, %c0_74] : memref<9x4x1xf32, #tpu.memory_space<vmem>>, vector<1x4x1xf32>
    %122 = vector.shape_cast %121 : vector<1x4x1xf32> to vector<4x1xf32>
    %123 = vector.broadcast %122 : vector<4x1xf32> to vector<4x128xf32>
    %124 = vector.broadcast %120 : vector<1x128xf32> to vector<4x128xf32>
    %125 = arith.mulf %123, %124 : vector<4x128xf32>
    %126 = arith.addf %117, %125 : vector<4x128xf32>
    %c111_i32 = arith.constant 111 : i32
    %127 = tpu.dynamic_rotate %56 by %c111_i32 dim 1 : vector<1x128xf32>, i32 -> vector<1x128xf32>
    %c8_75 = arith.constant 8 : index
    %c0_76 = arith.constant 0 : index
    %128 = vector.load %arg3[%c8_75, %c0_76] : memref<10x128xf32, #tpu.memory_space<vmem>>, vector<1x128xf32>
    %129 = arith.mulf %127, %128 : vector<1x128xf32>
    %c8_77 = arith.constant 8 : index
    %c0_78 = arith.constant 0 : index
    %c0_79 = arith.constant 0 : index
    %130 = vector.load %arg5[%c8_77, %c0_78, %c0_79] : memref<9x4x1xf32, #tpu.memory_space<vmem>>, vector<1x4x1xf32>
    %131 = vector.shape_cast %130 : vector<1x4x1xf32> to vector<4x1xf32>
    %132 = vector.broadcast %131 : vector<4x1xf32> to vector<4x128xf32>
    %133 = vector.broadcast %129 : vector<1x128xf32> to vector<4x128xf32>
    %134 = arith.mulf %132, %133 : vector<4x128xf32>
    %135 = arith.addf %126, %134 : vector<4x128xf32>
    %c0_80 = arith.constant 0 : index
    %c0_81 = arith.constant 0 : index
    %136 = vector.load %arg6[%c0_80, %c0_81] : memref<4x1xf32, #tpu.memory_space<vmem>>, vector<4x1xf32>
    %137 = vector.broadcast %136 : vector<4x1xf32> to vector<4x128xf32>
    %138 = arith.mulf %135, %137 : vector<4x128xf32>
    %c0_82 = arith.constant 0 : index
    %c0_83 = arith.constant 0 : index
    %139 = vector.load %arg7[%c0_82, %c0_83] : memref<4x1xf32, #tpu.memory_space<vmem>>, vector<4x1xf32>
    %140 = vector.broadcast %139 : vector<4x1xf32> to vector<4x128xf32>
    %141 = arith.addf %138, %140 : vector<4x128xf32>
    %142 = math.tanh %141 : vector<4x128xf32>
    %c17_i32_84 = arith.constant 17 : i32
    %143 = tpu.dynamic_rotate %142 by %c17_i32_84 dim 1 : vector<4x128xf32>, i32 -> vector<4x128xf32>
    %c0_85 = arith.constant 0 : index
    %c0_86 = arith.constant 0 : index
    %144 = vector.load %arg3[%c0_85, %c0_86] : memref<10x128xf32, #tpu.memory_space<vmem>>, vector<1x128xf32>
    %145 = vector.broadcast %144 : vector<1x128xf32> to vector<4x128xf32>
    %146 = arith.mulf %143, %145 : vector<4x128xf32>
    %c0_87 = arith.constant 0 : index
    %c0_88 = arith.constant 0 : index
    %c0_89 = arith.constant 0 : index
    %147 = vector.load %arg8[%c0_87, %c0_88, %c0_89] : memref<9x16x4xf32, #tpu.memory_space<vmem>>, vector<1x16x4xf32>
    %148 = vector.shape_cast %147 : vector<1x16x4xf32> to vector<16x4xf32>
    %cst_90 = arith.constant dense<0.000000e+00> : vector<16x128xf32>
    %149 = tpu.matmul %148, %146, %cst_90 {dimension_numbers = #tpu.dot_dimension_numbers<[1], [0], [0], [1], [0, 0, 1, 1], [], []>} : vector<16x4xf32>, vector<4x128xf32>, vector<16x128xf32> -> vector<16x128xf32>
    %c16_i32_91 = arith.constant 16 : i32
    %150 = tpu.dynamic_rotate %142 by %c16_i32_91 dim 1 : vector<4x128xf32>, i32 -> vector<4x128xf32>
    %c1_92 = arith.constant 1 : index
    %c0_93 = arith.constant 0 : index
    %151 = vector.load %arg3[%c1_92, %c0_93] : memref<10x128xf32, #tpu.memory_space<vmem>>, vector<1x128xf32>
    %152 = vector.broadcast %151 : vector<1x128xf32> to vector<4x128xf32>
    %153 = arith.mulf %150, %152 : vector<4x128xf32>
    %c1_94 = arith.constant 1 : index
    %c0_95 = arith.constant 0 : index
    %c0_96 = arith.constant 0 : index
    %154 = vector.load %arg8[%c1_94, %c0_95, %c0_96] : memref<9x16x4xf32, #tpu.memory_space<vmem>>, vector<1x16x4xf32>
    %155 = vector.shape_cast %154 : vector<1x16x4xf32> to vector<16x4xf32>
    %cst_97 = arith.constant dense<0.000000e+00> : vector<16x128xf32>
    %156 = tpu.matmul %155, %153, %cst_97 {dimension_numbers = #tpu.dot_dimension_numbers<[1], [0], [0], [1], [0, 0, 1, 1], [], []>} : vector<16x4xf32>, vector<4x128xf32>, vector<16x128xf32> -> vector<16x128xf32>
    %157 = arith.addf %149, %156 : vector<16x128xf32>
    %c15_i32_98 = arith.constant 15 : i32
    %158 = tpu.dynamic_rotate %142 by %c15_i32_98 dim 1 : vector<4x128xf32>, i32 -> vector<4x128xf32>
    %c2_99 = arith.constant 2 : index
    %c0_100 = arith.constant 0 : index
    %159 = vector.load %arg3[%c2_99, %c0_100] : memref<10x128xf32, #tpu.memory_space<vmem>>, vector<1x128xf32>
    %160 = vector.broadcast %159 : vector<1x128xf32> to vector<4x128xf32>
    %161 = arith.mulf %158, %160 : vector<4x128xf32>
    %c2_101 = arith.constant 2 : index
    %c0_102 = arith.constant 0 : index
    %c0_103 = arith.constant 0 : index
    %162 = vector.load %arg8[%c2_101, %c0_102, %c0_103] : memref<9x16x4xf32, #tpu.memory_space<vmem>>, vector<1x16x4xf32>
    %163 = vector.shape_cast %162 : vector<1x16x4xf32> to vector<16x4xf32>
    %cst_104 = arith.constant dense<0.000000e+00> : vector<16x128xf32>
    %164 = tpu.matmul %163, %161, %cst_104 {dimension_numbers = #tpu.dot_dimension_numbers<[1], [0], [0], [1], [0, 0, 1, 1], [], []>} : vector<16x4xf32>, vector<4x128xf32>, vector<16x128xf32> -> vector<16x128xf32>
    %165 = arith.addf %157, %164 : vector<16x128xf32>
    %c1_i32_105 = arith.constant 1 : i32
    %166 = tpu.dynamic_rotate %142 by %c1_i32_105 dim 1 : vector<4x128xf32>, i32 -> vector<4x128xf32>
    %c3_106 = arith.constant 3 : index
    %c0_107 = arith.constant 0 : index
    %167 = vector.load %arg3[%c3_106, %c0_107] : memref<10x128xf32, #tpu.memory_space<vmem>>, vector<1x128xf32>
    %168 = vector.broadcast %167 : vector<1x128xf32> to vector<4x128xf32>
    %169 = arith.mulf %166, %168 : vector<4x128xf32>
    %c3_108 = arith.constant 3 : index
    %c0_109 = arith.constant 0 : index
    %c0_110 = arith.constant 0 : index
    %170 = vector.load %arg8[%c3_108, %c0_109, %c0_110] : memref<9x16x4xf32, #tpu.memory_space<vmem>>, vector<1x16x4xf32>
    %171 = vector.shape_cast %170 : vector<1x16x4xf32> to vector<16x4xf32>
    %cst_111 = arith.constant dense<0.000000e+00> : vector<16x128xf32>
    %172 = tpu.matmul %171, %169, %cst_111 {dimension_numbers = #tpu.dot_dimension_numbers<[1], [0], [0], [1], [0, 0, 1, 1], [], []>} : vector<16x4xf32>, vector<4x128xf32>, vector<16x128xf32> -> vector<16x128xf32>
    %173 = arith.addf %165, %172 : vector<16x128xf32>
    %c4_112 = arith.constant 4 : index
    %c0_113 = arith.constant 0 : index
    %174 = vector.load %arg3[%c4_112, %c0_113] : memref<10x128xf32, #tpu.memory_space<vmem>>, vector<1x128xf32>
    %175 = vector.broadcast %174 : vector<1x128xf32> to vector<4x128xf32>
    %176 = arith.mulf %142, %175 : vector<4x128xf32>
    %c4_114 = arith.constant 4 : index
    %c0_115 = arith.constant 0 : index
    %c0_116 = arith.constant 0 : index
    %177 = vector.load %arg8[%c4_114, %c0_115, %c0_116] : memref<9x16x4xf32, #tpu.memory_space<vmem>>, vector<1x16x4xf32>
    %178 = vector.shape_cast %177 : vector<1x16x4xf32> to vector<16x4xf32>
    %cst_117 = arith.constant dense<0.000000e+00> : vector<16x128xf32>
    %179 = tpu.matmul %178, %176, %cst_117 {dimension_numbers = #tpu.dot_dimension_numbers<[1], [0], [0], [1], [0, 0, 1, 1], [], []>} : vector<16x4xf32>, vector<4x128xf32>, vector<16x128xf32> -> vector<16x128xf32>
    %180 = arith.addf %173, %179 : vector<16x128xf32>
    %c127_i32_118 = arith.constant 127 : i32
    %181 = tpu.dynamic_rotate %142 by %c127_i32_118 dim 1 : vector<4x128xf32>, i32 -> vector<4x128xf32>
    %c5_119 = arith.constant 5 : index
    %c0_120 = arith.constant 0 : index
    %182 = vector.load %arg3[%c5_119, %c0_120] : memref<10x128xf32, #tpu.memory_space<vmem>>, vector<1x128xf32>
    %183 = vector.broadcast %182 : vector<1x128xf32> to vector<4x128xf32>
    %184 = arith.mulf %181, %183 : vector<4x128xf32>
    %c5_121 = arith.constant 5 : index
    %c0_122 = arith.constant 0 : index
    %c0_123 = arith.constant 0 : index
    %185 = vector.load %arg8[%c5_121, %c0_122, %c0_123] : memref<9x16x4xf32, #tpu.memory_space<vmem>>, vector<1x16x4xf32>
    %186 = vector.shape_cast %185 : vector<1x16x4xf32> to vector<16x4xf32>
    %cst_124 = arith.constant dense<0.000000e+00> : vector<16x128xf32>
    %187 = tpu.matmul %186, %184, %cst_124 {dimension_numbers = #tpu.dot_dimension_numbers<[1], [0], [0], [1], [0, 0, 1, 1], [], []>} : vector<16x4xf32>, vector<4x128xf32>, vector<16x128xf32> -> vector<16x128xf32>
    %188 = arith.addf %180, %187 : vector<16x128xf32>
    %c113_i32_125 = arith.constant 113 : i32
    %189 = tpu.dynamic_rotate %142 by %c113_i32_125 dim 1 : vector<4x128xf32>, i32 -> vector<4x128xf32>
    %c6_126 = arith.constant 6 : index
    %c0_127 = arith.constant 0 : index
    %190 = vector.load %arg3[%c6_126, %c0_127] : memref<10x128xf32, #tpu.memory_space<vmem>>, vector<1x128xf32>
    %191 = vector.broadcast %190 : vector<1x128xf32> to vector<4x128xf32>
    %192 = arith.mulf %189, %191 : vector<4x128xf32>
    %c6_128 = arith.constant 6 : index
    %c0_129 = arith.constant 0 : index
    %c0_130 = arith.constant 0 : index
    %193 = vector.load %arg8[%c6_128, %c0_129, %c0_130] : memref<9x16x4xf32, #tpu.memory_space<vmem>>, vector<1x16x4xf32>
    %194 = vector.shape_cast %193 : vector<1x16x4xf32> to vector<16x4xf32>
    %cst_131 = arith.constant dense<0.000000e+00> : vector<16x128xf32>
    %195 = tpu.matmul %194, %192, %cst_131 {dimension_numbers = #tpu.dot_dimension_numbers<[1], [0], [0], [1], [0, 0, 1, 1], [], []>} : vector<16x4xf32>, vector<4x128xf32>, vector<16x128xf32> -> vector<16x128xf32>
    %196 = arith.addf %188, %195 : vector<16x128xf32>
    %c112_i32_132 = arith.constant 112 : i32
    %197 = tpu.dynamic_rotate %142 by %c112_i32_132 dim 1 : vector<4x128xf32>, i32 -> vector<4x128xf32>
    %c7_133 = arith.constant 7 : index
    %c0_134 = arith.constant 0 : index
    %198 = vector.load %arg3[%c7_133, %c0_134] : memref<10x128xf32, #tpu.memory_space<vmem>>, vector<1x128xf32>
    %199 = vector.broadcast %198 : vector<1x128xf32> to vector<4x128xf32>
    %200 = arith.mulf %197, %199 : vector<4x128xf32>
    %c7_135 = arith.constant 7 : index
    %c0_136 = arith.constant 0 : index
    %c0_137 = arith.constant 0 : index
    %201 = vector.load %arg8[%c7_135, %c0_136, %c0_137] : memref<9x16x4xf32, #tpu.memory_space<vmem>>, vector<1x16x4xf32>
    %202 = vector.shape_cast %201 : vector<1x16x4xf32> to vector<16x4xf32>
    %cst_138 = arith.constant dense<0.000000e+00> : vector<16x128xf32>
    %203 = tpu.matmul %202, %200, %cst_138 {dimension_numbers = #tpu.dot_dimension_numbers<[1], [0], [0], [1], [0, 0, 1, 1], [], []>} : vector<16x4xf32>, vector<4x128xf32>, vector<16x128xf32> -> vector<16x128xf32>
    %204 = arith.addf %196, %203 : vector<16x128xf32>
    %c111_i32_139 = arith.constant 111 : i32
    %205 = tpu.dynamic_rotate %142 by %c111_i32_139 dim 1 : vector<4x128xf32>, i32 -> vector<4x128xf32>
    %c8_140 = arith.constant 8 : index
    %c0_141 = arith.constant 0 : index
    %206 = vector.load %arg3[%c8_140, %c0_141] : memref<10x128xf32, #tpu.memory_space<vmem>>, vector<1x128xf32>
    %207 = vector.broadcast %206 : vector<1x128xf32> to vector<4x128xf32>
    %208 = arith.mulf %205, %207 : vector<4x128xf32>
    %c8_142 = arith.constant 8 : index
    %c0_143 = arith.constant 0 : index
    %c0_144 = arith.constant 0 : index
    %209 = vector.load %arg8[%c8_142, %c0_143, %c0_144] : memref<9x16x4xf32, #tpu.memory_space<vmem>>, vector<1x16x4xf32>
    %210 = vector.shape_cast %209 : vector<1x16x4xf32> to vector<16x4xf32>
    %cst_145 = arith.constant dense<0.000000e+00> : vector<16x128xf32>
    %211 = tpu.matmul %210, %208, %cst_145 {dimension_numbers = #tpu.dot_dimension_numbers<[1], [0], [0], [1], [0, 0, 1, 1], [], []>} : vector<16x4xf32>, vector<4x128xf32>, vector<16x128xf32> -> vector<16x128xf32>
    %212 = arith.addf %204, %211 : vector<16x128xf32>
    %c0_146 = arith.constant 0 : index
    %c0_147 = arith.constant 0 : index
    %213 = vector.load %arg9[%c0_146, %c0_147] : memref<16x1xf32, #tpu.memory_space<vmem>>, vector<16x1xf32>
    %214 = vector.broadcast %213 : vector<16x1xf32> to vector<16x128xf32>
    %215 = arith.mulf %212, %214 : vector<16x128xf32>
    %c0_148 = arith.constant 0 : index
    %c0_149 = arith.constant 0 : index
    %216 = vector.load %arg10[%c0_148, %c0_149] : memref<16x1xf32, #tpu.memory_space<vmem>>, vector<16x1xf32>
    %217 = vector.broadcast %216 : vector<16x1xf32> to vector<16x128xf32>
    %218 = arith.addf %215, %217 : vector<16x128xf32>
    %219 = math.tanh %218 : vector<16x128xf32>
    %c17_i32_150 = arith.constant 17 : i32
    %220 = tpu.dynamic_rotate %219 by %c17_i32_150 dim 1 : vector<16x128xf32>, i32 -> vector<16x128xf32>
    %c0_151 = arith.constant 0 : index
    %c0_152 = arith.constant 0 : index
    %221 = vector.load %arg3[%c0_151, %c0_152] : memref<10x128xf32, #tpu.memory_space<vmem>>, vector<1x128xf32>
    %222 = vector.broadcast %221 : vector<1x128xf32> to vector<16x128xf32>
    %223 = arith.mulf %220, %222 : vector<16x128xf32>
    %c0_153 = arith.constant 0 : index
    %c0_154 = arith.constant 0 : index
    %c0_155 = arith.constant 0 : index
    %224 = vector.load %arg11[%c0_153, %c0_154, %c0_155] : memref<9x4x16xf32, #tpu.memory_space<vmem>>, vector<1x4x16xf32>
    %225 = vector.shape_cast %224 : vector<1x4x16xf32> to vector<4x16xf32>
    %cst_156 = arith.constant dense<0.000000e+00> : vector<4x128xf32>
    %226 = tpu.matmul %225, %223, %cst_156 {dimension_numbers = #tpu.dot_dimension_numbers<[1], [0], [0], [1], [0, 0, 1, 1], [], []>} : vector<4x16xf32>, vector<16x128xf32>, vector<4x128xf32> -> vector<4x128xf32>
    %c16_i32_157 = arith.constant 16 : i32
    %227 = tpu.dynamic_rotate %219 by %c16_i32_157 dim 1 : vector<16x128xf32>, i32 -> vector<16x128xf32>
    %c1_158 = arith.constant 1 : index
    %c0_159 = arith.constant 0 : index
    %228 = vector.load %arg3[%c1_158, %c0_159] : memref<10x128xf32, #tpu.memory_space<vmem>>, vector<1x128xf32>
    %229 = vector.broadcast %228 : vector<1x128xf32> to vector<16x128xf32>
    %230 = arith.mulf %227, %229 : vector<16x128xf32>
    %c1_160 = arith.constant 1 : index
    %c0_161 = arith.constant 0 : index
    %c0_162 = arith.constant 0 : index
    %231 = vector.load %arg11[%c1_160, %c0_161, %c0_162] : memref<9x4x16xf32, #tpu.memory_space<vmem>>, vector<1x4x16xf32>
    %232 = vector.shape_cast %231 : vector<1x4x16xf32> to vector<4x16xf32>
    %cst_163 = arith.constant dense<0.000000e+00> : vector<4x128xf32>
    %233 = tpu.matmul %232, %230, %cst_163 {dimension_numbers = #tpu.dot_dimension_numbers<[1], [0], [0], [1], [0, 0, 1, 1], [], []>} : vector<4x16xf32>, vector<16x128xf32>, vector<4x128xf32> -> vector<4x128xf32>
    %234 = arith.addf %226, %233 : vector<4x128xf32>
    %c15_i32_164 = arith.constant 15 : i32
    %235 = tpu.dynamic_rotate %219 by %c15_i32_164 dim 1 : vector<16x128xf32>, i32 -> vector<16x128xf32>
    %c2_165 = arith.constant 2 : index
    %c0_166 = arith.constant 0 : index
    %236 = vector.load %arg3[%c2_165, %c0_166] : memref<10x128xf32, #tpu.memory_space<vmem>>, vector<1x128xf32>
    %237 = vector.broadcast %236 : vector<1x128xf32> to vector<16x128xf32>
    %238 = arith.mulf %235, %237 : vector<16x128xf32>
    %c2_167 = arith.constant 2 : index
    %c0_168 = arith.constant 0 : index
    %c0_169 = arith.constant 0 : index
    %239 = vector.load %arg11[%c2_167, %c0_168, %c0_169] : memref<9x4x16xf32, #tpu.memory_space<vmem>>, vector<1x4x16xf32>
    %240 = vector.shape_cast %239 : vector<1x4x16xf32> to vector<4x16xf32>
    %cst_170 = arith.constant dense<0.000000e+00> : vector<4x128xf32>
    %241 = tpu.matmul %240, %238, %cst_170 {dimension_numbers = #tpu.dot_dimension_numbers<[1], [0], [0], [1], [0, 0, 1, 1], [], []>} : vector<4x16xf32>, vector<16x128xf32>, vector<4x128xf32> -> vector<4x128xf32>
    %242 = arith.addf %234, %241 : vector<4x128xf32>
    %c1_i32_171 = arith.constant 1 : i32
    %243 = tpu.dynamic_rotate %219 by %c1_i32_171 dim 1 : vector<16x128xf32>, i32 -> vector<16x128xf32>
    %c3_172 = arith.constant 3 : index
    %c0_173 = arith.constant 0 : index
    %244 = vector.load %arg3[%c3_172, %c0_173] : memref<10x128xf32, #tpu.memory_space<vmem>>, vector<1x128xf32>
    %245 = vector.broadcast %244 : vector<1x128xf32> to vector<16x128xf32>
    %246 = arith.mulf %243, %245 : vector<16x128xf32>
    %c3_174 = arith.constant 3 : index
    %c0_175 = arith.constant 0 : index
    %c0_176 = arith.constant 0 : index
    %247 = vector.load %arg11[%c3_174, %c0_175, %c0_176] : memref<9x4x16xf32, #tpu.memory_space<vmem>>, vector<1x4x16xf32>
    %248 = vector.shape_cast %247 : vector<1x4x16xf32> to vector<4x16xf32>
    %cst_177 = arith.constant dense<0.000000e+00> : vector<4x128xf32>
    %249 = tpu.matmul %248, %246, %cst_177 {dimension_numbers = #tpu.dot_dimension_numbers<[1], [0], [0], [1], [0, 0, 1, 1], [], []>} : vector<4x16xf32>, vector<16x128xf32>, vector<4x128xf32> -> vector<4x128xf32>
    %250 = arith.addf %242, %249 : vector<4x128xf32>
    %c4_178 = arith.constant 4 : index
    %c0_179 = arith.constant 0 : index
    %251 = vector.load %arg3[%c4_178, %c0_179] : memref<10x128xf32, #tpu.memory_space<vmem>>, vector<1x128xf32>
    %252 = vector.broadcast %251 : vector<1x128xf32> to vector<16x128xf32>
    %253 = arith.mulf %219, %252 : vector<16x128xf32>
    %c4_180 = arith.constant 4 : index
    %c0_181 = arith.constant 0 : index
    %c0_182 = arith.constant 0 : index
    %254 = vector.load %arg11[%c4_180, %c0_181, %c0_182] : memref<9x4x16xf32, #tpu.memory_space<vmem>>, vector<1x4x16xf32>
    %255 = vector.shape_cast %254 : vector<1x4x16xf32> to vector<4x16xf32>
    %cst_183 = arith.constant dense<0.000000e+00> : vector<4x128xf32>
    %256 = tpu.matmul %255, %253, %cst_183 {dimension_numbers = #tpu.dot_dimension_numbers<[1], [0], [0], [1], [0, 0, 1, 1], [], []>} : vector<4x16xf32>, vector<16x128xf32>, vector<4x128xf32> -> vector<4x128xf32>
    %257 = arith.addf %250, %256 : vector<4x128xf32>
    %c127_i32_184 = arith.constant 127 : i32
    %258 = tpu.dynamic_rotate %219 by %c127_i32_184 dim 1 : vector<16x128xf32>, i32 -> vector<16x128xf32>
    %c5_185 = arith.constant 5 : index
    %c0_186 = arith.constant 0 : index
    %259 = vector.load %arg3[%c5_185, %c0_186] : memref<10x128xf32, #tpu.memory_space<vmem>>, vector<1x128xf32>
    %260 = vector.broadcast %259 : vector<1x128xf32> to vector<16x128xf32>
    %261 = arith.mulf %258, %260 : vector<16x128xf32>
    %c5_187 = arith.constant 5 : index
    %c0_188 = arith.constant 0 : index
    %c0_189 = arith.constant 0 : index
    %262 = vector.load %arg11[%c5_187, %c0_188, %c0_189] : memref<9x4x16xf32, #tpu.memory_space<vmem>>, vector<1x4x16xf32>
    %263 = vector.shape_cast %262 : vector<1x4x16xf32> to vector<4x16xf32>
    %cst_190 = arith.constant dense<0.000000e+00> : vector<4x128xf32>
    %264 = tpu.matmul %263, %261, %cst_190 {dimension_numbers = #tpu.dot_dimension_numbers<[1], [0], [0], [1], [0, 0, 1, 1], [], []>} : vector<4x16xf32>, vector<16x128xf32>, vector<4x128xf32> -> vector<4x128xf32>
    %265 = arith.addf %257, %264 : vector<4x128xf32>
    %c113_i32_191 = arith.constant 113 : i32
    %266 = tpu.dynamic_rotate %219 by %c113_i32_191 dim 1 : vector<16x128xf32>, i32 -> vector<16x128xf32>
    %c6_192 = arith.constant 6 : index
    %c0_193 = arith.constant 0 : index
    %267 = vector.load %arg3[%c6_192, %c0_193] : memref<10x128xf32, #tpu.memory_space<vmem>>, vector<1x128xf32>
    %268 = vector.broadcast %267 : vector<1x128xf32> to vector<16x128xf32>
    %269 = arith.mulf %266, %268 : vector<16x128xf32>
    %c6_194 = arith.constant 6 : index
    %c0_195 = arith.constant 0 : index
    %c0_196 = arith.constant 0 : index
    %270 = vector.load %arg11[%c6_194, %c0_195, %c0_196] : memref<9x4x16xf32, #tpu.memory_space<vmem>>, vector<1x4x16xf32>
    %271 = vector.shape_cast %270 : vector<1x4x16xf32> to vector<4x16xf32>
    %cst_197 = arith.constant dense<0.000000e+00> : vector<4x128xf32>
    %272 = tpu.matmul %271, %269, %cst_197 {dimension_numbers = #tpu.dot_dimension_numbers<[1], [0], [0], [1], [0, 0, 1, 1], [], []>} : vector<4x16xf32>, vector<16x128xf32>, vector<4x128xf32> -> vector<4x128xf32>
    %273 = arith.addf %265, %272 : vector<4x128xf32>
    %c112_i32_198 = arith.constant 112 : i32
    %274 = tpu.dynamic_rotate %219 by %c112_i32_198 dim 1 : vector<16x128xf32>, i32 -> vector<16x128xf32>
    %c7_199 = arith.constant 7 : index
    %c0_200 = arith.constant 0 : index
    %275 = vector.load %arg3[%c7_199, %c0_200] : memref<10x128xf32, #tpu.memory_space<vmem>>, vector<1x128xf32>
    %276 = vector.broadcast %275 : vector<1x128xf32> to vector<16x128xf32>
    %277 = arith.mulf %274, %276 : vector<16x128xf32>
    %c7_201 = arith.constant 7 : index
    %c0_202 = arith.constant 0 : index
    %c0_203 = arith.constant 0 : index
    %278 = vector.load %arg11[%c7_201, %c0_202, %c0_203] : memref<9x4x16xf32, #tpu.memory_space<vmem>>, vector<1x4x16xf32>
    %279 = vector.shape_cast %278 : vector<1x4x16xf32> to vector<4x16xf32>
    %cst_204 = arith.constant dense<0.000000e+00> : vector<4x128xf32>
    %280 = tpu.matmul %279, %277, %cst_204 {dimension_numbers = #tpu.dot_dimension_numbers<[1], [0], [0], [1], [0, 0, 1, 1], [], []>} : vector<4x16xf32>, vector<16x128xf32>, vector<4x128xf32> -> vector<4x128xf32>
    %281 = arith.addf %273, %280 : vector<4x128xf32>
    %c111_i32_205 = arith.constant 111 : i32
    %282 = tpu.dynamic_rotate %219 by %c111_i32_205 dim 1 : vector<16x128xf32>, i32 -> vector<16x128xf32>
    %c8_206 = arith.constant 8 : index
    %c0_207 = arith.constant 0 : index
    %283 = vector.load %arg3[%c8_206, %c0_207] : memref<10x128xf32, #tpu.memory_space<vmem>>, vector<1x128xf32>
    %284 = vector.broadcast %283 : vector<1x128xf32> to vector<16x128xf32>
    %285 = arith.mulf %282, %284 : vector<16x128xf32>
    %c8_208 = arith.constant 8 : index
    %c0_209 = arith.constant 0 : index
    %c0_210 = arith.constant 0 : index
    %286 = vector.load %arg11[%c8_208, %c0_209, %c0_210] : memref<9x4x16xf32, #tpu.memory_space<vmem>>, vector<1x4x16xf32>
    %287 = vector.shape_cast %286 : vector<1x4x16xf32> to vector<4x16xf32>
    %cst_211 = arith.constant dense<0.000000e+00> : vector<4x128xf32>
    %288 = tpu.matmul %287, %285, %cst_211 {dimension_numbers = #tpu.dot_dimension_numbers<[1], [0], [0], [1], [0, 0, 1, 1], [], []>} : vector<4x16xf32>, vector<16x128xf32>, vector<4x128xf32> -> vector<4x128xf32>
    %289 = arith.addf %281, %288 : vector<4x128xf32>
    %c0_212 = arith.constant 0 : index
    %c0_213 = arith.constant 0 : index
    %290 = vector.load %arg12[%c0_212, %c0_213] : memref<4x1xf32, #tpu.memory_space<vmem>>, vector<4x1xf32>
    %291 = vector.broadcast %290 : vector<4x1xf32> to vector<4x128xf32>
    %292 = arith.mulf %289, %291 : vector<4x128xf32>
    %c0_214 = arith.constant 0 : index
    %c0_215 = arith.constant 0 : index
    %293 = vector.load %arg13[%c0_214, %c0_215] : memref<4x1xf32, #tpu.memory_space<vmem>>, vector<4x1xf32>
    %294 = vector.broadcast %293 : vector<4x1xf32> to vector<4x128xf32>
    %295 = arith.addf %292, %294 : vector<4x128xf32>
    %296 = math.tanh %295 : vector<4x128xf32>
    %297 = arith.addf %142, %296 : vector<4x128xf32>
    %cst_216 = arith.constant dense<0xFF800000> : vector<4xf32>
    %298 = vector.multi_reduction <maximumf>, %297, %cst_216 [1] : vector<4x128xf32> to vector<4xf32>
    %299 = vector.shape_cast %298 : vector<4xf32> to vector<4x1xf32>
    %c0_217 = arith.constant 0 : index
    %c0_218 = arith.constant 0 : index
    %300 = vector.load %arg15[%c0_217, %c0_218] : memref<16x1xf32, #tpu.memory_space<vmem>>, vector<16x1xf32>
    %c0_219 = arith.constant 0 : index
    %c0_220 = arith.constant 0 : index
    %301 = vector.load %arg14[%c0_219, %c0_220] : memref<16x4xf32, #tpu.memory_space<vmem>>, vector<16x1xf32>
    %302 = vector.extract_strided_slice %299 {offsets = [0, 0], sizes = [1, 1], strides = [1, 1]} : vector<4x1xf32> to vector<1x1xf32>
    %303 = vector.broadcast %302 : vector<1x1xf32> to vector<16x1xf32>
    %304 = arith.mulf %301, %303 : vector<16x1xf32>
    %305 = arith.addf %300, %304 : vector<16x1xf32>
    %c0_221 = arith.constant 0 : index
    %c1_222 = arith.constant 1 : index
    %306 = vector.load %arg14[%c0_221, %c1_222] : memref<16x4xf32, #tpu.memory_space<vmem>>, vector<16x1xf32>
    %307 = vector.extract_strided_slice %299 {offsets = [1, 0], sizes = [1, 1], strides = [1, 1]} : vector<4x1xf32> to vector<1x1xf32>
    %308 = vector.broadcast %307 : vector<1x1xf32> to vector<16x1xf32>
    %309 = arith.mulf %306, %308 : vector<16x1xf32>
    %310 = arith.addf %305, %309 : vector<16x1xf32>
    %c0_223 = arith.constant 0 : index
    %c2_224 = arith.constant 2 : index
    %311 = vector.load %arg14[%c0_223, %c2_224] : memref<16x4xf32, #tpu.memory_space<vmem>>, vector<16x1xf32>
    %312 = vector.extract_strided_slice %299 {offsets = [2, 0], sizes = [1, 1], strides = [1, 1]} : vector<4x1xf32> to vector<1x1xf32>
    %313 = vector.broadcast %312 : vector<1x1xf32> to vector<16x1xf32>
    %314 = arith.mulf %311, %313 : vector<16x1xf32>
    %315 = arith.addf %310, %314 : vector<16x1xf32>
    %c0_225 = arith.constant 0 : index
    %c3_226 = arith.constant 3 : index
    %316 = vector.load %arg14[%c0_225, %c3_226] : memref<16x4xf32, #tpu.memory_space<vmem>>, vector<16x1xf32>
    %317 = vector.extract_strided_slice %299 {offsets = [3, 0], sizes = [1, 1], strides = [1, 1]} : vector<4x1xf32> to vector<1x1xf32>
    %318 = vector.broadcast %317 : vector<1x1xf32> to vector<16x1xf32>
    %319 = arith.mulf %316, %318 : vector<16x1xf32>
    %320 = arith.addf %315, %319 : vector<16x1xf32>
    %cst_227 = arith.constant 0.000000e+00 : f32
    %321 = vector.broadcast %cst_227 : f32 to vector<16x1xf32>
    %322 = arith.maximumf %320, %321 : vector<16x1xf32>
    %c0_228 = arith.constant 0 : index
    %c0_229 = arith.constant 0 : index
    %323 = vector.load %arg17[%c0_228, %c0_229] : memref<1x1xf32, #tpu.memory_space<vmem>>, vector<1x1xf32>
    %c0_230 = arith.constant 0 : index
    %c0_231 = arith.constant 0 : index
    %324 = vector.load %arg16[%c0_230, %c0_231] : memref<1x16xf32, #tpu.memory_space<vmem>>, vector<1x1xf32>
    %325 = vector.extract_strided_slice %322 {offsets = [0, 0], sizes = [1, 1], strides = [1, 1]} : vector<16x1xf32> to vector<1x1xf32>
    %326 = arith.mulf %324, %325 : vector<1x1xf32>
    %327 = arith.addf %323, %326 : vector<1x1xf32>
    %c0_232 = arith.constant 0 : index
    %c1_233 = arith.constant 1 : index
    %328 = vector.load %arg16[%c0_232, %c1_233] : memref<1x16xf32, #tpu.memory_space<vmem>>, vector<1x1xf32>
    %329 = vector.extract_strided_slice %322 {offsets = [1, 0], sizes = [1, 1], strides = [1, 1]} : vector<16x1xf32> to vector<1x1xf32>
    %330 = arith.mulf %328, %329 : vector<1x1xf32>
    %331 = arith.addf %327, %330 : vector<1x1xf32>
    %c0_234 = arith.constant 0 : index
    %c2_235 = arith.constant 2 : index
    %332 = vector.load %arg16[%c0_234, %c2_235] : memref<1x16xf32, #tpu.memory_space<vmem>>, vector<1x1xf32>
    %333 = vector.extract_strided_slice %322 {offsets = [2, 0], sizes = [1, 1], strides = [1, 1]} : vector<16x1xf32> to vector<1x1xf32>
    %334 = arith.mulf %332, %333 : vector<1x1xf32>
    %335 = arith.addf %331, %334 : vector<1x1xf32>
    %c0_236 = arith.constant 0 : index
    %c3_237 = arith.constant 3 : index
    %336 = vector.load %arg16[%c0_236, %c3_237] : memref<1x16xf32, #tpu.memory_space<vmem>>, vector<1x1xf32>
    %337 = vector.extract_strided_slice %322 {offsets = [3, 0], sizes = [1, 1], strides = [1, 1]} : vector<16x1xf32> to vector<1x1xf32>
    %338 = arith.mulf %336, %337 : vector<1x1xf32>
    %339 = arith.addf %335, %338 : vector<1x1xf32>
    %c0_238 = arith.constant 0 : index
    %c4_239 = arith.constant 4 : index
    %340 = vector.load %arg16[%c0_238, %c4_239] : memref<1x16xf32, #tpu.memory_space<vmem>>, vector<1x1xf32>
    %341 = vector.extract_strided_slice %322 {offsets = [4, 0], sizes = [1, 1], strides = [1, 1]} : vector<16x1xf32> to vector<1x1xf32>
    %342 = arith.mulf %340, %341 : vector<1x1xf32>
    %343 = arith.addf %339, %342 : vector<1x1xf32>
    %c0_240 = arith.constant 0 : index
    %c5_241 = arith.constant 5 : index
    %344 = vector.load %arg16[%c0_240, %c5_241] : memref<1x16xf32, #tpu.memory_space<vmem>>, vector<1x1xf32>
    %345 = vector.extract_strided_slice %322 {offsets = [5, 0], sizes = [1, 1], strides = [1, 1]} : vector<16x1xf32> to vector<1x1xf32>
    %346 = arith.mulf %344, %345 : vector<1x1xf32>
    %347 = arith.addf %343, %346 : vector<1x1xf32>
    %c0_242 = arith.constant 0 : index
    %c6_243 = arith.constant 6 : index
    %348 = vector.load %arg16[%c0_242, %c6_243] : memref<1x16xf32, #tpu.memory_space<vmem>>, vector<1x1xf32>
    %349 = vector.extract_strided_slice %322 {offsets = [6, 0], sizes = [1, 1], strides = [1, 1]} : vector<16x1xf32> to vector<1x1xf32>
    %350 = arith.mulf %348, %349 : vector<1x1xf32>
    %351 = arith.addf %347, %350 : vector<1x1xf32>
    %c0_244 = arith.constant 0 : index
    %c7_245 = arith.constant 7 : index
    %352 = vector.load %arg16[%c0_244, %c7_245] : memref<1x16xf32, #tpu.memory_space<vmem>>, vector<1x1xf32>
    %353 = vector.extract_strided_slice %322 {offsets = [7, 0], sizes = [1, 1], strides = [1, 1]} : vector<16x1xf32> to vector<1x1xf32>
    %354 = arith.mulf %352, %353 : vector<1x1xf32>
    %355 = arith.addf %351, %354 : vector<1x1xf32>
    %c0_246 = arith.constant 0 : index
    %c8_247 = arith.constant 8 : index
    %356 = vector.load %arg16[%c0_246, %c8_247] : memref<1x16xf32, #tpu.memory_space<vmem>>, vector<1x1xf32>
    %357 = vector.extract_strided_slice %322 {offsets = [8, 0], sizes = [1, 1], strides = [1, 1]} : vector<16x1xf32> to vector<1x1xf32>
    %358 = arith.mulf %356, %357 : vector<1x1xf32>
    %359 = arith.addf %355, %358 : vector<1x1xf32>
    %c0_248 = arith.constant 0 : index
    %c9_249 = arith.constant 9 : index
    %360 = vector.load %arg16[%c0_248, %c9_249] : memref<1x16xf32, #tpu.memory_space<vmem>>, vector<1x1xf32>
    %361 = vector.extract_strided_slice %322 {offsets = [9, 0], sizes = [1, 1], strides = [1, 1]} : vector<16x1xf32> to vector<1x1xf32>
    %362 = arith.mulf %360, %361 : vector<1x1xf32>
    %363 = arith.addf %359, %362 : vector<1x1xf32>
    %c0_250 = arith.constant 0 : index
    %c10 = arith.constant 10 : index
    %364 = vector.load %arg16[%c0_250, %c10] : memref<1x16xf32, #tpu.memory_space<vmem>>, vector<1x1xf32>
    %365 = vector.extract_strided_slice %322 {offsets = [10, 0], sizes = [1, 1], strides = [1, 1]} : vector<16x1xf32> to vector<1x1xf32>
    %366 = arith.mulf %364, %365 : vector<1x1xf32>
    %367 = arith.addf %363, %366 : vector<1x1xf32>
    %c0_251 = arith.constant 0 : index
    %c11 = arith.constant 11 : index
    %368 = vector.load %arg16[%c0_251, %c11] : memref<1x16xf32, #tpu.memory_space<vmem>>, vector<1x1xf32>
    %369 = vector.extract_strided_slice %322 {offsets = [11, 0], sizes = [1, 1], strides = [1, 1]} : vector<16x1xf32> to vector<1x1xf32>
    %370 = arith.mulf %368, %369 : vector<1x1xf32>
    %371 = arith.addf %367, %370 : vector<1x1xf32>
    %c0_252 = arith.constant 0 : index
    %c12 = arith.constant 12 : index
    %372 = vector.load %arg16[%c0_252, %c12] : memref<1x16xf32, #tpu.memory_space<vmem>>, vector<1x1xf32>
    %373 = vector.extract_strided_slice %322 {offsets = [12, 0], sizes = [1, 1], strides = [1, 1]} : vector<16x1xf32> to vector<1x1xf32>
    %374 = arith.mulf %372, %373 : vector<1x1xf32>
    %375 = arith.addf %371, %374 : vector<1x1xf32>
    %c0_253 = arith.constant 0 : index
    %c13 = arith.constant 13 : index
    %376 = vector.load %arg16[%c0_253, %c13] : memref<1x16xf32, #tpu.memory_space<vmem>>, vector<1x1xf32>
    %377 = vector.extract_strided_slice %322 {offsets = [13, 0], sizes = [1, 1], strides = [1, 1]} : vector<16x1xf32> to vector<1x1xf32>
    %378 = arith.mulf %376, %377 : vector<1x1xf32>
    %379 = arith.addf %375, %378 : vector<1x1xf32>
    %c0_254 = arith.constant 0 : index
    %c14 = arith.constant 14 : index
    %380 = vector.load %arg16[%c0_254, %c14] : memref<1x16xf32, #tpu.memory_space<vmem>>, vector<1x1xf32>
    %381 = vector.extract_strided_slice %322 {offsets = [14, 0], sizes = [1, 1], strides = [1, 1]} : vector<16x1xf32> to vector<1x1xf32>
    %382 = arith.mulf %380, %381 : vector<1x1xf32>
    %383 = arith.addf %379, %382 : vector<1x1xf32>
    %c0_255 = arith.constant 0 : index
    %c15 = arith.constant 15 : index
    %384 = vector.load %arg16[%c0_255, %c15] : memref<1x16xf32, #tpu.memory_space<vmem>>, vector<1x1xf32>
    %385 = vector.extract_strided_slice %322 {offsets = [15, 0], sizes = [1, 1], strides = [1, 1]} : vector<16x1xf32> to vector<1x1xf32>
    %386 = arith.mulf %384, %385 : vector<1x1xf32>
    %387 = arith.addf %383, %386 : vector<1x1xf32>
    %cst_256 = arith.constant 0.000000e+00 : f32
    %388 = vector.broadcast %cst_256 : f32 to vector<1x1xf32>
    %389 = arith.subf %388, %387 : vector<1x1xf32>
    %390 = math.exp %389 : vector<1x1xf32>
    %cst_257 = arith.constant 1.000000e+00 : f32
    %391 = vector.broadcast %cst_257 : f32 to vector<1x1xf32>
    %392 = arith.addf %391, %390 : vector<1x1xf32>
    %cst_258 = arith.constant 1.000000e+00 : f32
    %393 = vector.broadcast %cst_258 : f32 to vector<1x1xf32>
    %394 = arith.divf %393, %392 : vector<1x1xf32>
    %c0_259 = arith.constant 0 : index
    %c0_260 = arith.constant 0 : index
    %c0_261 = arith.constant 0 : index
    %395 = vector.load %arg18[%c0_259, %c0_260, %c0_261] : memref<1x1x1xf32, #tpu.memory_space<vmem>>, vector<1x1x1xf32>
    %396 = vector.shape_cast %395 : vector<1x1x1xf32> to vector<1x1xf32>
    %397 = vector.shape_cast %394 : vector<1x1xf32> to vector<1x1x1xf32>
    tpu.vector_store %arg18[%c0_259, %c0_260, %c0_261], %397 {strides = array<i32>} : memref<1x1x1xf32, #tpu.memory_space<vmem>>, vector<1x1x1xf32>,
    return
  }
  func.func @transform_0(%arg0: i32) -> (i32, i32, i32) {
    %c0_i32 = arith.constant 0 : i32
    %c0_i32_0 = arith.constant 0 : i32
    %c0_i32_1 = arith.constant 0 : i32
    return %arg0, %c0_i32, %c0_i32_0 : i32, i32, i32
  }
  func.func @transform_1(%arg0: i32) -> (i32, i32, i32) {
    %c0_i32 = arith.constant 0 : i32
    %c0_i32_0 = arith.constant 0 : i32
    %c0_i32_1 = arith.constant 0 : i32
    return %arg0, %c0_i32, %c0_i32_0 : i32, i32, i32
  }
  func.func @transform_2(%arg0: i32) -> (i32, i32) {
    %c0_i32 = arith.constant 0 : i32
    %c0_i32_0 = arith.constant 0 : i32
    %c0_i32_1 = arith.constant 0 : i32
    return %c0_i32, %c0_i32_0 : i32, i32
  }
  func.func @transform_3(%arg0: i32) -> (i32, i32, i32) {
    %c0_i32 = arith.constant 0 : i32
    %c0_i32_0 = arith.constant 0 : i32
    %c0_i32_1 = arith.constant 0 : i32
    %c0_i32_2 = arith.constant 0 : i32
    return %c0_i32, %c0_i32_0, %c0_i32_1 : i32, i32, i32
  }
  func.func @transform_4(%arg0: i32) -> (i32, i32, i32) {
    %c0_i32 = arith.constant 0 : i32
    %c0_i32_0 = arith.constant 0 : i32
    %c0_i32_1 = arith.constant 0 : i32
    %c0_i32_2 = arith.constant 0 : i32
    return %c0_i32, %c0_i32_0, %c0_i32_1 : i32, i32, i32
  }
  func.func @transform_5(%arg0: i32) -> (i32, i32) {
    %c0_i32 = arith.constant 0 : i32
    %c0_i32_0 = arith.constant 0 : i32
    %c0_i32_1 = arith.constant 0 : i32
    return %c0_i32, %c0_i32_0 : i32, i32
  }
  func.func @transform_6(%arg0: i32) -> (i32, i32) {
    %c0_i32 = arith.constant 0 : i32
    %c0_i32_0 = arith.constant 0 : i32
    %c0_i32_1 = arith.constant 0 : i32
    return %c0_i32, %c0_i32_0 : i32, i32
  }
  func.func @transform_7(%arg0: i32) -> (i32, i32, i32) {
    %c0_i32 = arith.constant 0 : i32
    %c0_i32_0 = arith.constant 0 : i32
    %c0_i32_1 = arith.constant 0 : i32
    %c0_i32_2 = arith.constant 0 : i32
    return %c0_i32, %c0_i32_0, %c0_i32_1 : i32, i32, i32
  }
  func.func @transform_8(%arg0: i32) -> (i32, i32) {
    %c0_i32 = arith.constant 0 : i32
    %c0_i32_0 = arith.constant 0 : i32
    %c0_i32_1 = arith.constant 0 : i32
    return %c0_i32, %c0_i32_0 : i32, i32
  }
  func.func @transform_9(%arg0: i32) -> (i32, i32) {
    %c0_i32 = arith.constant 0 : i32
    %c0_i32_0 = arith.constant 0 : i32
    %c0_i32_1 = arith.constant 0 : i32
    return %c0_i32, %c0_i32_0 : i32, i32
  }
  func.func @transform_10(%arg0: i32) -> (i32, i32, i32) {
    %c0_i32 = arith.constant 0 : i32
    %c0_i32_0 = arith.constant 0 : i32
    %c0_i32_1 = arith.constant 0 : i32
    %c0_i32_2 = arith.constant 0 : i32
    return %c0_i32, %c0_i32_0, %c0_i32_1 : i32, i32, i32
  }
  func.func @transform_11(%arg0: i32) -> (i32, i32) {
    %c0_i32 = arith.constant 0 : i32
    %c0_i32_0 = arith.constant 0 : i32
    %c0_i32_1 = arith.constant 0 : i32
    return %c0_i32, %c0_i32_0 : i32, i32
  }
  func.func @transform_12(%arg0: i32) -> (i32, i32) {
    %c0_i32 = arith.constant 0 : i32
    %c0_i32_0 = arith.constant 0 : i32
    %c0_i32_1 = arith.constant 0 : i32
    return %c0_i32, %c0_i32_0 : i32, i32
  }
  func.func @transform_13(%arg0: i32) -> (i32, i32) {
    %c0_i32 = arith.constant 0 : i32
    %c0_i32_0 = arith.constant 0 : i32
    %c0_i32_1 = arith.constant 0 : i32
    return %c0_i32, %c0_i32_0 : i32, i32
  }
  func.func @transform_14(%arg0: i32) -> (i32, i32) {
    %c0_i32 = arith.constant 0 : i32
    %c0_i32_0 = arith.constant 0 : i32
    %c0_i32_1 = arith.constant 0 : i32
    return %c0_i32, %c0_i32_0 : i32, i32
  }
  func.func @transform_15(%arg0: i32) -> (i32, i32) {
    %c0_i32 = arith.constant 0 : i32
    %c0_i32_0 = arith.constant 0 : i32
    %c0_i32_1 = arith.constant 0 : i32
    return %c0_i32, %c0_i32_0 : i32, i32
  }
  func.func @transform_16(%arg0: i32) -> (i32, i32) {
    %c0_i32 = arith.constant 0 : i32
    %c0_i32_0 = arith.constant 0 : i32
    %c0_i32_1 = arith.constant 0 : i32
    return %c0_i32, %c0_i32_0 : i32, i32
  }
  func.func @transform_17(%arg0: i32) -> (i32, i32, i32) {
    %c0_i32 = arith.constant 0 : i32
    %c0_i32_0 = arith.constant 0 : i32
    %c0_i32_1 = arith.constant 0 : i32
    return %arg0, %c0_i32, %c0_i32_0 : i32, i32, i32
  }
}

</mosaic_0001>

<llo_original>
// kernel: m6aiso_forward.1
$region0: #{m6aiso_forward.1}
  #allocation0 [shape = 'u32[]', space=smem, size = 0x4, offset = 0x4, fixed_abs, tag = 'smem constant byte address 0x4 - core index']
  #allocation1 [shape = 'u32[144,128]{1,0:T(1,128)}', space=vmem, size = 0x12000, scoped, tag = 'internal scratch']
  #allocation2 [shape = 'f32[1,1]{1,0:T(1,128)S(1)}', space=vmem, size = 0x200, scoped, tag = 'scoped memory for m6aiso_forward.1']
  %s0 = inlined_call_operand.vmem [shape: f32[2,5,128], index: 0, kind: input, shape index: {}]
  %s1 = inlined_call_operand.vmem [shape: f32[2,1,128], index: 1, kind: input, shape index: {}]
  %s2 = inlined_call_operand.vmem [shape: f32[10,128], index: 2, kind: input, shape index: {}]
  %s3 = inlined_call_operand.vmem [shape: f32[9,2,5], index: 3, kind: input, shape index: {}]
  %s4 = inlined_call_operand.vmem [shape: f32[9,4,1], index: 4, kind: input, shape index: {}]
  %s5 = inlined_call_operand.vmem [shape: f32[4,1], index: 5, kind: input, shape index: {}]
  %s6 = inlined_call_operand.vmem [shape: f32[4,1], index: 6, kind: input, shape index: {}]
  %s7 = inlined_call_operand.vmem [shape: f32[9,16,4], index: 7, kind: input, shape index: {}]
  %s8 = inlined_call_operand.vmem [shape: f32[16,1], index: 8, kind: input, shape index: {}]
  %s9 = inlined_call_operand.vmem [shape: f32[16,1], index: 9, kind: input, shape index: {}]
  %s10 = inlined_call_operand.vmem [shape: f32[9,4,16], index: 10, kind: input, shape index: {}]
  %s11 = inlined_call_operand.vmem [shape: f32[4,1], index: 11, kind: input, shape index: {}]
  %s12 = inlined_call_operand.vmem [shape: f32[4,1], index: 12, kind: input, shape index: {}]
  %s13 = inlined_call_operand.vmem [shape: f32[16,4], index: 13, kind: input, shape index: {}]
  %s14 = inlined_call_operand.vmem [shape: f32[16,1], index: 14, kind: input, shape index: {}]
  %s15 = inlined_call_operand.vmem [shape: f32[1,16], index: 15, kind: input, shape index: {}]
  %s16 = inlined_call_operand.<no memory space> [shape: f32[1,1], index: 16, kind: input, shape index: {}]
  %s17 = inlined_call_operand.vmem [shape: f32[2,1,1], index: 17, kind: output, shape index: {}]
  %s18 = sld [smem:[#allocation0]]
  $region101: #{m6aiso_forward.1} parent=0
    _
  %s20 = ssub.s32 1, %s18
  %s21 = scalar_select 0, %s20, %s18
  %v22 = vstv %s16
  %23 = vst [vmem:[#allocation2] sm:$0x1] %v22
  loop: start=0, step=1, limit=4
  $region2: #{m6aiso_forward.1} parent=0 // loop_pre_header
    _
  $region3: #{m6aiso_forward.1} parent=0 // loop_header
    %s25 = sphi 0, %s29
    %p26 = scmp.ge.s32.totalorder %s25, 4
    %s35 = sphi 0, %s37
    %s38 = sphi 0, %s35
    %s39 = sphi 0, %s38
    %s55 = sphi 0, %s39
    %s61 = sphi 0, %s63
    %s64 = sphi 0, %s61
    %s65 = sphi 0, %s64
    %s81 = sphi 0, %s65
    %s85 = sphi 0, %s85
    %s87 = sphi 0, %s85
    %s88 = sphi 0, %s87
    %s102 = sphi 0, %s88
    %s106 = sphi 0, %s106
    %s108 = sphi 0, %s106
    %s109 = sphi 0, %s108
    %s123 = sphi 0, %s109
    %s127 = sphi 0, %s127
    %s129 = sphi 0, %s127
    %s130 = sphi 0, %s129
    %s144 = sphi 0, %s130
    %s148 = sphi 0, %s148
    %s150 = sphi 0, %s148
    %s151 = sphi 0, %s150
    %s165 = sphi 0, %s151
    %s169 = sphi 0, %s169
    %s171 = sphi 0, %s169
    %s172 = sphi 0, %s171
    %s186 = sphi 0, %s172
    %s190 = sphi 0, %s190
    %s192 = sphi 0, %s190
    %s193 = sphi 0, %s192
    %s207 = sphi 0, %s193
    %s211 = sphi 0, %s211
    %s213 = sphi 0, %s211
    %s214 = sphi 0, %s213
    %s228 = sphi 0, %s214
    %s232 = sphi 0, %s232
    %s234 = sphi 0, %s232
    %s235 = sphi 0, %s234
    %s249 = sphi 0, %s235
    %s253 = sphi 0, %s253
    %s255 = sphi 0, %s253
    %s256 = sphi 0, %s255
    %s270 = sphi 0, %s256
    %s274 = sphi 0, %s274
    %s276 = sphi 0, %s274
    %s277 = sphi 0, %s276
    %s291 = sphi 0, %s277
    %s295 = sphi 0, %s295
    %s297 = sphi 0, %s295
    %s298 = sphi 0, %s297
    %s312 = sphi 0, %s298
    %s316 = sphi 0, %s316
    %s318 = sphi 0, %s316
    %s319 = sphi 0, %s318
    %s333 = sphi 0, %s319
    %s337 = sphi 0, %s337
    %s339 = sphi 0, %s337
    %s340 = sphi 0, %s339
    %s354 = sphi 0, %s340
    %s358 = sphi 0, %s358
    %s360 = sphi 0, %s358
    %s361 = sphi 0, %s360
    %s375 = sphi 0, %s361
    %s379 = sphi 0, %s379
    %s381 = sphi 0, %s379
    %s382 = sphi 0, %s381
    %s396 = sphi 0, %s382
    %s402 = sphi 0, %s404
    %s405 = sphi 0, %s402
    %s406 = sphi 0, %s405
    %s422 = sphi 0, %s406
  $region4: #{m6aiso_forward.1} parent=0 // loop_header_branch
    %28 = sbr.rel (%p26) target = $region8
  $region5: #{m6aiso_forward.1} parent=0 // loop_body
    %s30 = ssub.s32 %s25, 1
    %s31 = ssub.s32 %s25, 2
    %s32 = sadd.s32 %s25, 1
    %s33 = ssub.s32 %s25, %s32
    %p34 = scmp.eq.s32.totalorder %s33, 0
    %s36 = sadd.s32 %s35, 1
    %s37 = scalar_select %p34, %s35, %s36
    %p40 = pneg %p34
    %p41 = scmp.eq.s32.totalorder %s25, 1
    %p42 = por %p40, %p41
    %p43 = scmp.ne.s32.totalorder %s35, %s38
    %p44 = scmp.eq.s32.totalorder %s25, 0
    %p45 = por %p43, %p44
    %p46 = scmp.ne.s32.totalorder %s35, %s38
    %p47 = scmp.eq.s32.totalorder %s30, 1
    %p48 = por %p46, %p47
    %p49 = scmp.ne.s32.totalorder %s38, %s39
    %p50 = scmp.eq.s32.totalorder %s30, 0
    %p51 = por %p49, %p50
    %p52 = scmp.ne.s32.totalorder %s38, %s39
    %p53 = scmp.eq.s32.totalorder %s31, 1
    %p54 = por %p52, %p53
    %p56 = scmp.ne.s32.totalorder %s39, %s55
    %p57 = scmp.eq.s32.totalorder %s31, 0
    %p58 = por %p56, %p57
    %s59 = ssub.s32 %s25, %s32
    %p60 = scmp.eq.s32.totalorder %s59, 0
    %s62 = sadd.s32 %s61, 1
    %s63 = scalar_select %p60, %s61, %s62
    %p66 = pneg %p60
    %p67 = scmp.eq.s32.totalorder %s25, 1
    %p68 = por %p66, %p67
    %p69 = scmp.ne.s32.totalorder %s61, %s64
    %p70 = scmp.eq.s32.totalorder %s25, 0
    %p71 = por %p69, %p70
    %p72 = scmp.ne.s32.totalorder %s61, %s64
    %p73 = scmp.eq.s32.totalorder %s30, 1
    %p74 = por %p72, %p73
    %p75 = scmp.ne.s32.totalorder %s64, %s65
    %p76 = scmp.eq.s32.totalorder %s30, 0
    %p77 = por %p75, %p76
    %p78 = scmp.ne.s32.totalorder %s64, %s65
    %p79 = scmp.eq.s32.totalorder %s31, 1
    %p80 = por %p78, %p79
    %p82 = scmp.ne.s32.totalorder %s65, %s81
    %p83 = scmp.eq.s32.totalorder %s31, 0
    %p84 = por %p82, %p83
    %s86 = sadd.s32 %s85, 1
    %p89 = scmp.eq.s32.totalorder %s25, 1
    %p90 = scmp.ne.s32.totalorder %s85, %s87
    %p91 = scmp.eq.s32.totalorder %s25, 0
    %p92 = por %p90, %p91
    %p93 = scmp.ne.s32.totalorder %s85, %s87
    %p94 = scmp.eq.s32.totalorder %s30, 1
    %p95 = por %p93, %p94
    %p96 = scmp.ne.s32.totalorder %s87, %s88
    %p97 = scmp.eq.s32.totalorder %s30, 0
    %p98 = por %p96, %p97
    %p99 = scmp.ne.s32.totalorder %s87, %s88
    %p100 = scmp.eq.s32.totalorder %s31, 1
    %p101 = por %p99, %p100
    %p103 = scmp.ne.s32.totalorder %s88, %s102
    %p104 = scmp.eq.s32.totalorder %s31, 0
    %p105 = por %p103, %p104
    %s107 = sadd.s32 %s106, 1
    %p110 = scmp.eq.s32.totalorder %s25, 1
    %p111 = scmp.ne.s32.totalorder %s106, %s108
    %p112 = scmp.eq.s32.totalorder %s25, 0
    %p113 = por %p111, %p112
    %p114 = scmp.ne.s32.totalorder %s106, %s108
    %p115 = scmp.eq.s32.totalorder %s30, 1
    %p116 = por %p114, %p115
    %p117 = scmp.ne.s32.totalorder %s108, %s109
    %p118 = scmp.eq.s32.totalorder %s30, 0
    %p119 = por %p117, %p118
    %p120 = scmp.ne.s32.totalorder %s108, %s109
    %p121 = scmp.eq.s32.totalorder %s31, 1
    %p122 = por %p120, %p121
    %p124 = scmp.ne.s32.totalorder %s109, %s123
    %p125 = scmp.eq.s32.totalorder %s31, 0
    %p126 = por %p124, %p125
    %s128 = sadd.s32 %s127, 1
    %p131 = scmp.eq.s32.totalorder %s25, 1
    %p132 = scmp.ne.s32.totalorder %s127, %s129
    %p133 = scmp.eq.s32.totalorder %s25, 0
    %p134 = por %p132, %p133
    %p135 = scmp.ne.s32.totalorder %s127, %s129
    %p136 = scmp.eq.s32.totalorder %s30, 1
    %p137 = por %p135, %p136
    %p138 = scmp.ne.s32.totalorder %s129, %s130
    %p139 = scmp.eq.s32.totalorder %s30, 0
    %p140 = por %p138, %p139
    %p141 = scmp.ne.s32.totalorder %s129, %s130
    %p142 = scmp.eq.s32.totalorder %s31, 1
    %p143 = por %p141, %p142
    %p145 = scmp.ne.s32.totalorder %s130, %s144
    %p146 = scmp.eq.s32.totalorder %s31, 0
    %p147 = por %p145, %p146
    %s149 = sadd.s32 %s148, 1
    %p152 = scmp.eq.s32.totalorder %s25, 1
    %p153 = scmp.ne.s32.totalorder %s148, %s150
    %p154 = scmp.eq.s32.totalorder %s25, 0
    %p155 = por %p153, %p154
    %p156 = scmp.ne.s32.totalorder %s148, %s150
    %p157 = scmp.eq.s32.totalorder %s30, 1
    %p158 = por %p156, %p157
    %p159 = scmp.ne.s32.totalorder %s150, %s151
    %p160 = scmp.eq.s32.totalorder %s30, 0
    %p161 = por %p159, %p160
    %p162 = scmp.ne.s32.totalorder %s150, %s151
    %p163 = scmp.eq.s32.totalorder %s31, 1
    %p164 = por %p162, %p163
    %p166 = scmp.ne.s32.totalorder %s151, %s165
    %p167 = scmp.eq.s32.totalorder %s31, 0
    %p168 = por %p166, %p167
    %s170 = sadd.s32 %s169, 1
    %p173 = scmp.eq.s32.totalorder %s25, 1
    %p174 = scmp.ne.s32.totalorder %s169, %s171
    %p175 = scmp.eq.s32.totalorder %s25, 0
    %p176 = por %p174, %p175
    %p177 = scmp.ne.s32.totalorder %s169, %s171
    %p178 = scmp.eq.s32.totalorder %s30, 1
    %p179 = por %p177, %p178
    %p180 = scmp.ne.s32.totalorder %s171, %s172
    %p181 = scmp.eq.s32.totalorder %s30, 0
    %p182 = por %p180, %p181
    %p183 = scmp.ne.s32.totalorder %s171, %s172
    %p184 = scmp.eq.s32.totalorder %s31, 1
    %p185 = por %p183, %p184
    %p187 = scmp.ne.s32.totalorder %s172, %s186
    %p188 = scmp.eq.s32.totalorder %s31, 0
    %p189 = por %p187, %p188
    %s191 = sadd.s32 %s190, 1
    %p194 = scmp.eq.s32.totalorder %s25, 1
    %p195 = scmp.ne.s32.totalorder %s190, %s192
    %p196 = scmp.eq.s32.totalorder %s25, 0
    %p197 = por %p195, %p196
    %p198 = scmp.ne.s32.totalorder %s190, %s192
    %p199 = scmp.eq.s32.totalorder %s30, 1
    %p200 = por %p198, %p199
    %p201 = scmp.ne.s32.totalorder %s192, %s193
    %p202 = scmp.eq.s32.totalorder %s30, 0
    %p203 = por %p201, %p202
    %p204 = scmp.ne.s32.totalorder %s192, %s193
    %p205 = scmp.eq.s32.totalorder %s31, 1
    %p206 = por %p204, %p205
    %p208 = scmp.ne.s32.totalorder %s193, %s207
    %p209 = scmp.eq.s32.totalorder %s31, 0
    %p210 = por %p208, %p209
    %s212 = sadd.s32 %s211, 1
    %p215 = scmp.eq.s32.totalorder %s25, 1
    %p216 = scmp.ne.s32.totalorder %s211, %s213
    %p217 = scmp.eq.s32.totalorder %s25, 0
    %p218 = por %p216, %p217
    %p219 = scmp.ne.s32.totalorder %s211, %s213
    %p220 = scmp.eq.s32.totalorder %s30, 1
    %p221 = por %p219, %p220
    %p222 = scmp.ne.s32.totalorder %s213, %s214
    %p223 = scmp.eq.s32.totalorder %s30, 0
    %p224 = por %p222, %p223
    %p225 = scmp.ne.s32.totalorder %s213, %s214
    %p226 = scmp.eq.s32.totalorder %s31, 1
    %p227 = por %p225, %p226
    %p229 = scmp.ne.s32.totalorder %s214, %s228
    %p230 = scmp.eq.s32.totalorder %s31, 0
    %p231 = por %p229, %p230
    %s233 = sadd.s32 %s232, 1
    %p236 = scmp.eq.s32.totalorder %s25, 1
    %p237 = scmp.ne.s32.totalorder %s232, %s234
    %p238 = scmp.eq.s32.totalorder %s25, 0
    %p239 = por %p237, %p238
    %p240 = scmp.ne.s32.totalorder %s232, %s234
    %p241 = scmp.eq.s32.totalorder %s30, 1
    %p242 = por %p240, %p241
    %p243 = scmp.ne.s32.totalorder %s234, %s235
    %p244 = scmp.eq.s32.totalorder %s30, 0
    %p245 = por %p243, %p244
    %p246 = scmp.ne.s32.totalorder %s234, %s235
    %p247 = scmp.eq.s32.totalorder %s31, 1
    %p248 = por %p246, %p247
    %p250 = scmp.ne.s32.totalorder %s235, %s249
    %p251 = scmp.eq.s32.totalorder %s31, 0
    %p252 = por %p250, %p251
    %s254 = sadd.s32 %s253, 1
    %p257 = scmp.eq.s32.totalorder %s25, 1
    %p258 = scmp.ne.s32.totalorder %s253, %s255
    %p259 = scmp.eq.s32.totalorder %s25, 0
    %p260 = por %p258, %p259
    %p261 = scmp.ne.s32.totalorder %s253, %s255
    %p262 = scmp.eq.s32.totalorder %s30, 1
    %p263 = por %p261, %p262
    %p264 = scmp.ne.s32.totalorder %s255, %s256
    %p265 = scmp.eq.s32.totalorder %s30, 0
    %p266 = por %p264, %p265
    %p267 = scmp.ne.s32.totalorder %s255, %s256
    %p268 = scmp.eq.s32.totalorder %s31, 1
    %p269 = por %p267, %p268
    %p271 = scmp.ne.s32.totalorder %s256, %s270
    %p272 = scmp.eq.s32.totalorder %s31, 0
    %p273 = por %p271, %p272
    %s275 = sadd.s32 %s274, 1
    %p278 = scmp.eq.s32.totalorder %s25, 1
    %p279 = scmp.ne.s32.totalorder %s274, %s276
    %p280 = scmp.eq.s32.totalorder %s25, 0
    %p281 = por %p279, %p280
    %p282 = scmp.ne.s32.totalorder %s274, %s276
    %p283 = scmp.eq.s32.totalorder %s30, 1
    %p284 = por %p282, %p283
    %p285 = scmp.ne.s32.totalorder %s276, %s277
    %p286 = scmp.eq.s32.totalorder %s30, 0
    %p287 = por %p285, %p286
    %p288 = scmp.ne.s32.totalorder %s276, %s277
    %p289 = scmp.eq.s32.totalorder %s31, 1
    %p290 = por %p288, %p289
    %p292 = scmp.ne.s32.totalorder %s277, %s291
    %p293 = scmp.eq.s32.totalorder %s31, 0
    %p294 = por %p292, %p293
    %s296 = sadd.s32 %s295, 1
    %p299 = scmp.eq.s32.totalorder %s25, 1
    %p300 = scmp.ne.s32.totalorder %s295, %s297
    %p301 = scmp.eq.s32.totalorder %s25, 0
    %p302 = por %p300, %p301
    %p303 = scmp.ne.s32.totalorder %s295, %s297
    %p304 = scmp.eq.s32.totalorder %s30, 1
    %p305 = por %p303, %p304
    %p306 = scmp.ne.s32.totalorder %s297, %s298
    %p307 = scmp.eq.s32.totalorder %s30, 0
    %p308 = por %p306, %p307
    %p309 = scmp.ne.s32.totalorder %s297, %s298
    %p310 = scmp.eq.s32.totalorder %s31, 1
    %p311 = por %p309, %p310
    %p313 = scmp.ne.s32.totalorder %s298, %s312
    %p314 = scmp.eq.s32.totalorder %s31, 0
    %p315 = por %p313, %p314
    %s317 = sadd.s32 %s316, 1
    %p320 = scmp.eq.s32.totalorder %s25, 1
    %p321 = scmp.ne.s32.totalorder %s316, %s318
    %p322 = scmp.eq.s32.totalorder %s25, 0
    %p323 = por %p321, %p322
    %p324 = scmp.ne.s32.totalorder %s316, %s318
    %p325 = scmp.eq.s32.totalorder %s30, 1
    %p326 = por %p324, %p325
    %p327 = scmp.ne.s32.totalorder %s318, %s319
    %p328 = scmp.eq.s32.totalorder %s30, 0
    %p329 = por %p327, %p328
    %p330 = scmp.ne.s32.totalorder %s318, %s319
    %p331 = scmp.eq.s32.totalorder %s31, 1
    %p332 = por %p330, %p331
    %p334 = scmp.ne.s32.totalorder %s319, %s333
    %p335 = scmp.eq.s32.totalorder %s31, 0
    %p336 = por %p334, %p335
    %s338 = sadd.s32 %s337, 1
    %p341 = scmp.eq.s32.totalorder %s25, 1
    %p342 = scmp.ne.s32.totalorder %s337, %s339
    %p343 = scmp.eq.s32.totalorder %s25, 0
    %p344 = por %p342, %p343
    %p345 = scmp.ne.s32.totalorder %s337, %s339
    %p346 = scmp.eq.s32.totalorder %s30, 1
    %p347 = por %p345, %p346
    %p348 = scmp.ne.s32.totalorder %s339, %s340
    %p349 = scmp.eq.s32.totalorder %s30, 0
    %p350 = por %p348, %p349
    %p351 = scmp.ne.s32.totalorder %s339, %s340
    %p352 = scmp.eq.s32.totalorder %s31, 1
    %p353 = por %p351, %p352
    %p355 = scmp.ne.s32.totalorder %s340, %s354
    %p356 = scmp.eq.s32.totalorder %s31, 0
    %p357 = por %p355, %p356
    %s359 = sadd.s32 %s358, 1
    %p362 = scmp.eq.s32.totalorder %s25, 1
    %p363 = scmp.ne.s32.totalorder %s358, %s360
    %p364 = scmp.eq.s32.totalorder %s25, 0
    %p365 = por %p363, %p364
    %p366 = scmp.ne.s32.totalorder %s358, %s360
    %p367 = scmp.eq.s32.totalorder %s30, 1
    %p368 = por %p366, %p367
    %p369 = scmp.ne.s32.totalorder %s360, %s361
    %p370 = scmp.eq.s32.totalorder %s30, 0
    %p371 = por %p369, %p370
    %p372 = scmp.ne.s32.totalorder %s360, %s361
    %p373 = scmp.eq.s32.totalorder %s31, 1
    %p374 = por %p372, %p373
    %p376 = scmp.ne.s32.totalorder %s361, %s375
    %p377 = scmp.eq.s32.totalorder %s31, 0
    %p378 = por %p376, %p377
    %s380 = sadd.s32 %s379, 1
    %p383 = scmp.eq.s32.totalorder %s25, 1
    %p384 = scmp.ne.s32.totalorder %s379, %s381
    %p385 = scmp.eq.s32.totalorder %s25, 0
    %p386 = por %p384, %p385
    %p387 = scmp.ne.s32.totalorder %s379, %s381
    %p388 = scmp.eq.s32.totalorder %s30, 1
    %p389 = por %p387, %p388
    %p390 = scmp.ne.s32.totalorder %s381, %s382
    %p391 = scmp.eq.s32.totalorder %s30, 0
    %p392 = por %p390, %p391
    %p393 = scmp.ne.s32.totalorder %s381, %s382
    %p394 = scmp.eq.s32.totalorder %s31, 1
    %p395 = por %p393, %p394
    %p397 = scmp.ne.s32.totalorder %s382, %s396
    %p398 = scmp.eq.s32.totalorder %s31, 0
    %p399 = por %p397, %p398
    %s400 = ssub.s32 %s25, %s32
    %p401 = scmp.eq.s32.totalorder %s400, 0
    %s403 = sadd.s32 %s402, 1
    %s404 = scalar_select %p401, %s402, %s403
    %p407 = pneg %p401
    %p408 = scmp.eq.s32.totalorder %s25, 1
    %p409 = por %p407, %p408
    %p410 = scmp.ne.s32.totalorder %s402, %s405
    %p411 = scmp.eq.s32.totalorder %s25, 0
    %p412 = por %p410, %p411
    %p413 = scmp.ne.s32.totalorder %s402, %s405
    %p414 = scmp.eq.s32.totalorder %s30, 1
    %p415 = por %p413, %p414
    %p416 = scmp.ne.s32.totalorder %s405, %s406
    %p417 = scmp.eq.s32.totalorder %s30, 0
    %p418 = por %p416, %p417
    %p419 = scmp.ne.s32.totalorder %s405, %s406
    %p420 = scmp.eq.s32.totalorder %s31, 1
    %p421 = por %p419, %p420
    %p423 = scmp.ne.s32.totalorder %s406, %s422
    %p424 = scmp.eq.s32.totalorder %s31, 0
    %p425 = por %p423, %p424
    %p426 = scmp.le.s32.totalorder 1, %s25
    %p427 = scmp.lt.s32.totalorder %s25, 3
    %p428 = pnand %p426, %p427
    %p429 = pneg %p428
    // Predicated region
    $region9: #{m6aiso_forward.1} parent=5 // pred_check
      _
    $region10: #{m6aiso_forward.1} parent=5 // pred_check_branch
      %431 = sbr.rel (%p428) target = $region12
    $region11: #{m6aiso_forward.1} parent=5 // pred_region
      %s432 = ssub.s32 %s25, 1
      // Predicated region
      $region13: #{m6aiso_forward.1} parent=11 // pred_check
        %p433 = pneg %p98
      $region14: #{m6aiso_forward.1} parent=11 // pred_check_branch
        %435 = sbr.rel (%p433) target = $region16
      $region15: #{m6aiso_forward.1} parent=11 // pred_region
        _
      $region16: #{m6aiso_forward.1} parent=11 // pred_fallthru
        _
      // Predicated region
      $region17: #{m6aiso_forward.1} parent=11 // pred_check
        %p436 = pneg %p119
      $region18: #{m6aiso_forward.1} parent=11 // pred_check_branch
        %438 = sbr.rel (%p436) target = $region20
      $region19: #{m6aiso_forward.1} parent=11 // pred_region
        _
      $region20: #{m6aiso_forward.1} parent=11 // pred_fallthru
        _
      // Predicated region
      $region21: #{m6aiso_forward.1} parent=11 // pred_check
        %p439 = pneg %p140
      $region22: #{m6aiso_forward.1} parent=11 // pred_check_branch
        %441 = sbr.rel (%p439) target = $region24
      $region23: #{m6aiso_forward.1} parent=11 // pred_region
        _
      $region24: #{m6aiso_forward.1} parent=11 // pred_fallthru
        _
      // Predicated region
      $region25: #{m6aiso_forward.1} parent=11 // pred_check
        %p442 = pneg %p161
      $region26: #{m6aiso_forward.1} parent=11 // pred_check_branch
        %444 = sbr.rel (%p442) target = $region28
      $region27: #{m6aiso_forward.1} parent=11 // pred_region
        _
      $region28: #{m6aiso_forward.1} parent=11 // pred_fallthru
        _
      // Predicated region
      $region29: #{m6aiso_forward.1} parent=11 // pred_check
        %p445 = pneg %p182
      $region30: #{m6aiso_forward.1} parent=11 // pred_check_branch
        %447 = sbr.rel (%p445) target = $region32
      $region31: #{m6aiso_forward.1} parent=11 // pred_region
        _
      $region32: #{m6aiso_forward.1} parent=11 // pred_fallthru
        _
      // Predicated region
      $region33: #{m6aiso_forward.1} parent=11 // pred_check
        %p448 = pneg %p203
      $region34: #{m6aiso_forward.1} parent=11 // pred_check_branch
        %450 = sbr.rel (%p448) target = $region36
      $region35: #{m6aiso_forward.1} parent=11 // pred_region
        _
      $region36: #{m6aiso_forward.1} parent=11 // pred_fallthru
        _
      // Predicated region
      $region37: #{m6aiso_forward.1} parent=11 // pred_check
        %p451 = pneg %p224
      $region38: #{m6aiso_forward.1} parent=11 // pred_check_branch
        %453 = sbr.rel (%p451) target = $region40
      $region39: #{m6aiso_forward.1} parent=11 // pred_region
        _
      $region40: #{m6aiso_forward.1} parent=11 // pred_fallthru
        _
      // Predicated region
      $region41: #{m6aiso_forward.1} parent=11 // pred_check
        %p454 = pneg %p245
      $region42: #{m6aiso_forward.1} parent=11 // pred_check_branch
        %456 = sbr.rel (%p454) target = $region44
      $region43: #{m6aiso_forward.1} parent=11 // pred_region
        _
      $region44: #{m6aiso_forward.1} parent=11 // pred_fallthru
        _
      // Predicated region
      $region45: #{m6aiso_forward.1} parent=11 // pred_check
        %p457 = pneg %p266
      $region46: #{m6aiso_forward.1} parent=11 // pred_check_branch
        %459 = sbr.rel (%p457) target = $region48
      $region47: #{m6aiso_forward.1} parent=11 // pred_region
        _
      $region48: #{m6aiso_forward.1} parent=11 // pred_fallthru
        _
      // Predicated region
      $region49: #{m6aiso_forward.1} parent=11 // pred_check
        %p460 = pneg %p287
      $region50: #{m6aiso_forward.1} parent=11 // pred_check_branch
        %462 = sbr.rel (%p460) target = $region52
      $region51: #{m6aiso_forward.1} parent=11 // pred_region
        _
      $region52: #{m6aiso_forward.1} parent=11 // pred_fallthru
        _
      // Predicated region
      $region53: #{m6aiso_forward.1} parent=11 // pred_check
        %p463 = pneg %p308
      $region54: #{m6aiso_forward.1} parent=11 // pred_check_branch
        %465 = sbr.rel (%p463) target = $region56
      $region55: #{m6aiso_forward.1} parent=11 // pred_region
        _
      $region56: #{m6aiso_forward.1} parent=11 // pred_fallthru
        _
      // Predicated region
      $region57: #{m6aiso_forward.1} parent=11 // pred_check
        %p466 = pneg %p329
      $region58: #{m6aiso_forward.1} parent=11 // pred_check_branch
        %468 = sbr.rel (%p466) target = $region60
      $region59: #{m6aiso_forward.1} parent=11 // pred_region
        _
      $region60: #{m6aiso_forward.1} parent=11 // pred_fallthru
        _
      // Predicated region
      $region61: #{m6aiso_forward.1} parent=11 // pred_check
        %p469 = pneg %p350
      $region62: #{m6aiso_forward.1} parent=11 // pred_check_branch
        %471 = sbr.rel (%p469) target = $region64
      $region63: #{m6aiso_forward.1} parent=11 // pred_region
        _
      $region64: #{m6aiso_forward.1} parent=11 // pred_fallthru
        _
      // Predicated region
      $region65: #{m6aiso_forward.1} parent=11 // pred_check
        %p472 = pneg %p371
      $region66: #{m6aiso_forward.1} parent=11 // pred_check_branch
        %474 = sbr.rel (%p472) target = $region68
      $region67: #{m6aiso_forward.1} parent=11 // pred_region
        _
      $region68: #{m6aiso_forward.1} parent=11 // pred_fallthru
        _
      // Predicated region
      $region69: #{m6aiso_forward.1} parent=11 // pred_check
        %p475 = pneg %p392
      $region70: #{m6aiso_forward.1} parent=11 // pred_check_branch
        %477 = sbr.rel (%p475) target = $region72
      $region71: #{m6aiso_forward.1} parent=11 // pred_region
        _
      $region72: #{m6aiso_forward.1} parent=11 // pred_fallthru
        _
    $region12: #{m6aiso_forward.1} parent=5 // pred_fallthru
      _
    %p478 = scmp.lt.s32.totalorder %s25, 2
    // Predicated region
    $region73: #{m6aiso_forward.1} parent=5 // pred_check
      %p479 = pneg %p478
    $region74: #{m6aiso_forward.1} parent=5 // pred_check_branch
      %481 = sbr.rel (%p479) target = $region76
    $region75: #{m6aiso_forward.1} parent=5 // pred_region
      // Predicated region
      $region77: #{m6aiso_forward.1} parent=75 // pred_check
        %p482 = pneg %p45
      $region78: #{m6aiso_forward.1} parent=75 // pred_check_branch
        %484 = sbr.rel (%p482) target = $region80
      $region79: #{m6aiso_forward.1} parent=75 // pred_region
        %p485 = scmp.lt.s32.totalorder %s25, 1
        %s486 = scalar_select %p485, %s25, 1
        %s487 = smul.addr %s486, 8
        %s488 = scalar_lea.vmem %s0, %s487
      $region80: #{m6aiso_forward.1} parent=75 // pred_fallthru
        _
      // Predicated region
      $region81: #{m6aiso_forward.1} parent=75 // pred_check
        %p489 = pneg %p71
      $region82: #{m6aiso_forward.1} parent=75 // pred_check_branch
        %491 = sbr.rel (%p489) target = $region84
      $region83: #{m6aiso_forward.1} parent=75 // pred_region
        %p492 = scmp.lt.s32.totalorder %s25, 1
        %s493 = scalar_select %p492, %s25, 1
        %s494 = scalar_lea.vmem %s1, %s493
      $region84: #{m6aiso_forward.1} parent=75 // pred_fallthru
        _
    $region76: #{m6aiso_forward.1} parent=5 // pred_fallthru
      _
    %p495 = scmp.le.s32.totalorder 1, %s25
    %p496 = scmp.lt.s32.totalorder %s25, 3
    %p497 = pnand %p495, %p496
    %p498 = pneg %p497
    // Predicated region
    $region85: #{m6aiso_forward.1} parent=5 // pred_check
      _
    $region86: #{m6aiso_forward.1} parent=5 // pred_check_branch
      %500 = sbr.rel (%p497) target = $region88
    $region87: #{m6aiso_forward.1} parent=5 // pred_region
      %s501 = ssub.s32 %s25, 1
      %p502 = scmp.lt.s32.totalorder %s30, 1
      %s503 = scalar_select %p502, %s30, 1
      %s504 = smul.addr %s503, 8
      %s505 = scalar_lea.vmem %s0, %s504
      %p506 = pneg %p51
      %p507 = pneg %p48
      %p508 = scmp.lt.s32.totalorder %s30, 1
      %s509 = scalar_select %p508, %s30, 1
      %s510 = scalar_lea.vmem %s1, %s509
      %p511 = pneg %p77
      %p512 = pneg %p74
      %p513 = pneg %p98
      %p514 = pneg %p95
      %p515 = pneg %p119
      %p516 = pneg %p116
      %p517 = pneg %p140
      %p518 = pneg %p137
      %p519 = pneg %p161
      %p520 = pneg %p158
      %p521 = pneg %p182
      %p522 = pneg %p179
      %p523 = pneg %p203
      %p524 = pneg %p200
      %p525 = pneg %p224
      %p526 = pneg %p221
      %p527 = pneg %p245
      %p528 = pneg %p242
      %p529 = pneg %p266
      %p530 = pneg %p263
      %p531 = pneg %p287
      %p532 = pneg %p284
      %p533 = pneg %p308
      %p534 = pneg %p305
      %p535 = pneg %p329
      %p536 = pneg %p326
      %p537 = pneg %p350
      %p538 = pneg %p347
      %p539 = pneg %p371
      %p540 = pneg %p368
      %p541 = pneg %p392
      %p542 = pneg %p389
      %p543 = pneg %p418
      %p544 = pneg %p415
      %p545 = scmp.lt.s32.totalorder %s30, 1
      %s546 = scalar_select %p545, %s30, 1
      %s547 = scalar_lea.vmem %s17, %s546
      %p548 = scmp.lt.s32.totalorder %s30, 1
      %s549 = scalar_select %p548, %s30, 1
      %s550 = smul.addr %s549, 8
      %s551 = scalar_lea.vmem %s0, %s550
      %p552 = scmp.lt.s32.totalorder %s30, 1
      %s553 = scalar_select %p552, %s30, 1
      %s554 = scalar_lea.vmem %s1, %s553
      %p555 = scmp.lt.s32.totalorder %s30, 1
      %s556 = scalar_select %p555, %s30, 1
      %s557 = scalar_lea.vmem %s17, %s556
      %v558 = vld [vmem:[%s551] sm:$0x1f]
      %v559 = vld [vmem:[%s3] sm:$0x3]
      %560 = vrot.lane.b32.xlu0 %v558, 127
      %v561 = vpop.permute.xlu0 %560
      %s562 = scalar_lea.vmem %s3, 2
      %v563 = vld [vmem:[%s562] sm:$0x3]
      %vm564 = vcmask 39936
      %v566 = vsel %vm564, %v563, 0
      %vm568 = vcmask 1044480
      %v570 = vsel %vm568, %v561, 0
      %572 = vmatprep.subr.mxu0 0.0
      %573 = vmatpush1.msra.mxu0 %v570
      %574 = vmatprep.subr.mxu0 0.0
      %575 = vmatpush1.msra.mxu0 0.0
      %576 = vmatprep.subr.mxu0 0.0
      %577 = vmatpush1.msra.mxu0 0.0
      %578 = vmatprep.subr.mxu0 0.0
      %579 = vmatpush1.msra.mxu0 0.0
      %580 = vmatprep.subr.mxu0 0.0
      %581 = vmatpush1.msra.mxu0 0.0
      %582 = vmatprep.subr.mxu0 0.0
      %583 = vmatpush1.msra.mxu0 0.0
      %584 = vmatprep.subr.mxu0 0.0
      %585 = vmatpush1.msra.mxu0 0.0
      %586 = vmatprep.subr.mxu0 0.0
      %587 = vmatpush1.msra.mxu0 0.0
      %588 = vmatprep.subr.mxu0 0.0
      %589 = vmatpush1.msra.mxu0 0.0
      %590 = vmatprep.subr.mxu0 0.0
      %591 = vmatpush1.msra.mxu0 0.0
      %592 = vmatprep.subr.mxu0 0.0
      %593 = vmatpush1.msra.mxu0 0.0
      %594 = vmatprep.subr.mxu0 0.0
      %595 = vmatpush1.msra.mxu0 0.0
      %596 = vmatprep.subr.mxu0 0.0
      %597 = vmatpush1.msra.mxu0 0.0
      %598 = vmatprep.subr.mxu0 0.0
      %599 = vmatpush1.msra.mxu0 0.0
      %600 = vmatprep.subr.mxu0 0.0
      %601 = vmatpush1.msra.mxu0 0.0
      %602 = vmatprep.subr.mxu0 0.0
      %603 = vmatpush1.msra.mxu0 0.0
      %604 = vmatprep.subr.mxu0 0.0
      %605 = vmatpush1.msra.mxu0 0.0
      %606 = vmatprep.subr.mxu0 0.0
      %607 = vmatpush1.msra.mxu0 0.0
      %608 = vmatprep.subr.mxu0 0.0
      %609 = vmatpush1.msra.mxu0 0.0
      %610 = vmatprep.subr.mxu0 0.0
      %611 = vmatpush1.msra.mxu0 0.0
      %612 = vmatprep.subr.mxu0 0.0
      %613 = vmatpush1.msra.mxu0 0.0
      %614 = vmatprep.subr.mxu0 0.0
      %615 = vmatpush1.msra.mxu0 0.0
      %616 = vmatprep.subr.mxu0 0.0
      %617 = vmatpush1.msra.mxu0 0.0
      %618 = vmatprep.subr.mxu0 0.0
      %619 = vmatpush1.msra.mxu0 0.0
      %620 = vmatprep.subr.mxu0 0.0
      %621 = vmatpush1.msra.mxu0 0.0
      %622 = vmatprep.subr.mxu0 0.0
      %623 = vmatpush1.msra.mxu0 0.0
      %624 = vmatprep.subr.mxu0 0.0
      %625 = vmatpush1.msra.mxu0 0.0
      %626 = vmatprep.subr.mxu0 0.0
      %627 = vmatpush1.msra.mxu0 0.0
      %628 = vmatprep.subr.mxu0 0.0
      %629 = vmatpush1.msra.mxu0 0.0
      %630 = vmatprep.subr.mxu0 0.0
      %631 = vmatpush1.msra.mxu0 0.0
      %632 = vmatprep.subr.mxu0 0.0
      %633 = vmatpush1.msra.mxu0 0.0
      %634 = vmatprep.subr.mxu0 0.0
      %635 = vmatpush1.msra.mxu0 0.0
      %636 = vmatprep.mubr.f32.mxu0 0.0
      %637 = vmatmul.mubr.f32.gmra.mrb[0].mxu0 %v566
      %v638 = vpop.f32.mrb[0].mxu0
      %v639 = vadd.f32 0.0, %v638
      %v640 = vpop.f32.mrb[0].mxu0
      %641 = vdwg.mxu0
      %v643 = vsel %vm564, %v559, 0
      %v646 = vsel %vm568, %v558, 0
      %648 = vmatprep.subr.mxu0 0.0
      %649 = vmatpush1.msra.mxu0 %v646
      %650 = vmatprep.subr.mxu0 0.0
      %651 = vmatpush1.msra.mxu0 0.0
      %652 = vmatprep.subr.mxu0 0.0
      %653 = vmatpush1.msra.mxu0 0.0
      %654 = vmatprep.subr.mxu0 0.0
      %655 = vmatpush1.msra.mxu0 0.0
      %656 = vmatprep.subr.mxu0 0.0
      %657 = vmatpush1.msra.mxu0 0.0
      %658 = vmatprep.subr.mxu0 0.0
      %659 = vmatpush1.msra.mxu0 0.0
      %660 = vmatprep.subr.mxu0 0.0
      %661 = vmatpush1.msra.mxu0 0.0
      %662 = vmatprep.subr.mxu0 0.0
      %663 = vmatpush1.msra.mxu0 0.0
      %664 = vmatprep.subr.mxu0 0.0
      %665 = vmatpush1.msra.mxu0 0.0
      %666 = vmatprep.subr.mxu0 0.0
      %667 = vmatpush1.msra.mxu0 0.0
      %668 = vmatprep.subr.mxu0 0.0
      %669 = vmatpush1.msra.mxu0 0.0
      %670 = vmatprep.subr.mxu0 0.0
      %671 = vmatpush1.msra.mxu0 0.0
      %672 = vmatprep.subr.mxu0 0.0
      %673 = vmatpush1.msra.mxu0 0.0
      %674 = vmatprep.subr.mxu0 0.0
      %675 = vmatpush1.msra.mxu0 0.0
      %676 = vmatprep.subr.mxu0 0.0
      %677 = vmatpush1.msra.mxu0 0.0
      %678 = vmatprep.subr.mxu0 0.0
      %679 = vmatpush1.msra.mxu0 0.0
      %680 = vmatprep.subr.mxu0 0.0
      %681 = vmatpush1.msra.mxu0 0.0
      %682 = vmatprep.subr.mxu0 0.0
      %683 = vmatpush1.msra.mxu0 0.0
      %684 = vmatprep.subr.mxu0 0.0
      %685 = vmatpush1.msra.mxu0 0.0
      %686 = vmatprep.subr.mxu0 0.0
      %687 = vmatpush1.msra.mxu0 0.0
      %688 = vmatprep.subr.mxu0 0.0
      %689 = vmatpush1.msra.mxu0 0.0
      %690 = vmatprep.subr.mxu0 0.0
      %691 = vmatpush1.msra.mxu0 0.0
      %692 = vmatprep.subr.mxu0 0.0
      %693 = vmatpush1.msra.mxu0 0.0
      %694 = vmatprep.subr.mxu0 0.0
      %695 = vmatpush1.msra.mxu0 0.0
      %696 = vmatprep.subr.mxu0 0.0
      %697 = vmatpush1.msra.mxu0 0.0
      %698 = vmatprep.subr.mxu0 0.0
      %699 = vmatpush1.msra.mxu0 0.0
      %700 = vmatprep.subr.mxu0 0.0
      %701 = vmatpush1.msra.mxu0 0.0
      %702 = vmatprep.subr.mxu0 0.0
      %703 = vmatpush1.msra.mxu0 0.0
      %704 = vmatprep.subr.mxu0 0.0
      %705 = vmatpush1.msra.mxu0 0.0
      %706 = vmatprep.subr.mxu0 0.0
      %707 = vmatpush1.msra.mxu0 0.0
      %708 = vmatprep.subr.mxu0 0.0
      %709 = vmatpush1.msra.mxu0 0.0
      %710 = vmatprep.subr.mxu0 0.0
      %711 = vmatpush1.msra.mxu0 0.0
      %712 = vmatprep.mubr.f32.mxu0 0.0
      %713 = vmatmul.mubr.f32.gmra.mrb[0].mxu0 %v643
      %v714 = vpop.f32.mrb[0].mxu0
      %v715 = vadd.f32 %v639, %v714
      %v716 = vpop.f32.mrb[0].mxu0
      %717 = vdwg.mxu0
      %718 = vrot.lane.b32.xlu0 %v558, 126
      %v719 = vpop.permute.xlu0 %718
      %s720 = scalar_lea.vmem %s3, 4
      %v721 = vld [vmem:[%s720] sm:$0x3]
      %v723 = vsel %vm564, %v721, 0
      %v726 = vsel %vm568, %v719, 0
      %728 = vmatprep.subr.mxu0 0.0
      %729 = vmatpush1.msra.mxu0 %v726
      %730 = vmatprep.subr.mxu0 0.0
      %731 = vmatpush1.msra.mxu0 0.0
      %732 = vmatprep.subr.mxu0 0.0
      %733 = vmatpush1.msra.mxu0 0.0
      %734 = vmatprep.subr.mxu0 0.0
      %735 = vmatpush1.msra.mxu0 0.0
      %736 = vmatprep.subr.mxu0 0.0
      %737 = vmatpush1.msra.mxu0 0.0
      %738 = vmatprep.subr.mxu0 0.0
      %739 = vmatpush1.msra.mxu0 0.0
      %740 = vmatprep.subr.mxu0 0.0
      %741 = vmatpush1.msra.mxu0 0.0
      %742 = vmatprep.subr.mxu0 0.0
      %743 = vmatpush1.msra.mxu0 0.0
      %744 = vmatprep.subr.mxu0 0.0
      %745 = vmatpush1.msra.mxu0 0.0
      %746 = vmatprep.subr.mxu0 0.0
      %747 = vmatpush1.msra.mxu0 0.0
      %748 = vmatprep.subr.mxu0 0.0
      %749 = vmatpush1.msra.mxu0 0.0
      %750 = vmatprep.subr.mxu0 0.0
      %751 = vmatpush1.msra.mxu0 0.0
      %752 = vmatprep.subr.mxu0 0.0
      %753 = vmatpush1.msra.mxu0 0.0
      %754 = vmatprep.subr.mxu0 0.0
      %755 = vmatpush1.msra.mxu0 0.0
      %756 = vmatprep.subr.mxu0 0.0
      %757 = vmatpush1.msra.mxu0 0.0
      %758 = vmatprep.subr.mxu0 0.0
      %759 = vmatpush1.msra.mxu0 0.0
      %760 = vmatprep.subr.mxu0 0.0
      %761 = vmatpush1.msra.mxu0 0.0
      %762 = vmatprep.subr.mxu0 0.0
      %763 = vmatpush1.msra.mxu0 0.0
      %764 = vmatprep.subr.mxu0 0.0
      %765 = vmatpush1.msra.mxu0 0.0
      %766 = vmatprep.subr.mxu0 0.0
      %767 = vmatpush1.msra.mxu0 0.0
      %768 = vmatprep.subr.mxu0 0.0
      %769 = vmatpush1.msra.mxu0 0.0
      %770 = vmatprep.subr.mxu0 0.0
      %771 = vmatpush1.msra.mxu0 0.0
      %772 = vmatprep.subr.mxu0 0.0
      %773 = vmatpush1.msra.mxu0 0.0
      %774 = vmatprep.subr.mxu0 0.0
      %775 = vmatpush1.msra.mxu0 0.0
      %776 = vmatprep.subr.mxu0 0.0
      %777 = vmatpush1.msra.mxu0 0.0
      %778 = vmatprep.subr.mxu0 0.0
      %779 = vmatpush1.msra.mxu0 0.0
      %780 = vmatprep.subr.mxu0 0.0
      %781 = vmatpush1.msra.mxu0 0.0
      %782 = vmatprep.subr.mxu0 0.0
      %783 = vmatpush1.msra.mxu0 0.0
      %784 = vmatprep.subr.mxu0 0.0
      %785 = vmatpush1.msra.mxu0 0.0
      %786 = vmatprep.subr.mxu0 0.0
      %787 = vmatpush1.msra.mxu0 0.0
      %788 = vmatprep.subr.mxu0 0.0
      %789 = vmatpush1.msra.mxu0 0.0
      %790 = vmatprep.subr.mxu0 0.0
      %791 = vmatpush1.msra.mxu0 0.0
      %792 = vmatprep.mubr.f32.mxu0 0.0
      %793 = vmatmul.mubr.f32.gmra.mrb[0].mxu0 %v723
      %v794 = vpop.f32.mrb[0].mxu0
      %v795 = vadd.f32 0.0, %v794
      %v796 = vpop.f32.mrb[0].mxu0
      %797 = vdwg.mxu0
      %v798 = vadd.f32 %v715, %v795
      %799 = vrot.lane.b32.xlu0 %v558, 125
      %v800 = vpop.permute.xlu0 %799
      %s801 = scalar_lea.vmem %s3, 6
      %v802 = vld [vmem:[%s801] sm:$0x3]
      %v804 = vsel %vm564, %v802, 0
      %v807 = vsel %vm568, %v800, 0
      %809 = vmatprep.subr.mxu0 0.0
      %810 = vmatpush1.msra.mxu0 %v807
      %811 = vmatprep.subr.mxu0 0.0
      %812 = vmatpush1.msra.mxu0 0.0
      %813 = vmatprep.subr.mxu0 0.0
      %814 = vmatpush1.msra.mxu0 0.0
      %815 = vmatprep.subr.mxu0 0.0
      %816 = vmatpush1.msra.mxu0 0.0
      %817 = vmatprep.subr.mxu0 0.0
      %818 = vmatpush1.msra.mxu0 0.0
      %819 = vmatprep.subr.mxu0 0.0
      %820 = vmatpush1.msra.mxu0 0.0
      %821 = vmatprep.subr.mxu0 0.0
      %822 = vmatpush1.msra.mxu0 0.0
      %823 = vmatprep.subr.mxu0 0.0
      %824 = vmatpush1.msra.mxu0 0.0
      %825 = vmatprep.subr.mxu0 0.0
      %826 = vmatpush1.msra.mxu0 0.0
      %827 = vmatprep.subr.mxu0 0.0
      %828 = vmatpush1.msra.mxu0 0.0
      %829 = vmatprep.subr.mxu0 0.0
      %830 = vmatpush1.msra.mxu0 0.0
      %831 = vmatprep.subr.mxu0 0.0
      %832 = vmatpush1.msra.mxu0 0.0
      %833 = vmatprep.subr.mxu0 0.0
      %834 = vmatpush1.msra.mxu0 0.0
      %835 = vmatprep.subr.mxu0 0.0
      %836 = vmatpush1.msra.mxu0 0.0
      %837 = vmatprep.subr.mxu0 0.0
      %838 = vmatpush1.msra.mxu0 0.0
      %839 = vmatprep.subr.mxu0 0.0
      %840 = vmatpush1.msra.mxu0 0.0
      %841 = vmatprep.subr.mxu0 0.0
      %842 = vmatpush1.msra.mxu0 0.0
      %843 = vmatprep.subr.mxu0 0.0
      %844 = vmatpush1.msra.mxu0 0.0
      %845 = vmatprep.subr.mxu0 0.0
      %846 = vmatpush1.msra.mxu0 0.0
      %847 = vmatprep.subr.mxu0 0.0
      %848 = vmatpush1.msra.mxu0 0.0
      %849 = vmatprep.subr.mxu0 0.0
      %850 = vmatpush1.msra.mxu0 0.0
      %851 = vmatprep.subr.mxu0 0.0
      %852 = vmatpush1.msra.mxu0 0.0
      %853 = vmatprep.subr.mxu0 0.0
      %854 = vmatpush1.msra.mxu0 0.0
      %855 = vmatprep.subr.mxu0 0.0
      %856 = vmatpush1.msra.mxu0 0.0
      %857 = vmatprep.subr.mxu0 0.0
      %858 = vmatpush1.msra.mxu0 0.0
      %859 = vmatprep.subr.mxu0 0.0
      %860 = vmatpush1.msra.mxu0 0.0
      %861 = vmatprep.subr.mxu0 0.0
      %862 = vmatpush1.msra.mxu0 0.0
      %863 = vmatprep.subr.mxu0 0.0
      %864 = vmatpush1.msra.mxu0 0.0
      %865 = vmatprep.subr.mxu0 0.0
      %866 = vmatpush1.msra.mxu0 0.0
      %867 = vmatprep.subr.mxu0 0.0
      %868 = vmatpush1.msra.mxu0 0.0
      %869 = vmatprep.subr.mxu0 0.0
      %870 = vmatpush1.msra.mxu0 0.0
      %871 = vmatprep.subr.mxu0 0.0
      %872 = vmatpush1.msra.mxu0 0.0
      %873 = vmatprep.mubr.f32.mxu0 0.0
      %874 = vmatmul.mubr.f32.gmra.mrb[0].mxu0 %v804
      %v875 = vpop.f32.mrb[0].mxu0
      %v876 = vadd.f32 0.0, %v875
      %v877 = vpop.f32.mrb[0].mxu0
      %878 = vdwg.mxu0
      %v879 = vadd.f32 %v798, %v876
      %880 = vrot.lane.b32.xlu0 %v558, 124
      %v881 = vpop.permute.xlu0 %880
      %s882 = scalar_lea.vmem %s3, 8
      %v883 = vld [vmem:[%s882] sm:$0x3]
      %v885 = vsel %vm564, %v883, 0
      %v888 = vsel %vm568, %v881, 0
      %890 = vmatprep.subr.mxu0 0.0
      %891 = vmatpush1.msra.mxu0 %v888
      %892 = vmatprep.subr.mxu0 0.0
      %893 = vmatpush1.msra.mxu0 0.0
      %894 = vmatprep.subr.mxu0 0.0
      %895 = vmatpush1.msra.mxu0 0.0
      %896 = vmatprep.subr.mxu0 0.0
      %897 = vmatpush1.msra.mxu0 0.0
      %898 = vmatprep.subr.mxu0 0.0
      %899 = vmatpush1.msra.mxu0 0.0
      %900 = vmatprep.subr.mxu0 0.0
      %901 = vmatpush1.msra.mxu0 0.0
      %902 = vmatprep.subr.mxu0 0.0
      %903 = vmatpush1.msra.mxu0 0.0
      %904 = vmatprep.subr.mxu0 0.0
      %905 = vmatpush1.msra.mxu0 0.0
      %906 = vmatprep.subr.mxu0 0.0
      %907 = vmatpush1.msra.mxu0 0.0
      %908 = vmatprep.subr.mxu0 0.0
      %909 = vmatpush1.msra.mxu0 0.0
      %910 = vmatprep.subr.mxu0 0.0
      %911 = vmatpush1.msra.mxu0 0.0
      %912 = vmatprep.subr.mxu0 0.0
      %913 = vmatpush1.msra.mxu0 0.0
      %914 = vmatprep.subr.mxu0 0.0
      %915 = vmatpush1.msra.mxu0 0.0
      %916 = vmatprep.subr.mxu0 0.0
      %917 = vmatpush1.msra.mxu0 0.0
      %918 = vmatprep.subr.mxu0 0.0
      %919 = vmatpush1.msra.mxu0 0.0
      %920 = vmatprep.subr.mxu0 0.0
      %921 = vmatpush1.msra.mxu0 0.0
      %922 = vmatprep.subr.mxu0 0.0
      %923 = vmatpush1.msra.mxu0 0.0
      %924 = vmatprep.subr.mxu0 0.0
      %925 = vmatpush1.msra.mxu0 0.0
      %926 = vmatprep.subr.mxu0 0.0
      %927 = vmatpush1.msra.mxu0 0.0
      %928 = vmatprep.subr.mxu0 0.0
      %929 = vmatpush1.msra.mxu0 0.0
      %930 = vmatprep.subr.mxu0 0.0
      %931 = vmatpush1.msra.mxu0 0.0
      %932 = vmatprep.subr.mxu0 0.0
      %933 = vmatpush1.msra.mxu0 0.0
      %934 = vmatprep.subr.mxu0 0.0
      %935 = vmatpush1.msra.mxu0 0.0
      %936 = vmatprep.subr.mxu0 0.0
      %937 = vmatpush1.msra.mxu0 0.0
      %938 = vmatprep.subr.mxu0 0.0
      %939 = vmatpush1.msra.mxu0 0.0
      %940 = vmatprep.subr.mxu0 0.0
      %941 = vmatpush1.msra.mxu0 0.0
      %942 = vmatprep.subr.mxu0 0.0
      %943 = vmatpush1.msra.mxu0 0.0
      %944 = vmatprep.subr.mxu0 0.0
      %945 = vmatpush1.msra.mxu0 0.0
      %946 = vmatprep.subr.mxu0 0.0
      %947 = vmatpush1.msra.mxu0 0.0
      %948 = vmatprep.subr.mxu0 0.0
      %949 = vmatpush1.msra.mxu0 0.0
      %950 = vmatprep.subr.mxu0 0.0
      %951 = vmatpush1.msra.mxu0 0.0
      %952 = vmatprep.subr.mxu0 0.0
      %953 = vmatpush1.msra.mxu0 0.0
      %954 = vmatprep.mubr.f32.mxu0 0.0
      %955 = vmatmul.mubr.f32.gmra.mrb[0].mxu0 %v885
      %v956 = vpop.f32.mrb[0].mxu0
      %v957 = vadd.f32 0.0, %v956
      %v958 = vpop.f32.mrb[0].mxu0
      %959 = vdwg.mxu0
      %v960 = vadd.f32 %v879, %v957
      %961 = vrot.lane.b32.xlu0 %v558, 123
      %v962 = vpop.permute.xlu0 %961
      %s963 = scalar_lea.vmem %s3, 10
      %v964 = vld [vmem:[%s963] sm:$0x3]
      %v966 = vsel %vm564, %v964, 0
      %v969 = vsel %vm568, %v962, 0
      %971 = vmatprep.subr.mxu0 0.0
      %972 = vmatpush1.msra.mxu0 %v969
      %973 = vmatprep.subr.mxu0 0.0
      %974 = vmatpush1.msra.mxu0 0.0
      %975 = vmatprep.subr.mxu0 0.0
      %976 = vmatpush1.msra.mxu0 0.0
      %977 = vmatprep.subr.mxu0 0.0
      %978 = vmatpush1.msra.mxu0 0.0
      %979 = vmatprep.subr.mxu0 0.0
      %980 = vmatpush1.msra.mxu0 0.0
      %981 = vmatprep.subr.mxu0 0.0
      %982 = vmatpush1.msra.mxu0 0.0
      %983 = vmatprep.subr.mxu0 0.0
      %984 = vmatpush1.msra.mxu0 0.0
      %985 = vmatprep.subr.mxu0 0.0
      %986 = vmatpush1.msra.mxu0 0.0
      %987 = vmatprep.subr.mxu0 0.0
      %988 = vmatpush1.msra.mxu0 0.0
      %989 = vmatprep.subr.mxu0 0.0
      %990 = vmatpush1.msra.mxu0 0.0
      %991 = vmatprep.subr.mxu0 0.0
      %992 = vmatpush1.msra.mxu0 0.0
      %993 = vmatprep.subr.mxu0 0.0
      %994 = vmatpush1.msra.mxu0 0.0
      %995 = vmatprep.subr.mxu0 0.0
      %996 = vmatpush1.msra.mxu0 0.0
      %997 = vmatprep.subr.mxu0 0.0
      %998 = vmatpush1.msra.mxu0 0.0
      %999 = vmatprep.subr.mxu0 0.0
      %1000 = vmatpush1.msra.mxu0 0.0
      %1001 = vmatprep.subr.mxu0 0.0
      %1002 = vmatpush1.msra.mxu0 0.0
      %1003 = vmatprep.subr.mxu0 0.0
      %1004 = vmatpush1.msra.mxu0 0.0
      %1005 = vmatprep.subr.mxu0 0.0
      %1006 = vmatpush1.msra.mxu0 0.0
      %1007 = vmatprep.subr.mxu0 0.0
      %1008 = vmatpush1.msra.mxu0 0.0
      %1009 = vmatprep.subr.mxu0 0.0
      %1010 = vmatpush1.msra.mxu0 0.0
      %1011 = vmatprep.subr.mxu0 0.0
      %1012 = vmatpush1.msra.mxu0 0.0
      %1013 = vmatprep.subr.mxu0 0.0
      %1014 = vmatpush1.msra.mxu0 0.0
      %1015 = vmatprep.subr.mxu0 0.0
      %1016 = vmatpush1.msra.mxu0 0.0
      %1017 = vmatprep.subr.mxu0 0.0
      %1018 = vmatpush1.msra.mxu0 0.0
      %1019 = vmatprep.subr.mxu0 0.0
      %1020 = vmatpush1.msra.mxu0 0.0
      %1021 = vmatprep.subr.mxu0 0.0
      %1022 = vmatpush1.msra.mxu0 0.0
      %1023 = vmatprep.subr.mxu0 0.0
      %1024 = vmatpush1.msra.mxu0 0.0
      %1025 = vmatprep.subr.mxu0 0.0
      %1026 = vmatpush1.msra.mxu0 0.0
      %1027 = vmatprep.subr.mxu0 0.0
      %1028 = vmatpush1.msra.mxu0 0.0
      %1029 = vmatprep.subr.mxu0 0.0
      %1030 = vmatpush1.msra.mxu0 0.0
      %1031 = vmatprep.subr.mxu0 0.0
      %1032 = vmatpush1.msra.mxu0 0.0
      %1033 = vmatprep.subr.mxu0 0.0
      %1034 = vmatpush1.msra.mxu0 0.0
      %1035 = vmatprep.mubr.f32.mxu0 0.0
      %1036 = vmatmul.mubr.f32.gmra.mrb[0].mxu0 %v966
      %v1037 = vpop.f32.mrb[0].mxu0
      %v1038 = vadd.f32 0.0, %v1037
      %v1039 = vpop.f32.mrb[0].mxu0
      %1040 = vdwg.mxu0
      %v1041 = vadd.f32 %v960, %v1038
      %1042 = vrot.lane.b32.xlu0 %v558, 122
      %v1043 = vpop.permute.xlu0 %1042
      %s1044 = scalar_lea.vmem %s3, 12
      %v1045 = vld [vmem:[%s1044] sm:$0x3]
      %v1047 = vsel %vm564, %v1045, 0
      %v1050 = vsel %vm568, %v1043, 0
      %1052 = vmatprep.subr.mxu0 0.0
      %1053 = vmatpush1.msra.mxu0 %v1050
      %1054 = vmatprep.subr.mxu0 0.0
      %1055 = vmatpush1.msra.mxu0 0.0
      %1056 = vmatprep.subr.mxu0 0.0
      %1057 = vmatpush1.msra.mxu0 0.0
      %1058 = vmatprep.subr.mxu0 0.0
      %1059 = vmatpush1.msra.mxu0 0.0
      %1060 = vmatprep.subr.mxu0 0.0
      %1061 = vmatpush1.msra.mxu0 0.0
      %1062 = vmatprep.subr.mxu0 0.0
      %1063 = vmatpush1.msra.mxu0 0.0
      %1064 = vmatprep.subr.mxu0 0.0
      %1065 = vmatpush1.msra.mxu0 0.0
      %1066 = vmatprep.subr.mxu0 0.0
      %1067 = vmatpush1.msra.mxu0 0.0
      %1068 = vmatprep.subr.mxu0 0.0
      %1069 = vmatpush1.msra.mxu0 0.0
      %1070 = vmatprep.subr.mxu0 0.0
      %1071 = vmatpush1.msra.mxu0 0.0
      %1072 = vmatprep.subr.mxu0 0.0
      %1073 = vmatpush1.msra.mxu0 0.0
      %1074 = vmatprep.subr.mxu0 0.0
      %1075 = vmatpush1.msra.mxu0 0.0
      %1076 = vmatprep.subr.mxu0 0.0
      %1077 = vmatpush1.msra.mxu0 0.0
      %1078 = vmatprep.subr.mxu0 0.0
      %1079 = vmatpush1.msra.mxu0 0.0
      %1080 = vmatprep.subr.mxu0 0.0
      %1081 = vmatpush1.msra.mxu0 0.0
      %1082 = vmatprep.subr.mxu0 0.0
      %1083 = vmatpush1.msra.mxu0 0.0
      %1084 = vmatprep.subr.mxu0 0.0
      %1085 = vmatpush1.msra.mxu0 0.0
      %1086 = vmatprep.subr.mxu0 0.0
      %1087 = vmatpush1.msra.mxu0 0.0
      %1088 = vmatprep.subr.mxu0 0.0
      %1089 = vmatpush1.msra.mxu0 0.0
      %1090 = vmatprep.subr.mxu0 0.0
      %1091 = vmatpush1.msra.mxu0 0.0
      %1092 = vmatprep.subr.mxu0 0.0
      %1093 = vmatpush1.msra.mxu0 0.0
      %1094 = vmatprep.subr.mxu0 0.0
      %1095 = vmatpush1.msra.mxu0 0.0
      %1096 = vmatprep.subr.mxu0 0.0
      %1097 = vmatpush1.msra.mxu0 0.0
      %1098 = vmatprep.subr.mxu0 0.0
      %1099 = vmatpush1.msra.mxu0 0.0
      %1100 = vmatprep.subr.mxu0 0.0
      %1101 = vmatpush1.msra.mxu0 0.0
      %1102 = vmatprep.subr.mxu0 0.0
      %1103 = vmatpush1.msra.mxu0 0.0
      %1104 = vmatprep.subr.mxu0 0.0
      %1105 = vmatpush1.msra.mxu0 0.0
      %1106 = vmatprep.subr.mxu0 0.0
      %1107 = vmatpush1.msra.mxu0 0.0
      %1108 = vmatprep.subr.mxu0 0.0
      %1109 = vmatpush1.msra.mxu0 0.0
      %1110 = vmatprep.subr.mxu0 0.0
      %1111 = vmatpush1.msra.mxu0 0.0
      %1112 = vmatprep.subr.mxu0 0.0
      %1113 = vmatpush1.msra.mxu0 0.0
      %1114 = vmatprep.subr.mxu0 0.0
      %1115 = vmatpush1.msra.mxu0 0.0
      %1116 = vmatprep.mubr.f32.mxu0 0.0
      %1117 = vmatmul.mubr.f32.gmra.mrb[0].mxu0 %v1047
      %v1118 = vpop.f32.mrb[0].mxu0
      %v1119 = vadd.f32 0.0, %v1118
      %v1120 = vpop.f32.mrb[0].mxu0
      %1121 = vdwg.mxu0
      %v1122 = vadd.f32 %v1041, %v1119
      %1123 = vrot.lane.b32.xlu0 %v558, 121
      %v1124 = vpop.permute.xlu0 %1123
      %s1125 = scalar_lea.vmem %s3, 14
      %v1126 = vld [vmem:[%s1125] sm:$0x3]
      %v1128 = vsel %vm564, %v1126, 0
      %v1131 = vsel %vm568, %v1124, 0
      %1133 = vmatprep.subr.mxu0 0.0
      %1134 = vmatpush1.msra.mxu0 %v1131
      %1135 = vmatprep.subr.mxu0 0.0
      %1136 = vmatpush1.msra.mxu0 0.0
      %1137 = vmatprep.subr.mxu0 0.0
      %1138 = vmatpush1.msra.mxu0 0.0
      %1139 = vmatprep.subr.mxu0 0.0
      %1140 = vmatpush1.msra.mxu0 0.0
      %1141 = vmatprep.subr.mxu0 0.0
      %1142 = vmatpush1.msra.mxu0 0.0
      %1143 = vmatprep.subr.mxu0 0.0
      %1144 = vmatpush1.msra.mxu0 0.0
      %1145 = vmatprep.subr.mxu0 0.0
      %1146 = vmatpush1.msra.mxu0 0.0
      %1147 = vmatprep.subr.mxu0 0.0
      %1148 = vmatpush1.msra.mxu0 0.0
      %1149 = vmatprep.subr.mxu0 0.0
      %1150 = vmatpush1.msra.mxu0 0.0
      %1151 = vmatprep.subr.mxu0 0.0
      %1152 = vmatpush1.msra.mxu0 0.0
      %1153 = vmatprep.subr.mxu0 0.0
      %1154 = vmatpush1.msra.mxu0 0.0
      %1155 = vmatprep.subr.mxu0 0.0
      %1156 = vmatpush1.msra.mxu0 0.0
      %1157 = vmatprep.subr.mxu0 0.0
      %1158 = vmatpush1.msra.mxu0 0.0
      %1159 = vmatprep.subr.mxu0 0.0
      %1160 = vmatpush1.msra.mxu0 0.0
      %1161 = vmatprep.subr.mxu0 0.0
      %1162 = vmatpush1.msra.mxu0 0.0
      %1163 = vmatprep.subr.mxu0 0.0
      %1164 = vmatpush1.msra.mxu0 0.0
      %1165 = vmatprep.subr.mxu0 0.0
      %1166 = vmatpush1.msra.mxu0 0.0
      %1167 = vmatprep.subr.mxu0 0.0
      %1168 = vmatpush1.msra.mxu0 0.0
      %1169 = vmatprep.subr.mxu0 0.0
      %1170 = vmatpush1.msra.mxu0 0.0
      %1171 = vmatprep.subr.mxu0 0.0
      %1172 = vmatpush1.msra.mxu0 0.0
      %1173 = vmatprep.subr.mxu0 0.0
      %1174 = vmatpush1.msra.mxu0 0.0
      %1175 = vmatprep.subr.mxu0 0.0
      %1176 = vmatpush1.msra.mxu0 0.0
      %1177 = vmatprep.subr.mxu0 0.0
      %1178 = vmatpush1.msra.mxu0 0.0
      %1179 = vmatprep.subr.mxu0 0.0
      %1180 = vmatpush1.msra.mxu0 0.0
      %1181 = vmatprep.subr.mxu0 0.0
      %1182 = vmatpush1.msra.mxu0 0.0
      %1183 = vmatprep.subr.mxu0 0.0
      %1184 = vmatpush1.msra.mxu0 0.0
      %1185 = vmatprep.subr.mxu0 0.0
      %1186 = vmatpush1.msra.mxu0 0.0
      %1187 = vmatprep.subr.mxu0 0.0
      %1188 = vmatpush1.msra.mxu0 0.0
      %1189 = vmatprep.subr.mxu0 0.0
      %1190 = vmatpush1.msra.mxu0 0.0
      %1191 = vmatprep.subr.mxu0 0.0
      %1192 = vmatpush1.msra.mxu0 0.0
      %1193 = vmatprep.subr.mxu0 0.0
      %1194 = vmatpush1.msra.mxu0 0.0
      %1195 = vmatprep.subr.mxu0 0.0
      %1196 = vmatpush1.msra.mxu0 0.0
      %1197 = vmatprep.mubr.f32.mxu0 0.0
      %1198 = vmatmul.mubr.f32.gmra.mrb[0].mxu0 %v1128
      %v1199 = vpop.f32.mrb[0].mxu0
      %v1200 = vadd.f32 0.0, %v1199
      %v1201 = vpop.f32.mrb[0].mxu0
      %1202 = vdwg.mxu0
      %v1203 = vadd.f32 %v1122, %v1200
      %1204 = vrot.lane.b32.xlu0 %v558, 120
      %v1205 = vpop.permute.xlu0 %1204
      %s1206 = scalar_lea.vmem %s3, 16
      %v1207 = vld [vmem:[%s1206] sm:$0x3]
      %v1209 = vsel %vm564, %v1207, 0
      %v1212 = vsel %vm568, %v1205, 0
      %1214 = vmatprep.subr.mxu0 0.0
      %1215 = vmatpush1.msra.mxu0 %v1212
      %1216 = vmatprep.subr.mxu0 0.0
      %1217 = vmatpush1.msra.mxu0 0.0
      %1218 = vmatprep.subr.mxu0 0.0
      %1219 = vmatpush1.msra.mxu0 0.0
      %1220 = vmatprep.subr.mxu0 0.0
      %1221 = vmatpush1.msra.mxu0 0.0
      %1222 = vmatprep.subr.mxu0 0.0
      %1223 = vmatpush1.msra.mxu0 0.0
      %1224 = vmatprep.subr.mxu0 0.0
      %1225 = vmatpush1.msra.mxu0 0.0
      %1226 = vmatprep.subr.mxu0 0.0
      %1227 = vmatpush1.msra.mxu0 0.0
      %1228 = vmatprep.subr.mxu0 0.0
      %1229 = vmatpush1.msra.mxu0 0.0
      %1230 = vmatprep.subr.mxu0 0.0
      %1231 = vmatpush1.msra.mxu0 0.0
      %1232 = vmatprep.subr.mxu0 0.0
      %1233 = vmatpush1.msra.mxu0 0.0
      %1234 = vmatprep.subr.mxu0 0.0
      %1235 = vmatpush1.msra.mxu0 0.0
      %1236 = vmatprep.subr.mxu0 0.0
      %1237 = vmatpush1.msra.mxu0 0.0
      %1238 = vmatprep.subr.mxu0 0.0
      %1239 = vmatpush1.msra.mxu0 0.0
      %1240 = vmatprep.subr.mxu0 0.0
      %1241 = vmatpush1.msra.mxu0 0.0
      %1242 = vmatprep.subr.mxu0 0.0
      %1243 = vmatpush1.msra.mxu0 0.0
      %1244 = vmatprep.subr.mxu0 0.0
      %1245 = vmatpush1.msra.mxu0 0.0
      %1246 = vmatprep.subr.mxu0 0.0
      %1247 = vmatpush1.msra.mxu0 0.0
      %1248 = vmatprep.subr.mxu0 0.0
      %1249 = vmatpush1.msra.mxu0 0.0
      %1250 = vmatprep.subr.mxu0 0.0
      %1251 = vmatpush1.msra.mxu0 0.0
      %1252 = vmatprep.subr.mxu0 0.0
      %1253 = vmatpush1.msra.mxu0 0.0
      %1254 = vmatprep.subr.mxu0 0.0
      %1255 = vmatpush1.msra.mxu0 0.0
      %1256 = vmatprep.subr.mxu0 0.0
      %1257 = vmatpush1.msra.mxu0 0.0
      %1258 = vmatprep.subr.mxu0 0.0
      %1259 = vmatpush1.msra.mxu0 0.0
      %1260 = vmatprep.subr.mxu0 0.0
      %1261 = vmatpush1.msra.mxu0 0.0
      %1262 = vmatprep.subr.mxu0 0.0
      %1263 = vmatpush1.msra.mxu0 0.0
      %1264 = vmatprep.subr.mxu0 0.0
      %1265 = vmatpush1.msra.mxu0 0.0
      %1266 = vmatprep.subr.mxu0 0.0
      %1267 = vmatpush1.msra.mxu0 0.0
      %1268 = vmatprep.subr.mxu0 0.0
      %1269 = vmatpush1.msra.mxu0 0.0
      %1270 = vmatprep.subr.mxu0 0.0
      %1271 = vmatpush1.msra.mxu0 0.0
      %1272 = vmatprep.subr.mxu0 0.0
      %1273 = vmatpush1.msra.mxu0 0.0
      %1274 = vmatprep.subr.mxu0 0.0
      %1275 = vmatpush1.msra.mxu0 0.0
      %1276 = vmatprep.subr.mxu0 0.0
      %1277 = vmatpush1.msra.mxu0 0.0
      %1278 = vmatprep.mubr.f32.mxu0 0.0
      %1279 = vmatmul.mubr.f32.gmra.mrb[0].mxu0 %v1209
      %v1280 = vpop.f32.mrb[0].mxu0
      %v1281 = vadd.f32 0.0, %v1280
      %v1282 = vpop.f32.mrb[0].mxu0
      %1283 = vdwg.mxu0
      %v1284 = vadd.f32 %v1203, %v1281
      %v1285 = vld [vmem:[%s2 + $0x9] sm:$0x1]
      %v1286 = vlaneseq
      %v1287 = vshrl.u32 %v1286, 7
      %v1288 = vsub.s32 0, %v1287
      %v1289 = vrot.slane %v1285, %v1288
      %v1290 = vmul.f32 %v1284, %v1289
      %v1291 = vtanh.pop %v1290
      %v1293 = vrot.slane %v1291, 1
      %1295 = vrot.lane.b32.xlu0 %v1293, 16
      %v1296 = vpop.permute.xlu0 %1295
      %v1297 = vld [vmem:[%s554] sm:$0x1]
      %v1298 = vadd.f32 %v1297, %v1291
      %v1299 = vadd.f32 %v1298, %v1296
      %1300 = vrot.lane.b32.xlu0 %v1299, 17
      %v1301 = vpop.permute.xlu0 %1300
      %v1302 = vld [vmem:[%s2] sm:$0x1]
      %v1303 = vmul.f32 %v1301, %v1302
      %v1304 = vld [vmem:[%s4] sm:$0xf]
      %1306 = vset.pattern.permute.xlu0 0
      %1307 = vperm.xlu0 %1306, %v1304
      %v1308 = vpop.permute.xlu0 %1307
      %v1310 = vlaneseq
      %v1311 = vshrl.u32 %v1310, 7
      %v1312 = vsub.s32 0, %v1311
      %v1313 = vrot.slane %v1303, %v1312
      %v1314 = vmul.f32 %v1308, %v1313
      %1315 = vrot.lane.b32.xlu0 %v1299, 16
      %v1316 = vpop.permute.xlu0 %1315
      %v1317 = vld [vmem:[%s2 + $0x1] sm:$0x1]
      %v1318 = vmul.f32 %v1316, %v1317
      %s1319 = scalar_lea.vmem %s4, 4
      %v1320 = vld [vmem:[%s1319] sm:$0xf]
      %1322 = vset.pattern.permute.xlu0 0
      %1323 = vperm.xlu0 %1322, %v1320
      %v1324 = vpop.permute.xlu0 %1323
      %v1326 = vlaneseq
      %v1327 = vshrl.u32 %v1326, 7
      %v1328 = vsub.s32 0, %v1327
      %v1329 = vrot.slane %v1318, %v1328
      %v1330 = vmul.f32 %v1324, %v1329
      %v1331 = vadd.f32 %v1314, %v1330
      %1332 = vrot.lane.b32.xlu0 %v1299, 15
      %v1333 = vpop.permute.xlu0 %1332
      %v1334 = vld [vmem:[%s2 + $0x2] sm:$0x1]
      %v1335 = vmul.f32 %v1333, %v1334
      %s1336 = scalar_lea.vmem %s4, 8
      %v1337 = vld [vmem:[%s1336] sm:$0xf]
      %1339 = vset.pattern.permute.xlu0 0
      %1340 = vperm.xlu0 %1339, %v1337
      %v1341 = vpop.permute.xlu0 %1340
      %v1343 = vlaneseq
      %v1344 = vshrl.u32 %v1343, 7
      %v1345 = vsub.s32 0, %v1344
      %v1346 = vrot.slane %v1335, %v1345
      %v1347 = vmul.f32 %v1341, %v1346
      %v1348 = vadd.f32 %v1331, %v1347
      %1349 = vrot.lane.b32.xlu0 %v1299, 1
      %v1350 = vpop.permute.xlu0 %1349
      %v1351 = vld [vmem:[%s2 + $0x3] sm:$0x1]
      %v1352 = vmul.f32 %v1350, %v1351
      %s1353 = scalar_lea.vmem %s4, 12
      %v1354 = vld [vmem:[%s1353] sm:$0xf]
      %1356 = vset.pattern.permute.xlu0 0
      %1357 = vperm.xlu0 %1356, %v1354
      %v1358 = vpop.permute.xlu0 %1357
      %v1360 = vlaneseq
      %v1361 = vshrl.u32 %v1360, 7
      %v1362 = vsub.s32 0, %v1361
      %v1363 = vrot.slane %v1352, %v1362
      %v1364 = vmul.f32 %v1358, %v1363
      %v1365 = vadd.f32 %v1348, %v1364
      %v1366 = vld [vmem:[%s2 + $0x4] sm:$0x1]
      %v1367 = vmul.f32 %v1299, %v1366
      %s1368 = scalar_lea.vmem %s4, 16
      %v1369 = vld [vmem:[%s1368] sm:$0xf]
      %1371 = vset.pattern.permute.xlu0 0
      %1372 = vperm.xlu0 %1371, %v1369
      %v1373 = vpop.permute.xlu0 %1372
      %v1376 = vlaneseq
      %v1377 = vshrl.u32 %v1376, 7
      %v1378 = vsub.s32 0, %v1377
      %v1379 = vrot.slane %v1367, %v1378
      %v1381 = vmul.f32 %v1373, %v1379
      %v1382 = vadd.f32 %v1365, %v1381
      %1383 = vrot.lane.b32.xlu0 %v1299, 127
      %v1384 = vpop.permute.xlu0 %1383
      %v1385 = vld [vmem:[%s2 + $0x5] sm:$0x1]
      %v1386 = vmul.f32 %v1384, %v1385
      %s1387 = scalar_lea.vmem %s4, 20
      %v1388 = vld [vmem:[%s1387] sm:$0xf]
      %1390 = vset.pattern.permute.xlu0 0
      %1391 = vperm.xlu0 %1390, %v1388
      %v1392 = vpop.permute.xlu0 %1391
      %v1394 = vlaneseq
      %v1395 = vshrl.u32 %v1394, 7
      %v1396 = vsub.s32 0, %v1395
      %v1397 = vrot.slane %v1386, %v1396
      %v1398 = vmul.f32 %v1392, %v1397
      %v1399 = vadd.f32 %v1382, %v1398
      %1400 = vrot.lane.b32.xlu0 %v1299, 113
      %v1401 = vpop.permute.xlu0 %1400
      %v1402 = vld [vmem:[%s2 + $0x6] sm:$0x1]
      %v1403 = vmul.f32 %v1401, %v1402
      %s1404 = scalar_lea.vmem %s4, 24
      %v1405 = vld [vmem:[%s1404] sm:$0xf]
      %1407 = vset.pattern.permute.xlu0 0
      %1408 = vperm.xlu0 %1407, %v1405
      %v1409 = vpop.permute.xlu0 %1408
      %v1411 = vlaneseq
      %v1412 = vshrl.u32 %v1411, 7
      %v1413 = vsub.s32 0, %v1412
      %v1414 = vrot.slane %v1403, %v1413
      %v1415 = vmul.f32 %v1409, %v1414
      %v1416 = vadd.f32 %v1399, %v1415
      %1417 = vrot.lane.b32.xlu0 %v1299, 112
      %v1418 = vpop.permute.xlu0 %1417
      %v1419 = vld [vmem:[%s2 + $0x7] sm:$0x1]
      %v1420 = vmul.f32 %v1418, %v1419
      %s1421 = scalar_lea.vmem %s4, 28
      %v1422 = vld [vmem:[%s1421] sm:$0xf]
      %1424 = vset.pattern.permute.xlu0 0
      %1425 = vperm.xlu0 %1424, %v1422
      %v1426 = vpop.permute.xlu0 %1425
      %v1428 = vlaneseq
      %v1429 = vshrl.u32 %v1428, 7
      %v1430 = vsub.s32 0, %v1429
      %v1431 = vrot.slane %v1420, %v1430
      %v1432 = vmul.f32 %v1426, %v1431
      %v1433 = vadd.f32 %v1416, %v1432
      %1434 = vrot.lane.b32.xlu0 %v1299, 111
      %v1435 = vpop.permute.xlu0 %1434
      %v1436 = vld [vmem:[%s2 + $0x8] sm:$0x1]
      %v1437 = vmul.f32 %v1435, %v1436
      %s1438 = scalar_lea.vmem %s4, 32
      %v1439 = vld [vmem:[%s1438] sm:$0xf]
      %1441 = vset.pattern.permute.xlu0 0
      %1442 = vperm.xlu0 %1441, %v1439
      %v1443 = vpop.permute.xlu0 %1442
      %v1445 = vlaneseq
      %v1446 = vshrl.u32 %v1445, 7
      %v1447 = vsub.s32 0, %v1446
      %v1448 = vrot.slane %v1437, %v1447
      %v1449 = vmul.f32 %v1443, %v1448
      %v1450 = vadd.f32 %v1433, %v1449
      %v1451 = vld [vmem:[%s5] sm:$0xf]
      %1453 = vset.pattern.permute.xlu0 0
      %1454 = vperm.xlu0 %1453, %v1451
      %v1455 = vpop.permute.xlu0 %1454
      %v1457 = vmul.f32 %v1450, %v1455
      %v1458 = vld [vmem:[%s6] sm:$0xf]
      %1460 = vset.pattern.permute.xlu0 0
      %1461 = vperm.xlu0 %1460, %v1458
      %v1462 = vpop.permute.xlu0 %1461
      %v1464 = vadd.f32 %v1457, %v1462
      %v1465 = vtanh.pop %v1464
      %1466 = vrot.lane.b32.xlu0 %v1465, 17
      %v1467 = vpop.permute.xlu0 %1466
      %v1468 = vlaneseq
      %v1469 = vshrl.u32 %v1468, 7
      %v1470 = vsub.s32 0, %v1469
      %v1471 = vrot.slane %v1302, %v1470
      %v1472 = vmul.f32 %v1467, %v1471
      %v1473 = vld [vmem:[%s7] sm:$0xff]
      %v1474 = vld [vmem:[%s7 + $0x8] sm:$0xff]
      %1475 = vrot.lane.b32.xlu0 %v1465, 16
      %v1476 = vpop.permute.xlu0 %1475
      %v1477 = vlaneseq
      %v1478 = vshrl.u32 %v1477, 7
      %v1479 = vsub.s32 0, %v1478
      %v1480 = vrot.slane %v1317, %v1479
      %v1481 = vmul.f32 %v1476, %v1480
      %s1482 = scalar_lea.vmem %s7, 16
      %v1483 = vld [vmem:[%s1482] sm:$0xff]
      %v1484 = vld [vmem:[%s1482 + $0x8] sm:$0xff]
      %vm1485 = vcmask 31744
      %v1487 = vsel %vm1485, %v1483, 0
      %v1490 = vsel %vm1485, %v1484, 0
      %vm1492 = vcmask 1043456
      %v1494 = vsel %vm1492, %v1481, 0
      %1496 = vmatprep.subr.mxu0 0.0
      %1497 = vmatpush1.msra.mxu0 %v1494
      %1498 = vmatprep.subr.mxu0 0.0
      %1499 = vmatpush1.msra.mxu0 0.0
      %1500 = vmatprep.subr.mxu0 0.0
      %1501 = vmatpush1.msra.mxu0 0.0
      %1502 = vmatprep.subr.mxu0 0.0
      %1503 = vmatpush1.msra.mxu0 0.0
      %1504 = vmatprep.subr.mxu0 0.0
      %1505 = vmatpush1.msra.mxu0 0.0
      %1506 = vmatprep.subr.mxu0 0.0
      %1507 = vmatpush1.msra.mxu0 0.0
      %1508 = vmatprep.subr.mxu0 0.0
      %1509 = vmatpush1.msra.mxu0 0.0
      %1510 = vmatprep.subr.mxu0 0.0
      %1511 = vmatpush1.msra.mxu0 0.0
      %1512 = vmatprep.subr.mxu0 0.0
      %1513 = vmatpush1.msra.mxu0 0.0
      %1514 = vmatprep.subr.mxu0 0.0
      %1515 = vmatpush1.msra.mxu0 0.0
      %1516 = vmatprep.subr.mxu0 0.0
      %1517 = vmatpush1.msra.mxu0 0.0
      %1518 = vmatprep.subr.mxu0 0.0
      %1519 = vmatpush1.msra.mxu0 0.0
      %1520 = vmatprep.subr.mxu0 0.0
      %1521 = vmatpush1.msra.mxu0 0.0
      %1522 = vmatprep.subr.mxu0 0.0
      %1523 = vmatpush1.msra.mxu0 0.0
      %1524 = vmatprep.subr.mxu0 0.0
      %1525 = vmatpush1.msra.mxu0 0.0
      %1526 = vmatprep.subr.mxu0 0.0
      %1527 = vmatpush1.msra.mxu0 0.0
      %1528 = vmatprep.subr.mxu0 0.0
      %1529 = vmatpush1.msra.mxu0 0.0
      %1530 = vmatprep.subr.mxu0 0.0
      %1531 = vmatpush1.msra.mxu0 0.0
      %1532 = vmatprep.subr.mxu0 0.0
      %1533 = vmatpush1.msra.mxu0 0.0
      %1534 = vmatprep.subr.mxu0 0.0
      %1535 = vmatpush1.msra.mxu0 0.0
      %1536 = vmatprep.subr.mxu0 0.0
      %1537 = vmatpush1.msra.mxu0 0.0
      %1538 = vmatprep.subr.mxu0 0.0
      %1539 = vmatpush1.msra.mxu0 0.0
      %1540 = vmatprep.subr.mxu0 0.0
      %1541 = vmatpush1.msra.mxu0 0.0
      %1542 = vmatprep.subr.mxu0 0.0
      %1543 = vmatpush1.msra.mxu0 0.0
      %1544 = vmatprep.subr.mxu0 0.0
      %1545 = vmatpush1.msra.mxu0 0.0
      %1546 = vmatprep.subr.mxu0 0.0
      %1547 = vmatpush1.msra.mxu0 0.0
      %1548 = vmatprep.subr.mxu0 0.0
      %1549 = vmatpush1.msra.mxu0 0.0
      %1550 = vmatprep.subr.mxu0 0.0
      %1551 = vmatpush1.msra.mxu0 0.0
      %1552 = vmatprep.subr.mxu0 0.0
      %1553 = vmatpush1.msra.mxu0 0.0
      %1554 = vmatprep.subr.mxu0 0.0
      %1555 = vmatpush1.msra.mxu0 0.0
      %1556 = vmatprep.subr.mxu0 0.0
      %1557 = vmatpush1.msra.mxu0 0.0
      %1558 = vmatprep.subr.mxu0 0.0
      %1559 = vmatpush1.msra.mxu0 0.0
      %1560 = vmatprep.mubr.f32.mxu0 0.0
      %1561 = vmatmul.mubr.f32.gmra.mrb[0].mxu0 %v1487
      %v1562 = vpop.f32.mrb[0].mxu0
      %v1563 = vadd.f32 0.0, %v1562
      %v1564 = vpop.f32.mrb[0].mxu0
      %1565 = vmatprep.mubr.f32.mxu0 0.0
      %1566 = vmatmul.mubr.f32.gmra.mrb[0].mxu0 %v1490
      %v1567 = vpop.f32.mrb[0].mxu0
      %v1568 = vadd.f32 0.0, %v1567
      %v1569 = vpop.f32.mrb[0].mxu0
      %1570 = vdwg.mxu0
      %v1572 = vsel %vm1485, %v1473, 0
      %v1575 = vsel %vm1485, %v1474, 0
      %v1578 = vsel %vm1492, %v1472, 0
      %1580 = vmatprep.subr.mxu0 0.0
      %1581 = vmatpush1.msra.mxu0 %v1578
      %1582 = vmatprep.subr.mxu0 0.0
      %1583 = vmatpush1.msra.mxu0 0.0
      %1584 = vmatprep.subr.mxu0 0.0
      %1585 = vmatpush1.msra.mxu0 0.0
      %1586 = vmatprep.subr.mxu0 0.0
      %1587 = vmatpush1.msra.mxu0 0.0
      %1588 = vmatprep.subr.mxu0 0.0
      %1589 = vmatpush1.msra.mxu0 0.0
      %1590 = vmatprep.subr.mxu0 0.0
      %1591 = vmatpush1.msra.mxu0 0.0
      %1592 = vmatprep.subr.mxu0 0.0
      %1593 = vmatpush1.msra.mxu0 0.0
      %1594 = vmatprep.subr.mxu0 0.0
      %1595 = vmatpush1.msra.mxu0 0.0
      %1596 = vmatprep.subr.mxu0 0.0
      %1597 = vmatpush1.msra.mxu0 0.0
      %1598 = vmatprep.subr.mxu0 0.0
      %1599 = vmatpush1.msra.mxu0 0.0
      %1600 = vmatprep.subr.mxu0 0.0
      %1601 = vmatpush1.msra.mxu0 0.0
      %1602 = vmatprep.subr.mxu0 0.0
      %1603 = vmatpush1.msra.mxu0 0.0
      %1604 = vmatprep.subr.mxu0 0.0
      %1605 = vmatpush1.msra.mxu0 0.0
      %1606 = vmatprep.subr.mxu0 0.0
      %1607 = vmatpush1.msra.mxu0 0.0
      %1608 = vmatprep.subr.mxu0 0.0
      %1609 = vmatpush1.msra.mxu0 0.0
      %1610 = vmatprep.subr.mxu0 0.0
      %1611 = vmatpush1.msra.mxu0 0.0
      %1612 = vmatprep.subr.mxu0 0.0
      %1613 = vmatpush1.msra.mxu0 0.0
      %1614 = vmatprep.subr.mxu0 0.0
      %1615 = vmatpush1.msra.mxu0 0.0
      %1616 = vmatprep.subr.mxu0 0.0
      %1617 = vmatpush1.msra.mxu0 0.0
      %1618 = vmatprep.subr.mxu0 0.0
      %1619 = vmatpush1.msra.mxu0 0.0
      %1620 = vmatprep.subr.mxu0 0.0
      %1621 = vmatpush1.msra.mxu0 0.0
      %1622 = vmatprep.subr.mxu0 0.0
      %1623 = vmatpush1.msra.mxu0 0.0
      %1624 = vmatprep.subr.mxu0 0.0
      %1625 = vmatpush1.msra.mxu0 0.0
      %1626 = vmatprep.subr.mxu0 0.0
      %1627 = vmatpush1.msra.mxu0 0.0
      %1628 = vmatprep.subr.mxu0 0.0
      %1629 = vmatpush1.msra.mxu0 0.0
      %1630 = vmatprep.subr.mxu0 0.0
      %1631 = vmatpush1.msra.mxu0 0.0
      %1632 = vmatprep.subr.mxu0 0.0
      %1633 = vmatpush1.msra.mxu0 0.0
      %1634 = vmatprep.subr.mxu0 0.0
      %1635 = vmatpush1.msra.mxu0 0.0
      %1636 = vmatprep.subr.mxu0 0.0
      %1637 = vmatpush1.msra.mxu0 0.0
      %1638 = vmatprep.subr.mxu0 0.0
      %1639 = vmatpush1.msra.mxu0 0.0
      %1640 = vmatprep.subr.mxu0 0.0
      %1641 = vmatpush1.msra.mxu0 0.0
      %1642 = vmatprep.subr.mxu0 0.0
      %1643 = vmatpush1.msra.mxu0 0.0
      %1644 = vmatprep.mubr.f32.mxu0 0.0
      %1645 = vmatmul.mubr.f32.gmra.mrb[0].mxu0 %v1572
      %v1646 = vpop.f32.mrb[0].mxu0
      %v1647 = vadd.f32 %v1563, %v1646
      %v1648 = vpop.f32.mrb[0].mxu0
      %1649 = vmatprep.mubr.f32.mxu0 0.0
      %1650 = vmatmul.mubr.f32.gmra.mrb[0].mxu0 %v1575
      %v1651 = vpop.f32.mrb[0].mxu0
      %v1652 = vadd.f32 %v1568, %v1651
      %v1653 = vpop.f32.mrb[0].mxu0
      %1654 = vdwg.mxu0
      %1655 = vrot.lane.b32.xlu0 %v1465, 15
      %v1656 = vpop.permute.xlu0 %1655
      %v1657 = vlaneseq
      %v1658 = vshrl.u32 %v1657, 7
      %v1659 = vsub.s32 0, %v1658
      %v1660 = vrot.slane %v1334, %v1659
      %v1661 = vmul.f32 %v1656, %v1660
      %s1662 = scalar_lea.vmem %s7, 32
      %v1663 = vld [vmem:[%s1662] sm:$0xff]
      %v1664 = vld [vmem:[%s1662 + $0x8] sm:$0xff]
      %v1666 = vsel %vm1485, %v1663, 0
      %v1669 = vsel %vm1485, %v1664, 0
      %v1672 = vsel %vm1492, %v1661, 0
      %1674 = vmatprep.subr.mxu0 0.0
      %1675 = vmatpush1.msra.mxu0 %v1672
      %1676 = vmatprep.subr.mxu0 0.0
      %1677 = vmatpush1.msra.mxu0 0.0
      %1678 = vmatprep.subr.mxu0 0.0
      %1679 = vmatpush1.msra.mxu0 0.0
      %1680 = vmatprep.subr.mxu0 0.0
      %1681 = vmatpush1.msra.mxu0 0.0
      %1682 = vmatprep.subr.mxu0 0.0
      %1683 = vmatpush1.msra.mxu0 0.0
      %1684 = vmatprep.subr.mxu0 0.0
      %1685 = vmatpush1.msra.mxu0 0.0
      %1686 = vmatprep.subr.mxu0 0.0
      %1687 = vmatpush1.msra.mxu0 0.0
      %1688 = vmatprep.subr.mxu0 0.0
      %1689 = vmatpush1.msra.mxu0 0.0
      %1690 = vmatprep.subr.mxu0 0.0
      %1691 = vmatpush1.msra.mxu0 0.0
      %1692 = vmatprep.subr.mxu0 0.0
      %1693 = vmatpush1.msra.mxu0 0.0
      %1694 = vmatprep.subr.mxu0 0.0
      %1695 = vmatpush1.msra.mxu0 0.0
      %1696 = vmatprep.subr.mxu0 0.0
      %1697 = vmatpush1.msra.mxu0 0.0
      %1698 = vmatprep.subr.mxu0 0.0
      %1699 = vmatpush1.msra.mxu0 0.0
      %1700 = vmatprep.subr.mxu0 0.0
      %1701 = vmatpush1.msra.mxu0 0.0
      %1702 = vmatprep.subr.mxu0 0.0
      %1703 = vmatpush1.msra.mxu0 0.0
      %1704 = vmatprep.subr.mxu0 0.0
      %1705 = vmatpush1.msra.mxu0 0.0
      %1706 = vmatprep.subr.mxu0 0.0
      %1707 = vmatpush1.msra.mxu0 0.0
      %1708 = vmatprep.subr.mxu0 0.0
      %1709 = vmatpush1.msra.mxu0 0.0
      %1710 = vmatprep.subr.mxu0 0.0
      %1711 = vmatpush1.msra.mxu0 0.0
      %1712 = vmatprep.subr.mxu0 0.0
      %1713 = vmatpush1.msra.mxu0 0.0
      %1714 = vmatprep.subr.mxu0 0.0
      %1715 = vmatpush1.msra.mxu0 0.0
      %1716 = vmatprep.subr.mxu0 0.0
      %1717 = vmatpush1.msra.mxu0 0.0
      %1718 = vmatprep.subr.mxu0 0.0
      %1719 = vmatpush1.msra.mxu0 0.0
      %1720 = vmatprep.subr.mxu0 0.0
      %1721 = vmatpush1.msra.mxu0 0.0
      %1722 = vmatprep.subr.mxu0 0.0
      %1723 = vmatpush1.msra.mxu0 0.0
      %1724 = vmatprep.subr.mxu0 0.0
      %1725 = vmatpush1.msra.mxu0 0.0
      %1726 = vmatprep.subr.mxu0 0.0
      %1727 = vmatpush1.msra.mxu0 0.0
      %1728 = vmatprep.subr.mxu0 0.0
      %1729 = vmatpush1.msra.mxu0 0.0
      %1730 = vmatprep.subr.mxu0 0.0
      %1731 = vmatpush1.msra.mxu0 0.0
      %1732 = vmatprep.subr.mxu0 0.0
      %1733 = vmatpush1.msra.mxu0 0.0
      %1734 = vmatprep.subr.mxu0 0.0
      %1735 = vmatpush1.msra.mxu0 0.0
      %1736 = vmatprep.subr.mxu0 0.0
      %1737 = vmatpush1.msra.mxu0 0.0
      %1738 = vmatprep.mubr.f32.mxu0 0.0
      %1739 = vmatmul.mubr.f32.gmra.mrb[0].mxu0 %v1666
      %v1740 = vpop.f32.mrb[0].mxu0
      %v1741 = vadd.f32 0.0, %v1740
      %v1742 = vpop.f32.mrb[0].mxu0
      %1743 = vmatprep.mubr.f32.mxu0 0.0
      %1744 = vmatmul.mubr.f32.gmra.mrb[0].mxu0 %v1669
      %v1745 = vpop.f32.mrb[0].mxu0
      %v1746 = vadd.f32 0.0, %v1745
      %v1747 = vpop.f32.mrb[0].mxu0
      %1748 = vdwg.mxu0
      %v1749 = vadd.f32 %v1647, %v1741
      %v1750 = vadd.f32 %v1652, %v1746
      %1751 = vrot.lane.b32.xlu0 %v1465, 1
      %v1752 = vpop.permute.xlu0 %1751
      %v1753 = vlaneseq
      %v1754 = vshrl.u32 %v1753, 7
      %v1755 = vsub.s32 0, %v1754
      %v1756 = vrot.slane %v1351, %v1755
      %v1757 = vmul.f32 %v1752, %v1756
      %s1758 = scalar_lea.vmem %s7, 48
      %v1759 = vld [vmem:[%s1758] sm:$0xff]
      %v1760 = vld [vmem:[%s1758 + $0x8] sm:$0xff]
      %v1762 = vsel %vm1485, %v1759, 0
      %v1765 = vsel %vm1485, %v1760, 0
      %v1768 = vsel %vm1492, %v1757, 0
      %1770 = vmatprep.subr.mxu0 0.0
      %1771 = vmatpush1.msra.mxu0 %v1768
      %1772 = vmatprep.subr.mxu0 0.0
      %1773 = vmatpush1.msra.mxu0 0.0
      %1774 = vmatprep.subr.mxu0 0.0
      %1775 = vmatpush1.msra.mxu0 0.0
      %1776 = vmatprep.subr.mxu0 0.0
      %1777 = vmatpush1.msra.mxu0 0.0
      %1778 = vmatprep.subr.mxu0 0.0
      %1779 = vmatpush1.msra.mxu0 0.0
      %1780 = vmatprep.subr.mxu0 0.0
      %1781 = vmatpush1.msra.mxu0 0.0
      %1782 = vmatprep.subr.mxu0 0.0
      %1783 = vmatpush1.msra.mxu0 0.0
      %1784 = vmatprep.subr.mxu0 0.0
      %1785 = vmatpush1.msra.mxu0 0.0
      %1786 = vmatprep.subr.mxu0 0.0
      %1787 = vmatpush1.msra.mxu0 0.0
      %1788 = vmatprep.subr.mxu0 0.0
      %1789 = vmatpush1.msra.mxu0 0.0
      %1790 = vmatprep.subr.mxu0 0.0
      %1791 = vmatpush1.msra.mxu0 0.0
      %1792 = vmatprep.subr.mxu0 0.0
      %1793 = vmatpush1.msra.mxu0 0.0
      %1794 = vmatprep.subr.mxu0 0.0
      %1795 = vmatpush1.msra.mxu0 0.0
      %1796 = vmatprep.subr.mxu0 0.0
      %1797 = vmatpush1.msra.mxu0 0.0
      %1798 = vmatprep.subr.mxu0 0.0
      %1799 = vmatpush1.msra.mxu0 0.0
      %1800 = vmatprep.subr.mxu0 0.0
      %1801 = vmatpush1.msra.mxu0 0.0
      %1802 = vmatprep.subr.mxu0 0.0
      %1803 = vmatpush1.msra.mxu0 0.0
      %1804 = vmatprep.subr.mxu0 0.0
      %1805 = vmatpush1.msra.mxu0 0.0
      %1806 = vmatprep.subr.mxu0 0.0
      %1807 = vmatpush1.msra.mxu0 0.0
      %1808 = vmatprep.subr.mxu0 0.0
      %1809 = vmatpush1.msra.mxu0 0.0
      %1810 = vmatprep.subr.mxu0 0.0
      %1811 = vmatpush1.msra.mxu0 0.0
      %1812 = vmatprep.subr.mxu0 0.0
      %1813 = vmatpush1.msra.mxu0 0.0
      %1814 = vmatprep.subr.mxu0 0.0
      %1815 = vmatpush1.msra.mxu0 0.0
      %1816 = vmatprep.subr.mxu0 0.0
      %1817 = vmatpush1.msra.mxu0 0.0
      %1818 = vmatprep.subr.mxu0 0.0
      %1819 = vmatpush1.msra.mxu0 0.0
      %1820 = vmatprep.subr.mxu0 0.0
      %1821 = vmatpush1.msra.mxu0 0.0
      %1822 = vmatprep.subr.mxu0 0.0
      %1823 = vmatpush1.msra.mxu0 0.0
      %1824 = vmatprep.subr.mxu0 0.0
      %1825 = vmatpush1.msra.mxu0 0.0
      %1826 = vmatprep.subr.mxu0 0.0
      %1827 = vmatpush1.msra.mxu0 0.0
      %1828 = vmatprep.subr.mxu0 0.0
      %1829 = vmatpush1.msra.mxu0 0.0
      %1830 = vmatprep.subr.mxu0 0.0
      %1831 = vmatpush1.msra.mxu0 0.0
      %1832 = vmatprep.subr.mxu0 0.0
      %1833 = vmatpush1.msra.mxu0 0.0
      %1834 = vmatprep.mubr.f32.mxu0 0.0
      %1835 = vmatmul.mubr.f32.gmra.mrb[0].mxu0 %v1762
      %v1836 = vpop.f32.mrb[0].mxu0
      %v1837 = vadd.f32 0.0, %v1836
      %v1838 = vpop.f32.mrb[0].mxu0
      %1839 = vmatprep.mubr.f32.mxu0 0.0
      %1840 = vmatmul.mubr.f32.gmra.mrb[0].mxu0 %v1765
      %v1841 = vpop.f32.mrb[0].mxu0
      %v1842 = vadd.f32 0.0, %v1841
      %v1843 = vpop.f32.mrb[0].mxu0
      %1844 = vdwg.mxu0
      %v1845 = vadd.f32 %v1749, %v1837
      %v1846 = vadd.f32 %v1750, %v1842
      %v1847 = vlaneseq
      %v1848 = vshrl.u32 %v1847, 7
      %v1849 = vsub.s32 0, %v1848
      %v1850 = vrot.slane %v1366, %v1849
      %v1851 = vmul.f32 %v1465, %v1850
      %s1852 = scalar_lea.vmem %s7, 64
      %v1853 = vld [vmem:[%s1852] sm:$0xff]
      %v1854 = vld [vmem:[%s1852 + $0x8] sm:$0xff]
      %v1856 = vsel %vm1485, %v1853, 0
      %v1859 = vsel %vm1485, %v1854, 0
      %v1862 = vsel %vm1492, %v1851, 0
      %1864 = vmatprep.subr.mxu0 0.0
      %1865 = vmatpush1.msra.mxu0 %v1862
      %1866 = vmatprep.subr.mxu0 0.0
      %1867 = vmatpush1.msra.mxu0 0.0
      %1868 = vmatprep.subr.mxu0 0.0
      %1869 = vmatpush1.msra.mxu0 0.0
      %1870 = vmatprep.subr.mxu0 0.0
      %1871 = vmatpush1.msra.mxu0 0.0
      %1872 = vmatprep.subr.mxu0 0.0
      %1873 = vmatpush1.msra.mxu0 0.0
      %1874 = vmatprep.subr.mxu0 0.0
      %1875 = vmatpush1.msra.mxu0 0.0
      %1876 = vmatprep.subr.mxu0 0.0
      %1877 = vmatpush1.msra.mxu0 0.0
      %1878 = vmatprep.subr.mxu0 0.0
      %1879 = vmatpush1.msra.mxu0 0.0
      %1880 = vmatprep.subr.mxu0 0.0
      %1881 = vmatpush1.msra.mxu0 0.0
      %1882 = vmatprep.subr.mxu0 0.0
      %1883 = vmatpush1.msra.mxu0 0.0
      %1884 = vmatprep.subr.mxu0 0.0
      %1885 = vmatpush1.msra.mxu0 0.0
      %1886 = vmatprep.subr.mxu0 0.0
      %1887 = vmatpush1.msra.mxu0 0.0
      %1888 = vmatprep.subr.mxu0 0.0
      %1889 = vmatpush1.msra.mxu0 0.0
      %1890 = vmatprep.subr.mxu0 0.0
      %1891 = vmatpush1.msra.mxu0 0.0
      %1892 = vmatprep.subr.mxu0 0.0
      %1893 = vmatpush1.msra.mxu0 0.0
      %1894 = vmatprep.subr.mxu0 0.0
      %1895 = vmatpush1.msra.mxu0 0.0
      %1896 = vmatprep.subr.mxu0 0.0
      %1897 = vmatpush1.msra.mxu0 0.0
      %1898 = vmatprep.subr.mxu0 0.0
      %1899 = vmatpush1.msra.mxu0 0.0
      %1900 = vmatprep.subr.mxu0 0.0
      %1901 = vmatpush1.msra.mxu0 0.0
      %1902 = vmatprep.subr.mxu0 0.0
      %1903 = vmatpush1.msra.mxu0 0.0
      %1904 = vmatprep.subr.mxu0 0.0
      %1905 = vmatpush1.msra.mxu0 0.0
      %1906 = vmatprep.subr.mxu0 0.0
      %1907 = vmatpush1.msra.mxu0 0.0
      %1908 = vmatprep.subr.mxu0 0.0
      %1909 = vmatpush1.msra.mxu0 0.0
      %1910 = vmatprep.subr.mxu0 0.0
      %1911 = vmatpush1.msra.mxu0 0.0
      %1912 = vmatprep.subr.mxu0 0.0
      %1913 = vmatpush1.msra.mxu0 0.0
      %1914 = vmatprep.subr.mxu0 0.0
      %1915 = vmatpush1.msra.mxu0 0.0
      %1916 = vmatprep.subr.mxu0 0.0
      %1917 = vmatpush1.msra.mxu0 0.0
      %1918 = vmatprep.subr.mxu0 0.0
      %1919 = vmatpush1.msra.mxu0 0.0
      %1920 = vmatprep.subr.mxu0 0.0
      %1921 = vmatpush1.msra.mxu0 0.0
      %1922 = vmatprep.subr.mxu0 0.0
      %1923 = vmatpush1.msra.mxu0 0.0
      %1924 = vmatprep.subr.mxu0 0.0
      %1925 = vmatpush1.msra.mxu0 0.0
      %1926 = vmatprep.subr.mxu0 0.0
      %1927 = vmatpush1.msra.mxu0 0.0
      %1928 = vmatprep.mubr.f32.mxu0 0.0
      %1929 = vmatmul.mubr.f32.gmra.mrb[0].mxu0 %v1856
      %v1930 = vpop.f32.mrb[0].mxu0
      %v1931 = vadd.f32 0.0, %v1930
      %v1932 = vpop.f32.mrb[0].mxu0
      %1933 = vmatprep.mubr.f32.mxu0 0.0
      %1934 = vmatmul.mubr.f32.gmra.mrb[0].mxu0 %v1859
      %v1935 = vpop.f32.mrb[0].mxu0
      %v1936 = vadd.f32 0.0, %v1935
      %v1937 = vpop.f32.mrb[0].mxu0
      %1938 = vdwg.mxu0
      %v1939 = vadd.f32 %v1845, %v1931
      %v1940 = vadd.f32 %v1846, %v1936
      %1941 = vrot.lane.b32.xlu0 %v1465, 127
      %v1942 = vpop.permute.xlu0 %1941
      %v1943 = vlaneseq
      %v1944 = vshrl.u32 %v1943, 7
      %v1945 = vsub.s32 0, %v1944
      %v1946 = vrot.slane %v1385, %v1945
      %v1947 = vmul.f32 %v1942, %v1946
      %s1948 = scalar_lea.vmem %s7, 80
      %v1949 = vld [vmem:[%s1948] sm:$0xff]
      %v1950 = vld [vmem:[%s1948 + $0x8] sm:$0xff]
      %v1952 = vsel %vm1485, %v1949, 0
      %v1955 = vsel %vm1485, %v1950, 0
      %v1958 = vsel %vm1492, %v1947, 0
      %1960 = vmatprep.subr.mxu0 0.0
      %1961 = vmatpush1.msra.mxu0 %v1958
      %1962 = vmatprep.subr.mxu0 0.0
      %1963 = vmatpush1.msra.mxu0 0.0
      %1964 = vmatprep.subr.mxu0 0.0
      %1965 = vmatpush1.msra.mxu0 0.0
      %1966 = vmatprep.subr.mxu0 0.0
      %1967 = vmatpush1.msra.mxu0 0.0
      %1968 = vmatprep.subr.mxu0 0.0
      %1969 = vmatpush1.msra.mxu0 0.0
      %1970 = vmatprep.subr.mxu0 0.0
      %1971 = vmatpush1.msra.mxu0 0.0
      %1972 = vmatprep.subr.mxu0 0.0
      %1973 = vmatpush1.msra.mxu0 0.0
      %1974 = vmatprep.subr.mxu0 0.0
      %1975 = vmatpush1.msra.mxu0 0.0
      %1976 = vmatprep.subr.mxu0 0.0
      %1977 = vmatpush1.msra.mxu0 0.0
      %1978 = vmatprep.subr.mxu0 0.0
      %1979 = vmatpush1.msra.mxu0 0.0
      %1980 = vmatprep.subr.mxu0 0.0
      %1981 = vmatpush1.msra.mxu0 0.0
      %1982 = vmatprep.subr.mxu0 0.0
      %1983 = vmatpush1.msra.mxu0 0.0
      %1984 = vmatprep.subr.mxu0 0.0
      %1985 = vmatpush1.msra.mxu0 0.0
      %1986 = vmatprep.subr.mxu0 0.0
      %1987 = vmatpush1.msra.mxu0 0.0
      %1988 = vmatprep.subr.mxu0 0.0
      %1989 = vmatpush1.msra.mxu0 0.0
      %1990 = vmatprep.subr.mxu0 0.0
      %1991 = vmatpush1.msra.mxu0 0.0
      %1992 = vmatprep.subr.mxu0 0.0
      %1993 = vmatpush1.msra.mxu0 0.0
      %1994 = vmatprep.subr.mxu0 0.0
      %1995 = vmatpush1.msra.mxu0 0.0
      %1996 = vmatprep.subr.mxu0 0.0
      %1997 = vmatpush1.msra.mxu0 0.0
      %1998 = vmatprep.subr.mxu0 0.0
      %1999 = vmatpush1.msra.mxu0 0.0
      %2000 = vmatprep.subr.mxu0 0.0
      %2001 = vmatpush1.msra.mxu0 0.0
      %2002 = vmatprep.subr.mxu0 0.0
      %2003 = vmatpush1.msra.mxu0 0.0
      %2004 = vmatprep.subr.mxu0 0.0
      %2005 = vmatpush1.msra.mxu0 0.0
      %2006 = vmatprep.subr.mxu0 0.0
      %2007 = vmatpush1.msra.mxu0 0.0
      %2008 = vmatprep.subr.mxu0 0.0
      %2009 = vmatpush1.msra.mxu0 0.0
      %2010 = vmatprep.subr.mxu0 0.0
      %2011 = vmatpush1.msra.mxu0 0.0
      %2012 = vmatprep.subr.mxu0 0.0
      %2013 = vmatpush1.msra.mxu0 0.0
      %2014 = vmatprep.subr.mxu0 0.0
      %2015 = vmatpush1.msra.mxu0 0.0
      %2016 = vmatprep.subr.mxu0 0.0
      %2017 = vmatpush1.msra.mxu0 0.0
      %2018 = vmatprep.subr.mxu0 0.0
      %2019 = vmatpush1.msra.mxu0 0.0
      %2020 = vmatprep.subr.mxu0 0.0
      %2021 = vmatpush1.msra.mxu0 0.0
      %2022 = vmatprep.subr.mxu0 0.0
      %2023 = vmatpush1.msra.mxu0 0.0
      %2024 = vmatprep.mubr.f32.mxu0 0.0
      %2025 = vmatmul.mubr.f32.gmra.mrb[0].mxu0 %v1952
      %v2026 = vpop.f32.mrb[0].mxu0
      %v2027 = vadd.f32 0.0, %v2026
      %v2028 = vpop.f32.mrb[0].mxu0
      %2029 = vmatprep.mubr.f32.mxu0 0.0
      %2030 = vmatmul.mubr.f32.gmra.mrb[0].mxu0 %v1955
      %v2031 = vpop.f32.mrb[0].mxu0
      %v2032 = vadd.f32 0.0, %v2031
      %v2033 = vpop.f32.mrb[0].mxu0
      %2034 = vdwg.mxu0
      %v2035 = vadd.f32 %v1939, %v2027
      %v2036 = vadd.f32 %v1940, %v2032
      %2037 = vrot.lane.b32.xlu0 %v1465, 113
      %v2038 = vpop.permute.xlu0 %2037
      %v2039 = vlaneseq
      %v2040 = vshrl.u32 %v2039, 7
      %v2041 = vsub.s32 0, %v2040
      %v2042 = vrot.slane %v1402, %v2041
      %v2043 = vmul.f32 %v2038, %v2042
      %s2044 = scalar_lea.vmem %s7, 96
      %v2045 = vld [vmem:[%s2044] sm:$0xff]
      %v2046 = vld [vmem:[%s2044 + $0x8] sm:$0xff]
      %v2048 = vsel %vm1485, %v2045, 0
      %v2051 = vsel %vm1485, %v2046, 0
      %v2054 = vsel %vm1492, %v2043, 0
      %2056 = vmatprep.subr.mxu0 0.0
      %2057 = vmatpush1.msra.mxu0 %v2054
      %2058 = vmatprep.subr.mxu0 0.0
      %2059 = vmatpush1.msra.mxu0 0.0
      %2060 = vmatprep.subr.mxu0 0.0
      %2061 = vmatpush1.msra.mxu0 0.0
      %2062 = vmatprep.subr.mxu0 0.0
      %2063 = vmatpush1.msra.mxu0 0.0
      %2064 = vmatprep.subr.mxu0 0.0
      %2065 = vmatpush1.msra.mxu0 0.0
      %2066 = vmatprep.subr.mxu0 0.0
      %2067 = vmatpush1.msra.mxu0 0.0
      %2068 = vmatprep.subr.mxu0 0.0
      %2069 = vmatpush1.msra.mxu0 0.0
      %2070 = vmatprep.subr.mxu0 0.0
      %2071 = vmatpush1.msra.mxu0 0.0
      %2072 = vmatprep.subr.mxu0 0.0
      %2073 = vmatpush1.msra.mxu0 0.0
      %2074 = vmatprep.subr.mxu0 0.0
      %2075 = vmatpush1.msra.mxu0 0.0
      %2076 = vmatprep.subr.mxu0 0.0
      %2077 = vmatpush1.msra.mxu0 0.0
      %2078 = vmatprep.subr.mxu0 0.0
      %2079 = vmatpush1.msra.mxu0 0.0
      %2080 = vmatprep.subr.mxu0 0.0
      %2081 = vmatpush1.msra.mxu0 0.0
      %2082 = vmatprep.subr.mxu0 0.0
      %2083 = vmatpush1.msra.mxu0 0.0
      %2084 = vmatprep.subr.mxu0 0.0
      %2085 = vmatpush1.msra.mxu0 0.0
      %2086 = vmatprep.subr.mxu0 0.0
      %2087 = vmatpush1.msra.mxu0 0.0
      %2088 = vmatprep.subr.mxu0 0.0
      %2089 = vmatpush1.msra.mxu0 0.0
      %2090 = vmatprep.subr.mxu0 0.0
      %2091 = vmatpush1.msra.mxu0 0.0
      %2092 = vmatprep.subr.mxu0 0.0
      %2093 = vmatpush1.msra.mxu0 0.0
      %2094 = vmatprep.subr.mxu0 0.0
      %2095 = vmatpush1.msra.mxu0 0.0
      %2096 = vmatprep.subr.mxu0 0.0
      %2097 = vmatpush1.msra.mxu0 0.0
      %2098 = vmatprep.subr.mxu0 0.0
      %2099 = vmatpush1.msra.mxu0 0.0
      %2100 = vmatprep.subr.mxu0 0.0
      %2101 = vmatpush1.msra.mxu0 0.0
      %2102 = vmatprep.subr.mxu0 0.0
      %2103 = vmatpush1.msra.mxu0 0.0
      %2104 = vmatprep.subr.mxu0 0.0
      %2105 = vmatpush1.msra.mxu0 0.0
      %2106 = vmatprep.subr.mxu0 0.0
      %2107 = vmatpush1.msra.mxu0 0.0
      %2108 = vmatprep.subr.mxu0 0.0
      %2109 = vmatpush1.msra.mxu0 0.0
      %2110 = vmatprep.subr.mxu0 0.0
      %2111 = vmatpush1.msra.mxu0 0.0
      %2112 = vmatprep.subr.mxu0 0.0
      %2113 = vmatpush1.msra.mxu0 0.0
      %2114 = vmatprep.subr.mxu0 0.0
      %2115 = vmatpush1.msra.mxu0 0.0
      %2116 = vmatprep.subr.mxu0 0.0
      %2117 = vmatpush1.msra.mxu0 0.0
      %2118 = vmatprep.subr.mxu0 0.0
      %2119 = vmatpush1.msra.mxu0 0.0
      %2120 = vmatprep.mubr.f32.mxu0 0.0
      %2121 = vmatmul.mubr.f32.gmra.mrb[0].mxu0 %v2048
      %v2122 = vpop.f32.mrb[0].mxu0
      %v2123 = vadd.f32 0.0, %v2122
      %v2124 = vpop.f32.mrb[0].mxu0
      %2125 = vmatprep.mubr.f32.mxu0 0.0
      %2126 = vmatmul.mubr.f32.gmra.mrb[0].mxu0 %v2051
      %v2127 = vpop.f32.mrb[0].mxu0
      %v2128 = vadd.f32 0.0, %v2127
      %v2129 = vpop.f32.mrb[0].mxu0
      %2130 = vdwg.mxu0
      %v2131 = vadd.f32 %v2035, %v2123
      %v2132 = vadd.f32 %v2036, %v2128
      %2133 = vrot.lane.b32.xlu0 %v1465, 112
      %v2134 = vpop.permute.xlu0 %2133
      %v2135 = vlaneseq
      %v2136 = vshrl.u32 %v2135, 7
      %v2137 = vsub.s32 0, %v2136
      %v2138 = vrot.slane %v1419, %v2137
      %v2139 = vmul.f32 %v2134, %v2138
      %s2140 = scalar_lea.vmem %s7, 112
      %v2141 = vld [vmem:[%s2140] sm:$0xff]
      %v2142 = vld [vmem:[%s2140 + $0x8] sm:$0xff]
      %v2144 = vsel %vm1485, %v2141, 0
      %v2147 = vsel %vm1485, %v2142, 0
      %v2150 = vsel %vm1492, %v2139, 0
      %2152 = vmatprep.subr.mxu0 0.0
      %2153 = vmatpush1.msra.mxu0 %v2150
      %2154 = vmatprep.subr.mxu0 0.0
      %2155 = vmatpush1.msra.mxu0 0.0
      %2156 = vmatprep.subr.mxu0 0.0
      %2157 = vmatpush1.msra.mxu0 0.0
      %2158 = vmatprep.subr.mxu0 0.0
      %2159 = vmatpush1.msra.mxu0 0.0
      %2160 = vmatprep.subr.mxu0 0.0
      %2161 = vmatpush1.msra.mxu0 0.0
      %2162 = vmatprep.subr.mxu0 0.0
      %2163 = vmatpush1.msra.mxu0 0.0
      %2164 = vmatprep.subr.mxu0 0.0
      %2165 = vmatpush1.msra.mxu0 0.0
      %2166 = vmatprep.subr.mxu0 0.0
      %2167 = vmatpush1.msra.mxu0 0.0
      %2168 = vmatprep.subr.mxu0 0.0
      %2169 = vmatpush1.msra.mxu0 0.0
      %2170 = vmatprep.subr.mxu0 0.0
      %2171 = vmatpush1.msra.mxu0 0.0
      %2172 = vmatprep.subr.mxu0 0.0
      %2173 = vmatpush1.msra.mxu0 0.0
      %2174 = vmatprep.subr.mxu0 0.0
      %2175 = vmatpush1.msra.mxu0 0.0
      %2176 = vmatprep.subr.mxu0 0.0
      %2177 = vmatpush1.msra.mxu0 0.0
      %2178 = vmatprep.subr.mxu0 0.0
      %2179 = vmatpush1.msra.mxu0 0.0
      %2180 = vmatprep.subr.mxu0 0.0
      %2181 = vmatpush1.msra.mxu0 0.0
      %2182 = vmatprep.subr.mxu0 0.0
      %2183 = vmatpush1.msra.mxu0 0.0
      %2184 = vmatprep.subr.mxu0 0.0
      %2185 = vmatpush1.msra.mxu0 0.0
      %2186 = vmatprep.subr.mxu0 0.0
      %2187 = vmatpush1.msra.mxu0 0.0
      %2188 = vmatprep.subr.mxu0 0.0
      %2189 = vmatpush1.msra.mxu0 0.0
      %2190 = vmatprep.subr.mxu0 0.0
      %2191 = vmatpush1.msra.mxu0 0.0
      %2192 = vmatprep.subr.mxu0 0.0
      %2193 = vmatpush1.msra.mxu0 0.0
      %2194 = vmatprep.subr.mxu0 0.0
      %2195 = vmatpush1.msra.mxu0 0.0
      %2196 = vmatprep.subr.mxu0 0.0
      %2197 = vmatpush1.msra.mxu0 0.0
      %2198 = vmatprep.subr.mxu0 0.0
      %2199 = vmatpush1.msra.mxu0 0.0
      %2200 = vmatprep.subr.mxu0 0.0
      %2201 = vmatpush1.msra.mxu0 0.0
      %2202 = vmatprep.subr.mxu0 0.0
      %2203 = vmatpush1.msra.mxu0 0.0
      %2204 = vmatprep.subr.mxu0 0.0
      %2205 = vmatpush1.msra.mxu0 0.0
      %2206 = vmatprep.subr.mxu0 0.0
      %2207 = vmatpush1.msra.mxu0 0.0
      %2208 = vmatprep.subr.mxu0 0.0
      %2209 = vmatpush1.msra.mxu0 0.0
      %2210 = vmatprep.subr.mxu0 0.0
      %2211 = vmatpush1.msra.mxu0 0.0
      %2212 = vmatprep.subr.mxu0 0.0
      %2213 = vmatpush1.msra.mxu0 0.0
      %2214 = vmatprep.subr.mxu0 0.0
      %2215 = vmatpush1.msra.mxu0 0.0
      %2216 = vmatprep.mubr.f32.mxu0 0.0
      %2217 = vmatmul.mubr.f32.gmra.mrb[0].mxu0 %v2144
      %v2218 = vpop.f32.mrb[0].mxu0
      %v2219 = vadd.f32 0.0, %v2218
      %v2220 = vpop.f32.mrb[0].mxu0
      %2221 = vmatprep.mubr.f32.mxu0 0.0
      %2222 = vmatmul.mubr.f32.gmra.mrb[0].mxu0 %v2147
      %v2223 = vpop.f32.mrb[0].mxu0
      %v2224 = vadd.f32 0.0, %v2223
      %v2225 = vpop.f32.mrb[0].mxu0
      %2226 = vdwg.mxu0
      %v2227 = vadd.f32 %v2131, %v2219
      %v2228 = vadd.f32 %v2132, %v2224
      %2229 = vrot.lane.b32.xlu0 %v1465, 111
      %v2230 = vpop.permute.xlu0 %2229
      %v2231 = vlaneseq
      %v2232 = vshrl.u32 %v2231, 7
      %v2233 = vsub.s32 0, %v2232
      %v2234 = vrot.slane %v1436, %v2233
      %v2235 = vmul.f32 %v2230, %v2234
      %s2236 = scalar_lea.vmem %s7, 128
      %v2237 = vld [vmem:[%s2236] sm:$0xff]
      %v2238 = vld [vmem:[%s2236 + $0x8] sm:$0xff]
      %v2240 = vsel %vm1485, %v2237, 0
      %v2243 = vsel %vm1485, %v2238, 0
      %v2246 = vsel %vm1492, %v2235, 0
      %2248 = vmatprep.subr.mxu0 0.0
      %2249 = vmatpush1.msra.mxu0 %v2246
      %2250 = vmatprep.subr.mxu0 0.0
      %2251 = vmatpush1.msra.mxu0 0.0
      %2252 = vmatprep.subr.mxu0 0.0
      %2253 = vmatpush1.msra.mxu0 0.0
      %2254 = vmatprep.subr.mxu0 0.0
      %2255 = vmatpush1.msra.mxu0 0.0
      %2256 = vmatprep.subr.mxu0 0.0
      %2257 = vmatpush1.msra.mxu0 0.0
      %2258 = vmatprep.subr.mxu0 0.0
      %2259 = vmatpush1.msra.mxu0 0.0
      %2260 = vmatprep.subr.mxu0 0.0
      %2261 = vmatpush1.msra.mxu0 0.0
      %2262 = vmatprep.subr.mxu0 0.0
      %2263 = vmatpush1.msra.mxu0 0.0
      %2264 = vmatprep.subr.mxu0 0.0
      %2265 = vmatpush1.msra.mxu0 0.0
      %2266 = vmatprep.subr.mxu0 0.0
      %2267 = vmatpush1.msra.mxu0 0.0
      %2268 = vmatprep.subr.mxu0 0.0
      %2269 = vmatpush1.msra.mxu0 0.0
      %2270 = vmatprep.subr.mxu0 0.0
      %2271 = vmatpush1.msra.mxu0 0.0
      %2272 = vmatprep.subr.mxu0 0.0
      %2273 = vmatpush1.msra.mxu0 0.0
      %2274 = vmatprep.subr.mxu0 0.0
      %2275 = vmatpush1.msra.mxu0 0.0
      %2276 = vmatprep.subr.mxu0 0.0
      %2277 = vmatpush1.msra.mxu0 0.0
      %2278 = vmatprep.subr.mxu0 0.0
      %2279 = vmatpush1.msra.mxu0 0.0
      %2280 = vmatprep.subr.mxu0 0.0
      %2281 = vmatpush1.msra.mxu0 0.0
      %2282 = vmatprep.subr.mxu0 0.0
      %2283 = vmatpush1.msra.mxu0 0.0
      %2284 = vmatprep.subr.mxu0 0.0
      %2285 = vmatpush1.msra.mxu0 0.0
      %2286 = vmatprep.subr.mxu0 0.0
      %2287 = vmatpush1.msra.mxu0 0.0
      %2288 = vmatprep.subr.mxu0 0.0
      %2289 = vmatpush1.msra.mxu0 0.0
      %2290 = vmatprep.subr.mxu0 0.0
      %2291 = vmatpush1.msra.mxu0 0.0
      %2292 = vmatprep.subr.mxu0 0.0
      %2293 = vmatpush1.msra.mxu0 0.0
      %2294 = vmatprep.subr.mxu0 0.0
      %2295 = vmatpush1.msra.mxu0 0.0
      %2296 = vmatprep.subr.mxu0 0.0
      %2297 = vmatpush1.msra.mxu0 0.0
      %2298 = vmatprep.subr.mxu0 0.0
      %2299 = vmatpush1.msra.mxu0 0.0
      %2300 = vmatprep.subr.mxu0 0.0
      %2301 = vmatpush1.msra.mxu0 0.0
      %2302 = vmatprep.subr.mxu0 0.0
      %2303 = vmatpush1.msra.mxu0 0.0
      %2304 = vmatprep.subr.mxu0 0.0
      %2305 = vmatpush1.msra.mxu0 0.0
      %2306 = vmatprep.subr.mxu0 0.0
      %2307 = vmatpush1.msra.mxu0 0.0
      %2308 = vmatprep.subr.mxu0 0.0
      %2309 = vmatpush1.msra.mxu0 0.0
      %2310 = vmatprep.subr.mxu0 0.0
      %2311 = vmatpush1.msra.mxu0 0.0
      %2312 = vmatprep.mubr.f32.mxu0 0.0
      %2313 = vmatmul.mubr.f32.gmra.mrb[0].mxu0 %v2240
      %v2314 = vpop.f32.mrb[0].mxu0
      %v2315 = vadd.f32 0.0, %v2314
      %v2316 = vpop.f32.mrb[0].mxu0
      %2317 = vmatprep.mubr.f32.mxu0 0.0
      %2318 = vmatmul.mubr.f32.gmra.mrb[0].mxu0 %v2243
      %v2319 = vpop.f32.mrb[0].mxu0
      %v2320 = vadd.f32 0.0, %v2319
      %v2321 = vpop.f32.mrb[0].mxu0
      %2322 = vdwg.mxu0
      %v2323 = vadd.f32 %v2227, %v2315
      %v2324 = vadd.f32 %v2228, %v2320
      %v2325 = vld [vmem:[%s8] sm:$0xff]
      %v2326 = vld [vmem:[%s8 + $0x8] sm:$0xff]
      %2328 = vset.pattern.permute.xlu0 0
      %2329 = vperm.xlu0 %2328, %v2325
      %v2330 = vpop.permute.xlu0 %2329
      %2333 = vset.pattern.permute.xlu0 0
      %2334 = vperm.xlu0 %2333, %v2326
      %v2335 = vpop.permute.xlu0 %2334
      %v2337 = vmul.f32 %v2323, %v2330
      %v2338 = vmul.f32 %v2324, %v2335
      %v2339 = vld [vmem:[%s9] sm:$0xff]
      %v2340 = vld [vmem:[%s9 + $0x8] sm:$0xff]
      %2342 = vset.pattern.permute.xlu0 0
      %2343 = vperm.xlu0 %2342, %v2339
      %v2344 = vpop.permute.xlu0 %2343
      %2347 = vset.pattern.permute.xlu0 0
      %2348 = vperm.xlu0 %2347, %v2340
      %v2349 = vpop.permute.xlu0 %2348
      %v2351 = vadd.f32 %v2337, %v2344
      %v2352 = vadd.f32 %v2338, %v2349
      %v2353 = vtanh.pop %v2351
      %v2354 = vtanh.pop %v2352
      %2355 = vrot.lane.b32.xlu0 %v2353, 17
      %v2356 = vpop.permute.xlu0 %2355
      %2357 = vrot.lane.b32.xlu0 %v2354, 17
      %v2358 = vpop.permute.xlu0 %2357
      %v2359 = vmul.f32 %v2356, %v1471
      %v2360 = vmul.f32 %v2358, %v1471
      %v2361 = vld [vmem:[%s10] sm:$0xf]
      %2362 = vrot.lane.b32.xlu0 %v2353, 16
      %v2363 = vpop.permute.xlu0 %2362
      %2364 = vrot.lane.b32.xlu0 %v2354, 16
      %v2365 = vpop.permute.xlu0 %2364
      %v2366 = vmul.f32 %v2363, %v1480
      %v2367 = vmul.f32 %v2365, %v1480
      %s2368 = scalar_lea.vmem %s10, 4
      %v2369 = vld [vmem:[%s2368] sm:$0xf]
      %vm2370 = vcmask 130048
      %v2372 = vsel %vm2370, %v2369, 0
      %2374 = vmatprep.subr.mxu0 0.0
      %2375 = vmatpush1.msra.mxu0 %v2366
      %2376 = vmatprep.subr.mxu0 0.0
      %2377 = vmatpush1.msra.mxu0 %v2367
      %2378 = vmatprep.subr.mxu0 0.0
      %2379 = vmatpush1.msra.mxu0 0.0
      %2380 = vmatprep.subr.mxu0 0.0
      %2381 = vmatpush1.msra.mxu0 0.0
      %2382 = vmatprep.subr.mxu0 0.0
      %2383 = vmatpush1.msra.mxu0 0.0
      %2384 = vmatprep.subr.mxu0 0.0
      %2385 = vmatpush1.msra.mxu0 0.0
      %2386 = vmatprep.subr.mxu0 0.0
      %2387 = vmatpush1.msra.mxu0 0.0
      %2388 = vmatprep.subr.mxu0 0.0
      %2389 = vmatpush1.msra.mxu0 0.0
      %2390 = vmatprep.subr.mxu0 0.0
      %2391 = vmatpush1.msra.mxu0 0.0
      %2392 = vmatprep.subr.mxu0 0.0
      %2393 = vmatpush1.msra.mxu0 0.0
      %2394 = vmatprep.subr.mxu0 0.0
      %2395 = vmatpush1.msra.mxu0 0.0
      %2396 = vmatprep.subr.mxu0 0.0
      %2397 = vmatpush1.msra.mxu0 0.0
      %2398 = vmatprep.subr.mxu0 0.0
      %2399 = vmatpush1.msra.mxu0 0.0
      %2400 = vmatprep.subr.mxu0 0.0
      %2401 = vmatpush1.msra.mxu0 0.0
      %2402 = vmatprep.subr.mxu0 0.0
      %2403 = vmatpush1.msra.mxu0 0.0
      %2404 = vmatprep.subr.mxu0 0.0
      %2405 = vmatpush1.msra.mxu0 0.0
      %2406 = vmatprep.subr.mxu0 0.0
      %2407 = vmatpush1.msra.mxu0 0.0
      %2408 = vmatprep.subr.mxu0 0.0
      %2409 = vmatpush1.msra.mxu0 0.0
      %2410 = vmatprep.subr.mxu0 0.0
      %2411 = vmatpush1.msra.mxu0 0.0
      %2412 = vmatprep.subr.mxu0 0.0
      %2413 = vmatpush1.msra.mxu0 0.0
      %2414 = vmatprep.subr.mxu0 0.0
      %2415 = vmatpush1.msra.mxu0 0.0
      %2416 = vmatprep.subr.mxu0 0.0
      %2417 = vmatpush1.msra.mxu0 0.0
      %2418 = vmatprep.subr.mxu0 0.0
      %2419 = vmatpush1.msra.mxu0 0.0
      %2420 = vmatprep.subr.mxu0 0.0
      %2421 = vmatpush1.msra.mxu0 0.0
      %2422 = vmatprep.subr.mxu0 0.0
      %2423 = vmatpush1.msra.mxu0 0.0
      %2424 = vmatprep.subr.mxu0 0.0
      %2425 = vmatpush1.msra.mxu0 0.0
      %2426 = vmatprep.subr.mxu0 0.0
      %2427 = vmatpush1.msra.mxu0 0.0
      %2428 = vmatprep.subr.mxu0 0.0
      %2429 = vmatpush1.msra.mxu0 0.0
      %2430 = vmatprep.subr.mxu0 0.0
      %2431 = vmatpush1.msra.mxu0 0.0
      %2432 = vmatprep.subr.mxu0 0.0
      %2433 = vmatpush1.msra.mxu0 0.0
      %2434 = vmatprep.subr.mxu0 0.0
      %2435 = vmatpush1.msra.mxu0 0.0
      %2436 = vmatprep.subr.mxu0 0.0
      %2437 = vmatpush1.msra.mxu0 0.0
      %2438 = vmatprep.mubr.f32.mxu0 0.0
      %2439 = vmatmul.mubr.f32.gmra.mrb[0].mxu0 %v2372
      %v2440 = vpop.f32.mrb[0].mxu0
      %v2441 = vadd.f32 0.0, %v2440
      %v2442 = vpop.f32.mrb[0].mxu0
      %2443 = vdwg.mxu0
      %v2445 = vsel %vm2370, %v2361, 0
      %2447 = vmatprep.subr.mxu0 0.0
      %2448 = vmatpush1.msra.mxu0 %v2359
      %2449 = vmatprep.subr.mxu0 0.0
      %2450 = vmatpush1.msra.mxu0 %v2360
      %2451 = vmatprep.subr.mxu0 0.0
      %2452 = vmatpush1.msra.mxu0 0.0
      %2453 = vmatprep.subr.mxu0 0.0
      %2454 = vmatpush1.msra.mxu0 0.0
      %2455 = vmatprep.subr.mxu0 0.0
      %2456 = vmatpush1.msra.mxu0 0.0
      %2457 = vmatprep.subr.mxu0 0.0
      %2458 = vmatpush1.msra.mxu0 0.0
      %2459 = vmatprep.subr.mxu0 0.0
      %2460 = vmatpush1.msra.mxu0 0.0
      %2461 = vmatprep.subr.mxu0 0.0
      %2462 = vmatpush1.msra.mxu0 0.0
      %2463 = vmatprep.subr.mxu0 0.0
      %2464 = vmatpush1.msra.mxu0 0.0
      %2465 = vmatprep.subr.mxu0 0.0
      %2466 = vmatpush1.msra.mxu0 0.0
      %2467 = vmatprep.subr.mxu0 0.0
      %2468 = vmatpush1.msra.mxu0 0.0
      %2469 = vmatprep.subr.mxu0 0.0
      %2470 = vmatpush1.msra.mxu0 0.0
      %2471 = vmatprep.subr.mxu0 0.0
      %2472 = vmatpush1.msra.mxu0 0.0
      %2473 = vmatprep.subr.mxu0 0.0
      %2474 = vmatpush1.msra.mxu0 0.0
      %2475 = vmatprep.subr.mxu0 0.0
      %2476 = vmatpush1.msra.mxu0 0.0
      %2477 = vmatprep.subr.mxu0 0.0
      %2478 = vmatpush1.msra.mxu0 0.0
      %2479 = vmatprep.subr.mxu0 0.0
      %2480 = vmatpush1.msra.mxu0 0.0
      %2481 = vmatprep.subr.mxu0 0.0
      %2482 = vmatpush1.msra.mxu0 0.0
      %2483 = vmatprep.subr.mxu0 0.0
      %2484 = vmatpush1.msra.mxu0 0.0
      %2485 = vmatprep.subr.mxu0 0.0
      %2486 = vmatpush1.msra.mxu0 0.0
      %2487 = vmatprep.subr.mxu0 0.0
      %2488 = vmatpush1.msra.mxu0 0.0
      %2489 = vmatprep.subr.mxu0 0.0
      %2490 = vmatpush1.msra.mxu0 0.0
      %2491 = vmatprep.subr.mxu0 0.0
      %2492 = vmatpush1.msra.mxu0 0.0
      %2493 = vmatprep.subr.mxu0 0.0
      %2494 = vmatpush1.msra.mxu0 0.0
      %2495 = vmatprep.subr.mxu0 0.0
      %2496 = vmatpush1.msra.mxu0 0.0
      %2497 = vmatprep.subr.mxu0 0.0
      %2498 = vmatpush1.msra.mxu0 0.0
      %2499 = vmatprep.subr.mxu0 0.0
      %2500 = vmatpush1.msra.mxu0 0.0
      %2501 = vmatprep.subr.mxu0 0.0
      %2502 = vmatpush1.msra.mxu0 0.0
      %2503 = vmatprep.subr.mxu0 0.0
      %2504 = vmatpush1.msra.mxu0 0.0
      %2505 = vmatprep.subr.mxu0 0.0
      %2506 = vmatpush1.msra.mxu0 0.0
      %2507 = vmatprep.subr.mxu0 0.0
      %2508 = vmatpush1.msra.mxu0 0.0
      %2509 = vmatprep.subr.mxu0 0.0
      %2510 = vmatpush1.msra.mxu0 0.0
      %2511 = vmatprep.mubr.f32.mxu0 0.0
      %2512 = vmatmul.mubr.f32.gmra.mrb[0].mxu0 %v2445
      %v2513 = vpop.f32.mrb[0].mxu0
      %v2514 = vadd.f32 %v2441, %v2513
      %v2515 = vpop.f32.mrb[0].mxu0
      %2516 = vdwg.mxu0
      %2517 = vrot.lane.b32.xlu0 %v2353, 15
      %v2518 = vpop.permute.xlu0 %2517
      %2519 = vrot.lane.b32.xlu0 %v2354, 15
      %v2520 = vpop.permute.xlu0 %2519
      %v2521 = vmul.f32 %v2518, %v1660
      %v2522 = vmul.f32 %v2520, %v1660
      %s2523 = scalar_lea.vmem %s10, 8
      %v2524 = vld [vmem:[%s2523] sm:$0xf]
      %v2526 = vsel %vm2370, %v2524, 0
      %2528 = vmatprep.subr.mxu0 0.0
      %2529 = vmatpush1.msra.mxu0 %v2521
      %2530 = vmatprep.subr.mxu0 0.0
      %2531 = vmatpush1.msra.mxu0 %v2522
      %2532 = vmatprep.subr.mxu0 0.0
      %2533 = vmatpush1.msra.mxu0 0.0
      %2534 = vmatprep.subr.mxu0 0.0
      %2535 = vmatpush1.msra.mxu0 0.0
      %2536 = vmatprep.subr.mxu0 0.0
      %2537 = vmatpush1.msra.mxu0 0.0
      %2538 = vmatprep.subr.mxu0 0.0
      %2539 = vmatpush1.msra.mxu0 0.0
      %2540 = vmatprep.subr.mxu0 0.0
      %2541 = vmatpush1.msra.mxu0 0.0
      %2542 = vmatprep.subr.mxu0 0.0
      %2543 = vmatpush1.msra.mxu0 0.0
      %2544 = vmatprep.subr.mxu0 0.0
      %2545 = vmatpush1.msra.mxu0 0.0
      %2546 = vmatprep.subr.mxu0 0.0
      %2547 = vmatpush1.msra.mxu0 0.0
      %2548 = vmatprep.subr.mxu0 0.0
      %2549 = vmatpush1.msra.mxu0 0.0
      %2550 = vmatprep.subr.mxu0 0.0
      %2551 = vmatpush1.msra.mxu0 0.0
      %2552 = vmatprep.subr.mxu0 0.0
      %2553 = vmatpush1.msra.mxu0 0.0
      %2554 = vmatprep.subr.mxu0 0.0
      %2555 = vmatpush1.msra.mxu0 0.0
      %2556 = vmatprep.subr.mxu0 0.0
      %2557 = vmatpush1.msra.mxu0 0.0
      %2558 = vmatprep.subr.mxu0 0.0
      %2559 = vmatpush1.msra.mxu0 0.0
      %2560 = vmatprep.subr.mxu0 0.0
      %2561 = vmatpush1.msra.mxu0 0.0
      %2562 = vmatprep.subr.mxu0 0.0
      %2563 = vmatpush1.msra.mxu0 0.0
      %2564 = vmatprep.subr.mxu0 0.0
      %2565 = vmatpush1.msra.mxu0 0.0
      %2566 = vmatprep.subr.mxu0 0.0
      %2567 = vmatpush1.msra.mxu0 0.0
      %2568 = vmatprep.subr.mxu0 0.0
      %2569 = vmatpush1.msra.mxu0 0.0
      %2570 = vmatprep.subr.mxu0 0.0
      %2571 = vmatpush1.msra.mxu0 0.0
      %2572 = vmatprep.subr.mxu0 0.0
      %2573 = vmatpush1.msra.mxu0 0.0
      %2574 = vmatprep.subr.mxu0 0.0
      %2575 = vmatpush1.msra.mxu0 0.0
      %2576 = vmatprep.subr.mxu0 0.0
      %2577 = vmatpush1.msra.mxu0 0.0
      %2578 = vmatprep.subr.mxu0 0.0
      %2579 = vmatpush1.msra.mxu0 0.0
      %2580 = vmatprep.subr.mxu0 0.0
      %2581 = vmatpush1.msra.mxu0 0.0
      %2582 = vmatprep.subr.mxu0 0.0
      %2583 = vmatpush1.msra.mxu0 0.0
      %2584 = vmatprep.subr.mxu0 0.0
      %2585 = vmatpush1.msra.mxu0 0.0
      %2586 = vmatprep.subr.mxu0 0.0
      %2587 = vmatpush1.msra.mxu0 0.0
      %2588 = vmatprep.subr.mxu0 0.0
      %2589 = vmatpush1.msra.mxu0 0.0
      %2590 = vmatprep.subr.mxu0 0.0
      %2591 = vmatpush1.msra.mxu0 0.0
      %2592 = vmatprep.mubr.f32.mxu0 0.0
      %2593 = vmatmul.mubr.f32.gmra.mrb[0].mxu0 %v2526
      %v2594 = vpop.f32.mrb[0].mxu0
      %v2595 = vadd.f32 0.0, %v2594
      %v2596 = vpop.f32.mrb[0].mxu0
      %2597 = vdwg.mxu0
      %v2598 = vadd.f32 %v2514, %v2595
      %2599 = vrot.lane.b32.xlu0 %v2353, 1
      %v2600 = vpop.permute.xlu0 %2599
      %2601 = vrot.lane.b32.xlu0 %v2354, 1
      %v2602 = vpop.permute.xlu0 %2601
      %v2603 = vmul.f32 %v2600, %v1756
      %v2604 = vmul.f32 %v2602, %v1756
      %s2605 = scalar_lea.vmem %s10, 12
      %v2606 = vld [vmem:[%s2605] sm:$0xf]
      %v2608 = vsel %vm2370, %v2606, 0
      %2610 = vmatprep.subr.mxu0 0.0
      %2611 = vmatpush1.msra.mxu0 %v2603
      %2612 = vmatprep.subr.mxu0 0.0
      %2613 = vmatpush1.msra.mxu0 %v2604
      %2614 = vmatprep.subr.mxu0 0.0
      %2615 = vmatpush1.msra.mxu0 0.0
      %2616 = vmatprep.subr.mxu0 0.0
      %2617 = vmatpush1.msra.mxu0 0.0
      %2618 = vmatprep.subr.mxu0 0.0
      %2619 = vmatpush1.msra.mxu0 0.0
      %2620 = vmatprep.subr.mxu0 0.0
      %2621 = vmatpush1.msra.mxu0 0.0
      %2622 = vmatprep.subr.mxu0 0.0
      %2623 = vmatpush1.msra.mxu0 0.0
      %2624 = vmatprep.subr.mxu0 0.0
      %2625 = vmatpush1.msra.mxu0 0.0
      %2626 = vmatprep.subr.mxu0 0.0
      %2627 = vmatpush1.msra.mxu0 0.0
      %2628 = vmatprep.subr.mxu0 0.0
      %2629 = vmatpush1.msra.mxu0 0.0
      %2630 = vmatprep.subr.mxu0 0.0
      %2631 = vmatpush1.msra.mxu0 0.0
      %2632 = vmatprep.subr.mxu0 0.0
      %2633 = vmatpush1.msra.mxu0 0.0
      %2634 = vmatprep.subr.mxu0 0.0
      %2635 = vmatpush1.msra.mxu0 0.0
      %2636 = vmatprep.subr.mxu0 0.0
      %2637 = vmatpush1.msra.mxu0 0.0
      %2638 = vmatprep.subr.mxu0 0.0
      %2639 = vmatpush1.msra.mxu0 0.0
      %2640 = vmatprep.subr.mxu0 0.0
      %2641 = vmatpush1.msra.mxu0 0.0
      %2642 = vmatprep.subr.mxu0 0.0
      %2643 = vmatpush1.msra.mxu0 0.0
      %2644 = vmatprep.subr.mxu0 0.0
      %2645 = vmatpush1.msra.mxu0 0.0
      %2646 = vmatprep.subr.mxu0 0.0
      %2647 = vmatpush1.msra.mxu0 0.0
      %2648 = vmatprep.subr.mxu0 0.0
      %2649 = vmatpush1.msra.mxu0 0.0
      %2650 = vmatprep.subr.mxu0 0.0
      %2651 = vmatpush1.msra.mxu0 0.0
      %2652 = vmatprep.subr.mxu0 0.0
      %2653 = vmatpush1.msra.mxu0 0.0
      %2654 = vmatprep.subr.mxu0 0.0
      %2655 = vmatpush1.msra.mxu0 0.0
      %2656 = vmatprep.subr.mxu0 0.0
      %2657 = vmatpush1.msra.mxu0 0.0
      %2658 = vmatprep.subr.mxu0 0.0
      %2659 = vmatpush1.msra.mxu0 0.0
      %2660 = vmatprep.subr.mxu0 0.0
      %2661 = vmatpush1.msra.mxu0 0.0
      %2662 = vmatprep.subr.mxu0 0.0
      %2663 = vmatpush1.msra.mxu0 0.0
      %2664 = vmatprep.subr.mxu0 0.0
      %2665 = vmatpush1.msra.mxu0 0.0
      %2666 = vmatprep.subr.mxu0 0.0
      %2667 = vmatpush1.msra.mxu0 0.0
      %2668 = vmatprep.subr.mxu0 0.0
      %2669 = vmatpush1.msra.mxu0 0.0
      %2670 = vmatprep.subr.mxu0 0.0
      %2671 = vmatpush1.msra.mxu0 0.0
      %2672 = vmatprep.subr.mxu0 0.0
      %2673 = vmatpush1.msra.mxu0 0.0
      %2674 = vmatprep.mubr.f32.mxu0 0.0
      %2675 = vmatmul.mubr.f32.gmra.mrb[0].mxu0 %v2608
      %v2676 = vpop.f32.mrb[0].mxu0
      %v2677 = vadd.f32 0.0, %v2676
      %v2678 = vpop.f32.mrb[0].mxu0
      %2679 = vdwg.mxu0
      %v2680 = vadd.f32 %v2598, %v2677
      %v2681 = vmul.f32 %v2353, %v1850
      %v2682 = vmul.f32 %v2354, %v1850
      %s2683 = scalar_lea.vmem %s10, 16
      %v2684 = vld [vmem:[%s2683] sm:$0xf]
      %v2686 = vsel %vm2370, %v2684, 0
      %2688 = vmatprep.subr.mxu0 0.0
      %2689 = vmatpush1.msra.mxu0 %v2681
      %2690 = vmatprep.subr.mxu0 0.0
      %2691 = vmatpush1.msra.mxu0 %v2682
      %2692 = vmatprep.subr.mxu0 0.0
      %2693 = vmatpush1.msra.mxu0 0.0
      %2694 = vmatprep.subr.mxu0 0.0
      %2695 = vmatpush1.msra.mxu0 0.0
      %2696 = vmatprep.subr.mxu0 0.0
      %2697 = vmatpush1.msra.mxu0 0.0
      %2698 = vmatprep.subr.mxu0 0.0
      %2699 = vmatpush1.msra.mxu0 0.0
      %2700 = vmatprep.subr.mxu0 0.0
      %2701 = vmatpush1.msra.mxu0 0.0
      %2702 = vmatprep.subr.mxu0 0.0
      %2703 = vmatpush1.msra.mxu0 0.0
      %2704 = vmatprep.subr.mxu0 0.0
      %2705 = vmatpush1.msra.mxu0 0.0
      %2706 = vmatprep.subr.mxu0 0.0
      %2707 = vmatpush1.msra.mxu0 0.0
      %2708 = vmatprep.subr.mxu0 0.0
      %2709 = vmatpush1.msra.mxu0 0.0
      %2710 = vmatprep.subr.mxu0 0.0
      %2711 = vmatpush1.msra.mxu0 0.0
      %2712 = vmatprep.subr.mxu0 0.0
      %2713 = vmatpush1.msra.mxu0 0.0
      %2714 = vmatprep.subr.mxu0 0.0
      %2715 = vmatpush1.msra.mxu0 0.0
      %2716 = vmatprep.subr.mxu0 0.0
      %2717 = vmatpush1.msra.mxu0 0.0
      %2718 = vmatprep.subr.mxu0 0.0
      %2719 = vmatpush1.msra.mxu0 0.0
      %2720 = vmatprep.subr.mxu0 0.0
      %2721 = vmatpush1.msra.mxu0 0.0
      %2722 = vmatprep.subr.mxu0 0.0
      %2723 = vmatpush1.msra.mxu0 0.0
      %2724 = vmatprep.subr.mxu0 0.0
      %2725 = vmatpush1.msra.mxu0 0.0
      %2726 = vmatprep.subr.mxu0 0.0
      %2727 = vmatpush1.msra.mxu0 0.0
      %2728 = vmatprep.subr.mxu0 0.0
      %2729 = vmatpush1.msra.mxu0 0.0
      %2730 = vmatprep.subr.mxu0 0.0
      %2731 = vmatpush1.msra.mxu0 0.0
      %2732 = vmatprep.subr.mxu0 0.0
      %2733 = vmatpush1.msra.mxu0 0.0
      %2734 = vmatprep.subr.mxu0 0.0
      %2735 = vmatpush1.msra.mxu0 0.0
      %2736 = vmatprep.subr.mxu0 0.0
      %2737 = vmatpush1.msra.mxu0 0.0
      %2738 = vmatprep.subr.mxu0 0.0
      %2739 = vmatpush1.msra.mxu0 0.0
      %2740 = vmatprep.subr.mxu0 0.0
      %2741 = vmatpush1.msra.mxu0 0.0
      %2742 = vmatprep.subr.mxu0 0.0
      %2743 = vmatpush1.msra.mxu0 0.0
      %2744 = vmatprep.subr.mxu0 0.0
      %2745 = vmatpush1.msra.mxu0 0.0
      %2746 = vmatprep.subr.mxu0 0.0
      %2747 = vmatpush1.msra.mxu0 0.0
      %2748 = vmatprep.subr.mxu0 0.0
      %2749 = vmatpush1.msra.mxu0 0.0
      %2750 = vmatprep.subr.mxu0 0.0
      %2751 = vmatpush1.msra.mxu0 0.0
      %2752 = vmatprep.mubr.f32.mxu0 0.0
      %2753 = vmatmul.mubr.f32.gmra.mrb[0].mxu0 %v2686
      %v2754 = vpop.f32.mrb[0].mxu0
      %v2755 = vadd.f32 0.0, %v2754
      %v2756 = vpop.f32.mrb[0].mxu0
      %2757 = vdwg.mxu0
      %v2758 = vadd.f32 %v2680, %v2755
      %2759 = vrot.lane.b32.xlu0 %v2353, 127
      %v2760 = vpop.permute.xlu0 %2759
      %2761 = vrot.lane.b32.xlu0 %v2354, 127
      %v2762 = vpop.permute.xlu0 %2761
      %v2763 = vmul.f32 %v2760, %v1946
      %v2764 = vmul.f32 %v2762, %v1946
      %s2765 = scalar_lea.vmem %s10, 20
      %v2766 = vld [vmem:[%s2765] sm:$0xf]
      %v2768 = vsel %vm2370, %v2766, 0
      %2770 = vmatprep.subr.mxu0 0.0
      %2771 = vmatpush1.msra.mxu0 %v2763
      %2772 = vmatprep.subr.mxu0 0.0
      %2773 = vmatpush1.msra.mxu0 %v2764
      %2774 = vmatprep.subr.mxu0 0.0
      %2775 = vmatpush1.msra.mxu0 0.0
      %2776 = vmatprep.subr.mxu0 0.0
      %2777 = vmatpush1.msra.mxu0 0.0
      %2778 = vmatprep.subr.mxu0 0.0
      %2779 = vmatpush1.msra.mxu0 0.0
      %2780 = vmatprep.subr.mxu0 0.0
      %2781 = vmatpush1.msra.mxu0 0.0
      %2782 = vmatprep.subr.mxu0 0.0
      %2783 = vmatpush1.msra.mxu0 0.0
      %2784 = vmatprep.subr.mxu0 0.0
      %2785 = vmatpush1.msra.mxu0 0.0
      %2786 = vmatprep.subr.mxu0 0.0
      %2787 = vmatpush1.msra.mxu0 0.0
      %2788 = vmatprep.subr.mxu0 0.0
      %2789 = vmatpush1.msra.mxu0 0.0
      %2790 = vmatprep.subr.mxu0 0.0
      %2791 = vmatpush1.msra.mxu0 0.0
      %2792 = vmatprep.subr.mxu0 0.0
      %2793 = vmatpush1.msra.mxu0 0.0
      %2794 = vmatprep.subr.mxu0 0.0
      %2795 = vmatpush1.msra.mxu0 0.0
      %2796 = vmatprep.subr.mxu0 0.0
      %2797 = vmatpush1.msra.mxu0 0.0
      %2798 = vmatprep.subr.mxu0 0.0
      %2799 = vmatpush1.msra.mxu0 0.0
      %2800 = vmatprep.subr.mxu0 0.0
      %2801 = vmatpush1.msra.mxu0 0.0
      %2802 = vmatprep.subr.mxu0 0.0
      %2803 = vmatpush1.msra.mxu0 0.0
      %2804 = vmatprep.subr.mxu0 0.0
      %2805 = vmatpush1.msra.mxu0 0.0
      %2806 = vmatprep.subr.mxu0 0.0
      %2807 = vmatpush1.msra.mxu0 0.0
      %2808 = vmatprep.subr.mxu0 0.0
      %2809 = vmatpush1.msra.mxu0 0.0
      %2810 = vmatprep.subr.mxu0 0.0
      %2811 = vmatpush1.msra.mxu0 0.0
      %2812 = vmatprep.subr.mxu0 0.0
      %2813 = vmatpush1.msra.mxu0 0.0
      %2814 = vmatprep.subr.mxu0 0.0
      %2815 = vmatpush1.msra.mxu0 0.0
      %2816 = vmatprep.subr.mxu0 0.0
      %2817 = vmatpush1.msra.mxu0 0.0
      %2818 = vmatprep.subr.mxu0 0.0
      %2819 = vmatpush1.msra.mxu0 0.0
      %2820 = vmatprep.subr.mxu0 0.0
      %2821 = vmatpush1.msra.mxu0 0.0
      %2822 = vmatprep.subr.mxu0 0.0
      %2823 = vmatpush1.msra.mxu0 0.0
      %2824 = vmatprep.subr.mxu0 0.0
      %2825 = vmatpush1.msra.mxu0 0.0
      %2826 = vmatprep.subr.mxu0 0.0
      %2827 = vmatpush1.msra.mxu0 0.0
      %2828 = vmatprep.subr.mxu0 0.0
      %2829 = vmatpush1.msra.mxu0 0.0
      %2830 = vmatprep.subr.mxu0 0.0
      %2831 = vmatpush1.msra.mxu0 0.0
      %2832 = vmatprep.subr.mxu0 0.0
      %2833 = vmatpush1.msra.mxu0 0.0
      %2834 = vmatprep.mubr.f32.mxu0 0.0
      %2835 = vmatmul.mubr.f32.gmra.mrb[0].mxu0 %v2768
      %v2836 = vpop.f32.mrb[0].mxu0
      %v2837 = vadd.f32 0.0, %v2836
      %v2838 = vpop.f32.mrb[0].mxu0
      %2839 = vdwg.mxu0
      %v2840 = vadd.f32 %v2758, %v2837
      %2841 = vrot.lane.b32.xlu0 %v2353, 113
      %v2842 = vpop.permute.xlu0 %2841
      %2843 = vrot.lane.b32.xlu0 %v2354, 113
      %v2844 = vpop.permute.xlu0 %2843
      %v2845 = vmul.f32 %v2842, %v2042
      %v2846 = vmul.f32 %v2844, %v2042
      %s2847 = scalar_lea.vmem %s10, 24
      %v2848 = vld [vmem:[%s2847] sm:$0xf]
      %v2850 = vsel %vm2370, %v2848, 0
      %2852 = vmatprep.subr.mxu0 0.0
      %2853 = vmatpush1.msra.mxu0 %v2845
      %2854 = vmatprep.subr.mxu0 0.0
      %2855 = vmatpush1.msra.mxu0 %v2846
      %2856 = vmatprep.subr.mxu0 0.0
      %2857 = vmatpush1.msra.mxu0 0.0
      %2858 = vmatprep.subr.mxu0 0.0
      %2859 = vmatpush1.msra.mxu0 0.0
      %2860 = vmatprep.subr.mxu0 0.0
      %2861 = vmatpush1.msra.mxu0 0.0
      %2862 = vmatprep.subr.mxu0 0.0
      %2863 = vmatpush1.msra.mxu0 0.0
      %2864 = vmatprep.subr.mxu0 0.0
      %2865 = vmatpush1.msra.mxu0 0.0
      %2866 = vmatprep.subr.mxu0 0.0
      %2867 = vmatpush1.msra.mxu0 0.0
      %2868 = vmatprep.subr.mxu0 0.0
      %2869 = vmatpush1.msra.mxu0 0.0
      %2870 = vmatprep.subr.mxu0 0.0
      %2871 = vmatpush1.msra.mxu0 0.0
      %2872 = vmatprep.subr.mxu0 0.0
      %2873 = vmatpush1.msra.mxu0 0.0
      %2874 = vmatprep.subr.mxu0 0.0
      %2875 = vmatpush1.msra.mxu0 0.0
      %2876 = vmatprep.subr.mxu0 0.0
      %2877 = vmatpush1.msra.mxu0 0.0
      %2878 = vmatprep.subr.mxu0 0.0
      %2879 = vmatpush1.msra.mxu0 0.0
      %2880 = vmatprep.subr.mxu0 0.0
      %2881 = vmatpush1.msra.mxu0 0.0
      %2882 = vmatprep.subr.mxu0 0.0
      %2883 = vmatpush1.msra.mxu0 0.0
      %2884 = vmatprep.subr.mxu0 0.0
      %2885 = vmatpush1.msra.mxu0 0.0
      %2886 = vmatprep.subr.mxu0 0.0
      %2887 = vmatpush1.msra.mxu0 0.0
      %2888 = vmatprep.subr.mxu0 0.0
      %2889 = vmatpush1.msra.mxu0 0.0
      %2890 = vmatprep.subr.mxu0 0.0
      %2891 = vmatpush1.msra.mxu0 0.0
      %2892 = vmatprep.subr.mxu0 0.0
      %2893 = vmatpush1.msra.mxu0 0.0
      %2894 = vmatprep.subr.mxu0 0.0
      %2895 = vmatpush1.msra.mxu0 0.0
      %2896 = vmatprep.subr.mxu0 0.0
      %2897 = vmatpush1.msra.mxu0 0.0
      %2898 = vmatprep.subr.mxu0 0.0
      %2899 = vmatpush1.msra.mxu0 0.0
      %2900 = vmatprep.subr.mxu0 0.0
      %2901 = vmatpush1.msra.mxu0 0.0
      %2902 = vmatprep.subr.mxu0 0.0
      %2903 = vmatpush1.msra.mxu0 0.0
      %2904 = vmatprep.subr.mxu0 0.0
      %2905 = vmatpush1.msra.mxu0 0.0
      %2906 = vmatprep.subr.mxu0 0.0
      %2907 = vmatpush1.msra.mxu0 0.0
      %2908 = vmatprep.subr.mxu0 0.0
      %2909 = vmatpush1.msra.mxu0 0.0
      %2910 = vmatprep.subr.mxu0 0.0
      %2911 = vmatpush1.msra.mxu0 0.0
      %2912 = vmatprep.subr.mxu0 0.0
      %2913 = vmatpush1.msra.mxu0 0.0
      %2914 = vmatprep.subr.mxu0 0.0
      %2915 = vmatpush1.msra.mxu0 0.0
      %2916 = vmatprep.mubr.f32.mxu0 0.0
      %2917 = vmatmul.mubr.f32.gmra.mrb[0].mxu0 %v2850
      %v2918 = vpop.f32.mrb[0].mxu0
      %v2919 = vadd.f32 0.0, %v2918
      %v2920 = vpop.f32.mrb[0].mxu0
      %2921 = vdwg.mxu0
      %v2922 = vadd.f32 %v2840, %v2919
      %2923 = vrot.lane.b32.xlu0 %v2353, 112
      %v2924 = vpop.permute.xlu0 %2923
      %2925 = vrot.lane.b32.xlu0 %v2354, 112
      %v2926 = vpop.permute.xlu0 %2925
      %v2927 = vmul.f32 %v2924, %v2138
      %v2928 = vmul.f32 %v2926, %v2138
      %s2929 = scalar_lea.vmem %s10, 28
      %v2930 = vld [vmem:[%s2929] sm:$0xf]
      %v2932 = vsel %vm2370, %v2930, 0
      %2934 = vmatprep.subr.mxu0 0.0
      %2935 = vmatpush1.msra.mxu0 %v2927
      %2936 = vmatprep.subr.mxu0 0.0
      %2937 = vmatpush1.msra.mxu0 %v2928
      %2938 = vmatprep.subr.mxu0 0.0
      %2939 = vmatpush1.msra.mxu0 0.0
      %2940 = vmatprep.subr.mxu0 0.0
      %2941 = vmatpush1.msra.mxu0 0.0
      %2942 = vmatprep.subr.mxu0 0.0
      %2943 = vmatpush1.msra.mxu0 0.0
      %2944 = vmatprep.subr.mxu0 0.0
      %2945 = vmatpush1.msra.mxu0 0.0
      %2946 = vmatprep.subr.mxu0 0.0
      %2947 = vmatpush1.msra.mxu0 0.0
      %2948 = vmatprep.subr.mxu0 0.0
      %2949 = vmatpush1.msra.mxu0 0.0
      %2950 = vmatprep.subr.mxu0 0.0
      %2951 = vmatpush1.msra.mxu0 0.0
      %2952 = vmatprep.subr.mxu0 0.0
      %2953 = vmatpush1.msra.mxu0 0.0
      %2954 = vmatprep.subr.mxu0 0.0
      %2955 = vmatpush1.msra.mxu0 0.0
      %2956 = vmatprep.subr.mxu0 0.0
      %2957 = vmatpush1.msra.mxu0 0.0
      %2958 = vmatprep.subr.mxu0 0.0
      %2959 = vmatpush1.msra.mxu0 0.0
      %2960 = vmatprep.subr.mxu0 0.0
      %2961 = vmatpush1.msra.mxu0 0.0
      %2962 = vmatprep.subr.mxu0 0.0
      %2963 = vmatpush1.msra.mxu0 0.0
      %2964 = vmatprep.subr.mxu0 0.0
      %2965 = vmatpush1.msra.mxu0 0.0
      %2966 = vmatprep.subr.mxu0 0.0
      %2967 = vmatpush1.msra.mxu0 0.0
      %2968 = vmatprep.subr.mxu0 0.0
      %2969 = vmatpush1.msra.mxu0 0.0
      %2970 = vmatprep.subr.mxu0 0.0
      %2971 = vmatpush1.msra.mxu0 0.0
      %2972 = vmatprep.subr.mxu0 0.0
      %2973 = vmatpush1.msra.mxu0 0.0
      %2974 = vmatprep.subr.mxu0 0.0
      %2975 = vmatpush1.msra.mxu0 0.0
      %2976 = vmatprep.subr.mxu0 0.0
      %2977 = vmatpush1.msra.mxu0 0.0
      %2978 = vmatprep.subr.mxu0 0.0
      %2979 = vmatpush1.msra.mxu0 0.0
      %2980 = vmatprep.subr.mxu0 0.0
      %2981 = vmatpush1.msra.mxu0 0.0
      %2982 = vmatprep.subr.mxu0 0.0
      %2983 = vmatpush1.msra.mxu0 0.0
      %2984 = vmatprep.subr.mxu0 0.0
      %2985 = vmatpush1.msra.mxu0 0.0
      %2986 = vmatprep.subr.mxu0 0.0
      %2987 = vmatpush1.msra.mxu0 0.0
      %2988 = vmatprep.subr.mxu0 0.0
      %2989 = vmatpush1.msra.mxu0 0.0
      %2990 = vmatprep.subr.mxu0 0.0
      %2991 = vmatpush1.msra.mxu0 0.0
      %2992 = vmatprep.subr.mxu0 0.0
      %2993 = vmatpush1.msra.mxu0 0.0
      %2994 = vmatprep.subr.mxu0 0.0
      %2995 = vmatpush1.msra.mxu0 0.0
      %2996 = vmatprep.subr.mxu0 0.0
      %2997 = vmatpush1.msra.mxu0 0.0
      %2998 = vmatprep.mubr.f32.mxu0 0.0
      %2999 = vmatmul.mubr.f32.gmra.mrb[0].mxu0 %v2932
      %v3000 = vpop.f32.mrb[0].mxu0
      %v3001 = vadd.f32 0.0, %v3000
      %v3002 = vpop.f32.mrb[0].mxu0
      %3003 = vdwg.mxu0
      %v3004 = vadd.f32 %v2922, %v3001
      %3005 = vrot.lane.b32.xlu0 %v2353, 111
      %v3006 = vpop.permute.xlu0 %3005
      %3007 = vrot.lane.b32.xlu0 %v2354, 111
      %v3008 = vpop.permute.xlu0 %3007
      %v3009 = vmul.f32 %v3006, %v2234
      %v3010 = vmul.f32 %v3008, %v2234
      %s3011 = scalar_lea.vmem %s10, 32
      %v3012 = vld [vmem:[%s3011] sm:$0xf]
      %v3014 = vsel %vm2370, %v3012, 0
      %3016 = vmatprep.subr.mxu0 0.0
      %3017 = vmatpush1.msra.mxu0 %v3009
      %3018 = vmatprep.subr.mxu0 0.0
      %3019 = vmatpush1.msra.mxu0 %v3010
      %3020 = vmatprep.subr.mxu0 0.0
      %3021 = vmatpush1.msra.mxu0 0.0
      %3022 = vmatprep.subr.mxu0 0.0
      %3023 = vmatpush1.msra.mxu0 0.0
      %3024 = vmatprep.subr.mxu0 0.0
      %3025 = vmatpush1.msra.mxu0 0.0
      %3026 = vmatprep.subr.mxu0 0.0
      %3027 = vmatpush1.msra.mxu0 0.0
      %3028 = vmatprep.subr.mxu0 0.0
      %3029 = vmatpush1.msra.mxu0 0.0
      %3030 = vmatprep.subr.mxu0 0.0
      %3031 = vmatpush1.msra.mxu0 0.0
      %3032 = vmatprep.subr.mxu0 0.0
      %3033 = vmatpush1.msra.mxu0 0.0
      %3034 = vmatprep.subr.mxu0 0.0
      %3035 = vmatpush1.msra.mxu0 0.0
      %3036 = vmatprep.subr.mxu0 0.0
      %3037 = vmatpush1.msra.mxu0 0.0
      %3038 = vmatprep.subr.mxu0 0.0
      %3039 = vmatpush1.msra.mxu0 0.0
      %3040 = vmatprep.subr.mxu0 0.0
      %3041 = vmatpush1.msra.mxu0 0.0
      %3042 = vmatprep.subr.mxu0 0.0
      %3043 = vmatpush1.msra.mxu0 0.0
      %3044 = vmatprep.subr.mxu0 0.0
      %3045 = vmatpush1.msra.mxu0 0.0
      %3046 = vmatprep.subr.mxu0 0.0
      %3047 = vmatpush1.msra.mxu0 0.0
      %3048 = vmatprep.subr.mxu0 0.0
      %3049 = vmatpush1.msra.mxu0 0.0
      %3050 = vmatprep.subr.mxu0 0.0
      %3051 = vmatpush1.msra.mxu0 0.0
      %3052 = vmatprep.subr.mxu0 0.0
      %3053 = vmatpush1.msra.mxu0 0.0
      %3054 = vmatprep.subr.mxu0 0.0
      %3055 = vmatpush1.msra.mxu0 0.0
      %3056 = vmatprep.subr.mxu0 0.0
      %3057 = vmatpush1.msra.mxu0 0.0
      %3058 = vmatprep.subr.mxu0 0.0
      %3059 = vmatpush1.msra.mxu0 0.0
      %3060 = vmatprep.subr.mxu0 0.0
      %3061 = vmatpush1.msra.mxu0 0.0
      %3062 = vmatprep.subr.mxu0 0.0
      %3063 = vmatpush1.msra.mxu0 0.0
      %3064 = vmatprep.subr.mxu0 0.0
      %3065 = vmatpush1.msra.mxu0 0.0
      %3066 = vmatprep.subr.mxu0 0.0
      %3067 = vmatpush1.msra.mxu0 0.0
      %3068 = vmatprep.subr.mxu0 0.0
      %3069 = vmatpush1.msra.mxu0 0.0
      %3070 = vmatprep.subr.mxu0 0.0
      %3071 = vmatpush1.msra.mxu0 0.0
      %3072 = vmatprep.subr.mxu0 0.0
      %3073 = vmatpush1.msra.mxu0 0.0
      %3074 = vmatprep.subr.mxu0 0.0
      %3075 = vmatpush1.msra.mxu0 0.0
      %3076 = vmatprep.subr.mxu0 0.0
      %3077 = vmatpush1.msra.mxu0 0.0
      %3078 = vmatprep.subr.mxu0 0.0
      %3079 = vmatpush1.msra.mxu0 0.0
      %3080 = vmatprep.mubr.f32.mxu0 0.0
      %3081 = vmatmul.mubr.f32.gmra.mrb[0].mxu0 %v3014
      %v3082 = vpop.f32.mrb[0].mxu0
      %v3083 = vadd.f32 0.0, %v3082
      %v3084 = vpop.f32.mrb[0].mxu0
      %3085 = vdwg.mxu0
      %v3086 = vadd.f32 %v3004, %v3083
      %v3087 = vld [vmem:[%s11] sm:$0xf]
      %3089 = vset.pattern.permute.xlu0 0
      %3090 = vperm.xlu0 %3089, %v3087
      %v3091 = vpop.permute.xlu0 %3090
      %v3093 = vmul.f32 %v3086, %v3091
      %v3094 = vld [vmem:[%s12] sm:$0xf]
      %3096 = vset.pattern.permute.xlu0 0
      %3097 = vperm.xlu0 %3096, %v3094
      %v3098 = vpop.permute.xlu0 %3097
      %v3100 = vadd.f32 %v3093, %v3098
      %v3101 = vtanh.pop %v3100
      %v3102 = vadd.f32 %v1465, %v3101
      %v3103 = vsel %vm1492, %v3102, -inf
      %3104 = vmax.xlane.f32.xlu0 %v3103
      %v3105 = vpop.xlane.xlu0 %3104
      %v3106 = vld [vmem:[%s14] sm:$0xff]
      %v3107 = vld [vmem:[%s14 + $0x8] sm:$0xff]
      %v3108 = vld [vmem:[%s13] sm:$0xff]
      %v3109 = vld [vmem:[%s13 + $0x8] sm:$0xff]
      %v3110 = vlaneseq
      %v3111 = vshrl.u32 %v3110, 7
      %v3112 = vsub.s32 0, %v3111
      %v3113 = vrot.slane %v3105, %v3112
      %v3114 = vmul.f32 %v3108, %v3113
      %v3115 = vmul.f32 %v3109, %v3113
      %v3116 = vadd.f32 %v3106, %v3114
      %v3117 = vadd.f32 %v3107, %v3115
      %v3118 = vlaneseq
      %v3119 = vshrl.u32 %v3118, 7
      %v3120 = vsub.s32 1, %v3119
      %v3121 = vrot.slane %v3105, %v3120
      %v3122 = vmul.f32 %v3108, %v3121
      %v3123 = vmul.f32 %v3109, %v3121
      %3126 = vrot.lane.b32.xlu0 %v3122, 127
      %v3127 = vpop.permute.xlu0 %3126
      %3128 = vrot.lane.b32.xlu0 %v3123, 127
      %v3129 = vpop.permute.xlu0 %3128
      %v3132 = vadd.f32 %v3116, %v3127
      %v3133 = vadd.f32 %v3117, %v3129
      %v3134 = vlaneseq
      %v3135 = vshrl.u32 %v3134, 7
      %v3136 = vsub.s32 2, %v3135
      %v3137 = vrot.slane %v3105, %v3136
      %v3138 = vmul.f32 %v3108, %v3137
      %v3139 = vmul.f32 %v3109, %v3137
      %3142 = vrot.lane.b32.xlu0 %v3138, 126
      %v3143 = vpop.permute.xlu0 %3142
      %3144 = vrot.lane.b32.xlu0 %v3139, 126
      %v3145 = vpop.permute.xlu0 %3144
      %v3148 = vadd.f32 %v3132, %v3143
      %v3149 = vadd.f32 %v3133, %v3145
      %v3150 = vlaneseq
      %v3151 = vshrl.u32 %v3150, 7
      %v3152 = vsub.s32 3, %v3151
      %v3153 = vrot.slane %v3105, %v3152
      %v3154 = vmul.f32 %v3108, %v3153
      %v3155 = vmul.f32 %v3109, %v3153
      %3158 = vrot.lane.b32.xlu0 %v3154, 125
      %v3159 = vpop.permute.xlu0 %3158
      %3160 = vrot.lane.b32.xlu0 %v3155, 125
      %v3161 = vpop.permute.xlu0 %3160
      %v3164 = vadd.f32 %v3148, %v3159
      %v3165 = vadd.f32 %v3149, %v3161
      %v3166 = vmax.f32 %v3164, 0.0
      %v3167 = vmax.f32 %v3165, 0.0
      %v3168 = vld [vmem:[#allocation2] sm:$0x1]
      %v3169 = vld [vmem:[%s15] sm:$0x1]
      %v3170 = vmul.f32 %v3169, %v3166
      %v3171 = vadd.f32 %v3168, %v3170
      %v3174 = vunpack.c.l.s4 1966171168
      %v3175 = vunpack.c.0.s8 %v3174
      %v3176 = vlaneseq
      %v3177 = vshrl.u32 %v3176, 7
      %v3178 = vsub.s32 %v3175, %v3177
      %v3179 = vrot.slane %v3166, %v3178
      %v3180 = vcombine.high %v3179, %v3179
      %v3182 = vunpack.c.l.s4 1966171168
      %v3183 = vunpack.c.0.s8 %v3182
      %v3184 = vlaneseq
      %v3185 = vshrl.u32 %v3184, 7
      %v3186 = vsub.s32 %v3183, %v3185
      %v3187 = vrot.slane %v3179, %v3186
      %v3189 = vunpack.c.l.s4 1966171168
      %v3190 = vunpack.c.0.s8 %v3189
      %v3191 = vlaneseq
      %v3192 = vshrl.u32 %v3191, 7
      %v3193 = vsub.s32 %v3190, %v3192
      %v3194 = vrot.slane %v3180, %v3193
      %3195 = vrot.lane.b32.xlu0 %v3194, 1
      %v3196 = vpop.permute.xlu0 %3195
      %v3198 = vmul.f32 %v3169, %v3196
      %3200 = vrot.lane.b32.xlu0 %v3198, 127
      %v3201 = vpop.permute.xlu0 %3200
      %v3203 = vadd.f32 %v3171, %v3201
      %v3204 = vcombine.high %v3187, %v3187
      %3205 = vrot.lane.b32.xlu0 %v3204, 2
      %v3206 = vpop.permute.xlu0 %3205
      %v3208 = vmul.f32 %v3169, %v3206
      %3210 = vrot.lane.b32.xlu0 %v3208, 126
      %v3211 = vpop.permute.xlu0 %3210
      %v3213 = vadd.f32 %v3203, %v3211
      %v3214 = vcombine.high %v3194, %v3194
      %3215 = vrot.lane.b32.xlu0 %v3214, 3
      %v3216 = vpop.permute.xlu0 %3215
      %v3218 = vmul.f32 %v3169, %v3216
      %3220 = vrot.lane.b32.xlu0 %v3218, 125
      %v3221 = vpop.permute.xlu0 %3220
      %v3223 = vadd.f32 %v3213, %v3221
      %v3224 = vcombine.high %v3166, %v3166
      %v3226 = vunpack.c.l.s4 1966171168
      %v3227 = vunpack.c.0.s8 %v3226
      %v3228 = vlaneseq
      %v3229 = vshrl.u32 %v3228, 7
      %v3230 = vsub.s32 %v3227, %v3229
      %v3231 = vrot.slane %v3224, %v3230
      %v3233 = vunpack.c.l.s4 1966171168
      %v3234 = vunpack.c.0.s8 %v3233
      %v3235 = vlaneseq
      %v3236 = vshrl.u32 %v3235, 7
      %v3237 = vsub.s32 %v3234, %v3236
      %v3238 = vrot.slane %v3231, %v3237
      %3239 = vrot.lane.b32.xlu0 %v3238, 4
      %v3240 = vpop.permute.xlu0 %3239
      %v3242 = vmul.f32 %v3169, %v3240
      %3244 = vrot.lane.b32.xlu0 %v3242, 124
      %v3245 = vpop.permute.xlu0 %3244
      %v3247 = vadd.f32 %v3223, %v3245
      %v3248 = vcombine.high %v3231, %v3231
      %v3250 = vunpack.c.l.s4 1966171168
      %v3251 = vunpack.c.0.s8 %v3250
      %v3252 = vlaneseq
      %v3253 = vshrl.u32 %v3252, 7
      %v3254 = vsub.s32 %v3251, %v3253
      %v3255 = vrot.slane %v3248, %v3254
      %3256 = vrot.lane.b32.xlu0 %v3255, 5
      %v3257 = vpop.permute.xlu0 %3256
      %v3259 = vmul.f32 %v3169, %v3257
      %3261 = vrot.lane.b32.xlu0 %v3259, 123
      %v3262 = vpop.permute.xlu0 %3261
      %v3264 = vadd.f32 %v3247, %v3262
      %v3265 = vcombine.high %v3238, %v3238
      %3266 = vrot.lane.b32.xlu0 %v3265, 6
      %v3267 = vpop.permute.xlu0 %3266
      %v3269 = vmul.f32 %v3169, %v3267
      %3271 = vrot.lane.b32.xlu0 %v3269, 122
      %v3272 = vpop.permute.xlu0 %3271
      %v3274 = vadd.f32 %v3264, %v3272
      %v3275 = vcombine.high %v3255, %v3255
      %3276 = vrot.lane.b32.xlu0 %v3275, 7
      %v3277 = vpop.permute.xlu0 %3276
      %v3279 = vmul.f32 %v3169, %v3277
      %3281 = vrot.lane.b32.xlu0 %v3279, 121
      %v3282 = vpop.permute.xlu0 %3281
      %v3284 = vadd.f32 %v3274, %v3282
      %v3287 = vunpack.c.l.s4 1966171168
      %v3288 = vunpack.c.0.s8 %v3287
      %v3289 = vlaneseq
      %v3290 = vshrl.u32 %v3289, 7
      %v3291 = vsub.s32 %v3288, %v3290
      %v3292 = vrot.slane %v3167, %v3291
      %v3294 = vunpack.c.l.s4 1966171168
      %v3295 = vunpack.c.0.s8 %v3294
      %v3296 = vlaneseq
      %v3297 = vshrl.u32 %v3296, 7
      %v3298 = vsub.s32 %v3295, %v3297
      %v3299 = vrot.slane %v3292, %v3298
      %3300 = vrot.lane.b32.xlu0 %v3299, 8
      %v3301 = vpop.permute.xlu0 %3300
      %v3303 = vmul.f32 %v3169, %v3301
      %3305 = vrot.lane.b32.xlu0 %v3303, 120
      %v3306 = vpop.permute.xlu0 %3305
      %v3308 = vadd.f32 %v3284, %v3306
      %v3309 = vcombine.high %v3292, %v3292
      %v3311 = vunpack.c.l.s4 1966171168
      %v3312 = vunpack.c.0.s8 %v3311
      %v3313 = vlaneseq
      %v3314 = vshrl.u32 %v3313, 7
      %v3315 = vsub.s32 %v3312, %v3314
      %v3316 = vrot.slane %v3309, %v3315
      %3317 = vrot.lane.b32.xlu0 %v3316, 9
      %v3318 = vpop.permute.xlu0 %3317
      %v3320 = vmul.f32 %v3169, %v3318
      %3322 = vrot.lane.b32.xlu0 %v3320, 119
      %v3323 = vpop.permute.xlu0 %3322
      %v3325 = vadd.f32 %v3308, %v3323
      %v3326 = vcombine.high %v3299, %v3299
      %3327 = vrot.lane.b32.xlu0 %v3326, 10
      %v3328 = vpop.permute.xlu0 %3327
      %v3330 = vmul.f32 %v3169, %v3328
      %3332 = vrot.lane.b32.xlu0 %v3330, 118
      %v3333 = vpop.permute.xlu0 %3332
      %v3335 = vadd.f32 %v3325, %v3333
      %v3336 = vcombine.high %v3316, %v3316
      %3337 = vrot.lane.b32.xlu0 %v3336, 11
      %v3338 = vpop.permute.xlu0 %3337
      %v3340 = vmul.f32 %v3169, %v3338
      %3342 = vrot.lane.b32.xlu0 %v3340, 117
      %v3343 = vpop.permute.xlu0 %3342
      %v3345 = vadd.f32 %v3335, %v3343
      %v3346 = vcombine.high %v3167, %v3167
      %v3348 = vunpack.c.l.s4 1966171168
      %v3349 = vunpack.c.0.s8 %v3348
      %v3350 = vlaneseq
      %v3351 = vshrl.u32 %v3350, 7
      %v3352 = vsub.s32 %v3349, %v3351
      %v3353 = vrot.slane %v3346, %v3352
      %v3355 = vunpack.c.l.s4 1966171168
      %v3356 = vunpack.c.0.s8 %v3355
      %v3357 = vlaneseq
      %v3358 = vshrl.u32 %v3357, 7
      %v3359 = vsub.s32 %v3356, %v3358
      %v3360 = vrot.slane %v3353, %v3359
      %3361 = vrot.lane.b32.xlu0 %v3360, 12
      %v3362 = vpop.permute.xlu0 %3361
      %v3364 = vmul.f32 %v3169, %v3362
      %3366 = vrot.lane.b32.xlu0 %v3364, 116
      %v3367 = vpop.permute.xlu0 %3366
      %v3369 = vadd.f32 %v3345, %v3367
      %v3370 = vcombine.high %v3353, %v3353
      %v3372 = vunpack.c.l.s4 1966171168
      %v3373 = vunpack.c.0.s8 %v3372
      %v3374 = vlaneseq
      %v3375 = vshrl.u32 %v3374, 7
      %v3376 = vsub.s32 %v3373, %v3375
      %v3377 = vrot.slane %v3370, %v3376
      %3378 = vrot.lane.b32.xlu0 %v3377, 13
      %v3379 = vpop.permute.xlu0 %3378
      %v3381 = vmul.f32 %v3169, %v3379
      %3383 = vrot.lane.b32.xlu0 %v3381, 115
      %v3384 = vpop.permute.xlu0 %3383
      %v3386 = vadd.f32 %v3369, %v3384
      %v3387 = vcombine.high %v3360, %v3360
      %3388 = vrot.lane.b32.xlu0 %v3387, 14
      %v3389 = vpop.permute.xlu0 %3388
      %v3391 = vmul.f32 %v3169, %v3389
      %3393 = vrot.lane.b32.xlu0 %v3391, 114
      %v3394 = vpop.permute.xlu0 %3393
      %v3396 = vadd.f32 %v3386, %v3394
      %v3397 = vcombine.high %v3377, %v3377
      %3398 = vrot.lane.b32.xlu0 %v3397, 15
      %v3399 = vpop.permute.xlu0 %3398
      %v3401 = vmul.f32 %v3169, %v3399
      %3403 = vrot.lane.b32.xlu0 %v3401, 113
      %v3404 = vpop.permute.xlu0 %3403
      %v3406 = vadd.f32 %v3396, %v3404
      %v3407 = vsub.f32 0.0, %v3406
      %v3408 = vmul.f32 %v3407, 1.442695
      %v3409 = vpow.pop %v3408
      %v3410 = vadd.f32 %v3409, 1.0
      %v3411 = vrcp.pop %v3410
      %v3412 = vmul.f32 1.0, %v3411
      %vm3413 = vcmask 0
      %3414 = vst.msk [vmem:[%s557] sm:$0x1] %vm3413, %v3412
      %p3415 = scmp.lt.s32.totalorder %s30, 1
      %s3416 = scalar_select %p3415, %s30, 1
      %s3417 = scalar_lea.vmem %s17, %s3416
      // Predicated region
      $region89: #{m6aiso_forward.1} parent=87 // pred_check
        %p3418 = pneg %p415
      $region90: #{m6aiso_forward.1} parent=87 // pred_check_branch
        %3420 = sbr.rel (%p3418) target = $region92
      $region91: #{m6aiso_forward.1} parent=87 // pred_region
        _
      $region92: #{m6aiso_forward.1} parent=87 // pred_fallthru
        _
    $region88: #{m6aiso_forward.1} parent=5 // pred_fallthru
      _
    %p3421 = scmp.le.s32.totalorder 2, %s25
    // Predicated region
    $region93: #{m6aiso_forward.1} parent=5 // pred_check
      %p3422 = pneg %p3421
    $region94: #{m6aiso_forward.1} parent=5 // pred_check_branch
      %3424 = sbr.rel (%p3422) target = $region96
    $region95: #{m6aiso_forward.1} parent=5 // pred_region
      %s3425 = ssub.s32 %s25, 2
      // Predicated region
      $region97: #{m6aiso_forward.1} parent=95 // pred_check
        %p3426 = pneg %p421
      $region98: #{m6aiso_forward.1} parent=95 // pred_check_branch
        %3428 = sbr.rel (%p3426) target = $region100
      $region99: #{m6aiso_forward.1} parent=95 // pred_region
        %p3429 = scmp.lt.s32.totalorder %s31, 1
        %s3430 = scalar_select %p3429, %s31, 1
        %s3431 = scalar_lea.vmem %s17, %s3430
      $region100: #{m6aiso_forward.1} parent=95 // pred_fallthru
        _
    $region96: #{m6aiso_forward.1} parent=5 // pred_fallthru
      _
  $region6: #{m6aiso_forward.1} parent=0 // loop_footer
    %s29 = sadd.s32 1, %s25
  $region7: #{m6aiso_forward.1} parent=0 // loop_footer_branch
    %24 = sbr.rel target = $region3
  $region8: #{m6aiso_forward.1} parent=0 // loop_exit
    _

</llo_original>
